<compile_context>
chip_gen: v7x
topology: tpu7x:2x2x1
jax: 0.10.0
libtpu: 0.0.40
codegen_flags: <defaults>
</compile_context>

<pallas_src>
import jax
import jax.numpy as jnp
from jax.experimental import pallas as pl
from jax.experimental.pallas import tpu as pltpu


# ----------------------------- Pallas kernel ------------------------------ #

def _egnn_kernel(x_ref,
                 wq1_ref, wk1_ref, wv1_ref,
                 wq2_ref, wk2_ref, wv2_ref,
                 wl1_ref, bl1_ref,
                 wl2_ref, bl2_ref,
                 out_ref):
    """One block of graphs per grid step: attention x2, MLP head, node max-pool."""
    G, N, D_in = x_ref.shape
    x = x_ref[...]                                           # (G, N, D_in) bf16

    def attn(h_bf16, wq_ref, wk_ref, wv_ref):
        # h_bf16: (G, N, D) bf16  ->  (G, N, H) f32
        D = h_bf16.shape[-1]
        H = wq_ref.shape[1]
        hf = h_bf16.reshape(G * N, D)        # flatten: one wide MXU matmul per proj
        q = jnp.dot(hf, wq_ref[...],
                    preferred_element_type=jnp.float32).reshape(G, N, H)
        k = jnp.dot(hf, wk_ref[...],
                    preferred_element_type=jnp.float32).reshape(G, N, H)
        v = jnp.dot(hf, wv_ref[...],
                    preferred_element_type=jnp.float32).reshape(G, N, H)
        scale = 1.0 / jnp.sqrt(jnp.float32(H))
        # Batched scores; hidden dims contracted directly (no materialized k.T).
        s = jnp.einsum('gnd,gmd->gnm',
                       q.astype(jnp.bfloat16), k.astype(jnp.bfloat16),
                       preferred_element_type=jnp.float32) * scale     # (G, N, N)
        # Numerically stable softmax over nodes, kept in f32 (v5e-safe).
        m = jnp.max(s, axis=-1, keepdims=True)
        e = jnp.exp(s - m)
        a = e * pl.reciprocal(jnp.sum(e, axis=-1, keepdims=True), approx=True)
        return jnp.einsum('gnm,gmd->gnd',
                          a.astype(jnp.bfloat16), v.astype(jnp.bfloat16),
                          preferred_element_type=jnp.float32)          # (G, N, H)

    # transformer1 + ReLU
    h = jnp.maximum(attn(x, wq1_ref, wk1_ref, wv1_ref), 0.0)
    # transformer2 + ReLU
    h = jnp.maximum(attn(h.astype(jnp.bfloat16), wq2_ref, wk2_ref, wv2_ref), 0.0)

    # lin1 + ReLU, lin2 -- on the flattened (G*N, H) slab.
    hf = h.reshape(G * N, h.shape[-1]).astype(jnp.bfloat16)
    h = jnp.maximum(
        jnp.dot(hf, wl1_ref[...], preferred_element_type=jnp.float32)
        + bl1_ref[...], 0.0)
    h = (jnp.dot(h.astype(jnp.bfloat16), wl2_ref[...],
                 preferred_element_type=jnp.float32) + bl2_ref[...])   # (G*N, OUTp)

    # torch.max(x, dim=0): per-graph, per-channel max over nodes.
    # One lane-dense (G, 128) store per grid step.
    out_ref[...] = jnp.max(h.reshape(G, N, -1), axis=1)[None, :, :]


# ------------------------------- Wrapper ----------------------------------- #

def _num_tensorcores():
    """Best-effort: 2 TensorCores per chip on v7x, else 1."""
    try:
        kind = jax.devices()[0].device_kind.lower()
        return 2 if ("v7" in kind or "7x" in kind) else 1
    except Exception:
        return 1


def egnn_pointnet_forward(x, params):
    """x: (B, N, D_in) batch of graphs ([pos | embedding]); returns (B, output_dim)."""
    wq1, wk1, wv1, wq2, wk2, wv2, wl1, bl1, wl2, bl2 = params
    B, N, D_in = x.shape
    hidden = wl1.shape[0]
    output_dim = wl2.shape[1]

    # Lane-dense output: pad lin2 columns to a multiple of 128 lanes so the
    # final store is unmasked; padding is sliced away below.
    out_pad = ((output_dim + 127) // 128) * 128
    wl2_p = jnp.pad(wl2, ((0, 0), (0, out_pad - output_dim)))
    bl2_p = jnp.pad(bl2, ((0, 0), (0, out_pad - output_dim)))

    # x is cast to bf16 before every MXU dot anyway; cast once here to halve DMA.
    x = x.astype(jnp.bfloat16)

    # v7x: 2 blocks ("parallel" grid axis shards them across the 2 TCs).
    # v5e / v6e: single-TC chips -> whole batch in one grid step.
    num_blocks = 2 if (_num_tensorcores() >= 2 and B % 2 == 0) else 1
    G = B // num_blocks

    def resident(arr):
        # Full-array block with a constant index_map: fetched once, VMEM-resident.
        zeros = (0,) * arr.ndim
        return pl.BlockSpec(arr.shape, lambda b, z=zeros: z)

    weights = (wq1, wk1, wv1, wq2, wk2, wv2, wl1, bl1, wl2_p, bl2_p)
    in_specs = ([pl.BlockSpec((G, N, D_in), lambda b: (b, 0, 0))]
                + [resident(w) for w in weights])
    out_specs = pl.BlockSpec((1, G, out_pad), lambda b: (b, 0, 0))

    flops_per_graph = (
        3 * 2 * N * D_in * hidden          # QKV proj 1
        + 4 * N * N * hidden               # attn1: scores + A@V
        + 3 * 2 * N * hidden * hidden      # QKV proj 2
        + 4 * N * N * hidden               # attn2: scores + A@V
        + 2 * N * hidden * hidden          # lin1
        + 2 * N * hidden * output_dim      # lin2
    )
    weight_bytes = sum(int(w.size) * w.dtype.itemsize for w in weights)
    cost = pl.CostEstimate(
        flops=B * flops_per_graph,
        transcendentals=2 * B * N * N,                        # softmax exps
        bytes_accessed=int(x.size) * x.dtype.itemsize
                       + weight_bytes
                       + B * out_pad * 4,
    )

    out = pl.pallas_call(
        _egnn_kernel,
        out_shape=jax.ShapeDtypeStruct((num_blocks, G, out_pad), jnp.float32),
        grid=(num_blocks,),
        in_specs=in_specs,
        out_specs=out_specs,
        compiler_params=pltpu.CompilerParams(
            dimension_semantics=("parallel",)),
        cost_estimate=cost,
    )(x, *weights)
    return out.reshape(B, out_pad)[:, :output_dim]


# ------------------------------ Param setup -------------------------------- #

def init_params(key, num_node_features, hidden_dim, output_dim, num_node_types):
    d_in = num_node_features + 3  # pos(3) concatenated with embedding
    ks = jax.random.split(key, 12)

    def w(k, shape, fan_in, dtype=jnp.bfloat16):
        return (jax.random.normal(k, shape, jnp.float32)
                / jnp.sqrt(fan_in)).astype(dtype)

    emb = w(ks[0], (num_node_types, num_node_features), 1.0, jnp.float32)
    # SE3Transformer 1 (d_in -> hidden): separate Q/K/V weights (no lane slicing).
    wq1 = w(ks[1], (d_in, hidden_dim), d_in)
    wk1 = w(ks[2], (d_in, hidden_dim), d_in)
    wv1 = w(ks[3], (d_in, hidden_dim), d_in)
    # SE3Transformer 2 (hidden -> hidden).
    wq2 = w(ks[4], (hidden_dim, hidden_dim), hidden_dim)
    wk2 = w(ks[5], (hidden_dim, hidden_dim), hidden_dim)
    wv2 = w(ks[6], (hidden_dim, hidden_dim), hidden_dim)
    # lin1 / lin2 stored transposed (in, out); weights bf16, biases f32.
    wl1 = w(ks[7], (hidden_dim, hidden_dim), hidden_dim)
    bl1 = w(ks[8], (1, hidden_dim), hidden_dim, jnp.float32)
    wl2 = w(ks[9], (hidden_dim, output_dim), hidden_dim)
    bl2 = w(ks[10], (1, output_dim), hidden_dim, jnp.float32)

    return emb, (wq1, wk1, wv1, wq2, wk2, wv2, wl1, bl1, wl2, bl2)


# --------------------------------- Main ------------------------------------ #

if __name__ == "__main__":
    num_node_features = 5
    hidden_dim = 32
    output_dim = 8
    num_node_types = 4
    num_nodes = 16
    num_graphs = 8          # batch of graphs processed in one pallas_call

    key = jax.random.PRNGKey(0)
    k_param, k_pos, k_z = jax.random.split(key, 3)

    emb_table, params = init_params(
        k_param, num_node_features, hidden_dim, output_dim, num_node_types)

    # data.pos : (B, N, 3) float, data.z : (B, N) int node types.
    pos = jax.random.normal(k_pos, (num_graphs, num_nodes, 3), jnp.float32)
    z = jax.random.randint(k_z, (num_graphs, num_nodes), 0, num_node_types)

    # Glue: embedding lookup + concat in plain JAX; hot path runs in the kernel.
    x = jnp.concatenate([pos, jnp.take(emb_table, z, axis=0)], axis=-1)

    out = egnn_pointnet_forward(x, params)
    out = jax.block_until_ready(out)
    assert out.shape == (num_graphs, output_dim)
    assert bool(jnp.all(jnp.isfinite(out)))
    print("KERNEL_OK")
</pallas_src>

<mosaic_0001>
module attributes {stable_mosaic.version = 11 : i64} {
  func.func @_egnn_kernel(%arg0: i32, %arg1: memref<8x16x8xbf16, #tpu.memory_space<vmem>>, %arg2: memref<8x32xbf16, #tpu.memory_space<vmem>>, %arg3: memref<8x32xbf16, #tpu.memory_space<vmem>>, %arg4: memref<8x32xbf16, #tpu.memory_space<vmem>>, %arg5: memref<32x32xbf16, #tpu.memory_space<vmem>>, %arg6: memref<32x32xbf16, #tpu.memory_space<vmem>>, %arg7: memref<32x32xbf16, #tpu.memory_space<vmem>>, %arg8: memref<32x32xbf16, #tpu.memory_space<vmem>>, %arg9: memref<1x32xf32, #tpu.memory_space<vmem>>, %arg10: memref<32x128xbf16, #tpu.memory_space<vmem>>, %arg11: memref<1x128xf32, #tpu.memory_space<vmem>>, %arg12: memref<1x8x128xf32, #tpu.memory_space<vmem>>) attributes {dimension_semantics = [#tpu.dimension_semantics<parallel>], iteration_bounds = array<i64: 1>, scalar_prefetch = 0 : i64, scratch_operands = 0 : i64, tpu.core_type = #tpu.core_type<tc>, window_params = [{transform_indices = @transform_0, window_bounds = array<i64: 8, 16, 8>}, {pipeline_mode = #tpu.pipeline_mode<synchronous>, transform_indices = @transform_1, window_bounds = array<i64: 8, 32>}, {pipeline_mode = #tpu.pipeline_mode<synchronous>, transform_indices = @transform_2, window_bounds = array<i64: 8, 32>}, {pipeline_mode = #tpu.pipeline_mode<synchronous>, transform_indices = @transform_3, window_bounds = array<i64: 8, 32>}, {pipeline_mode = #tpu.pipeline_mode<synchronous>, transform_indices = @transform_4, window_bounds = array<i64: 32, 32>}, {pipeline_mode = #tpu.pipeline_mode<synchronous>, transform_indices = @transform_5, window_bounds = array<i64: 32, 32>}, {pipeline_mode = #tpu.pipeline_mode<synchronous>, transform_indices = @transform_6, window_bounds = array<i64: 32, 32>}, {pipeline_mode = #tpu.pipeline_mode<synchronous>, transform_indices = @transform_7, window_bounds = array<i64: 32, 32>}, {pipeline_mode = #tpu.pipeline_mode<synchronous>, transform_indices = @transform_8, window_bounds = array<i64: 1, 32>}, {pipeline_mode = #tpu.pipeline_mode<synchronous>, transform_indices = @transform_9, window_bounds = array<i64: 32, 128>}, {pipeline_mode = #tpu.pipeline_mode<synchronous>, transform_indices = @transform_10, window_bounds = array<i64: 1, 128>}, {transform_indices = @transform_11, window_bounds = array<i64: 1, 8, 128>}]} {
    %c0 = arith.constant 0 : index
    %c0_0 = arith.constant 0 : index
    %c0_1 = arith.constant 0 : index
    %0 = vector.load %arg1[%c0, %c0_0, %c0_1] : memref<8x16x8xbf16, #tpu.memory_space<vmem>>, vector<8x16x8xbf16>
    %1 = vector.shape_cast %0 : vector<8x16x8xbf16> to vector<128x8xbf16>
    %c0_2 = arith.constant 0 : index
    %c0_3 = arith.constant 0 : index
    %2 = vector.load %arg2[%c0_2, %c0_3] : memref<8x32xbf16, #tpu.memory_space<vmem>>, vector<8x32xbf16>
    %cst = arith.constant dense<0.000000e+00> : vector<128x32xf32>
    %3 = tpu.matmul %1, %2, %cst {dimension_numbers = #tpu.dot_dimension_numbers<[1], [0], [0], [1], [0, 0, 1, 1], [], []>} : vector<128x8xbf16>, vector<8x32xbf16>, vector<128x32xf32> -> vector<128x32xf32>
    %4 = vector.shape_cast %3 : vector<128x32xf32> to vector<8x16x32xf32>
    %c0_4 = arith.constant 0 : index
    %c0_5 = arith.constant 0 : index
    %5 = vector.load %arg3[%c0_4, %c0_5] : memref<8x32xbf16, #tpu.memory_space<vmem>>, vector<8x32xbf16>
    %cst_6 = arith.constant dense<0.000000e+00> : vector<128x32xf32>
    %6 = tpu.matmul %1, %5, %cst_6 {dimension_numbers = #tpu.dot_dimension_numbers<[1], [0], [0], [1], [0, 0, 1, 1], [], []>} : vector<128x8xbf16>, vector<8x32xbf16>, vector<128x32xf32> -> vector<128x32xf32>
    %7 = vector.shape_cast %6 : vector<128x32xf32> to vector<8x16x32xf32>
    %c0_7 = arith.constant 0 : index
    %c0_8 = arith.constant 0 : index
    %8 = vector.load %arg4[%c0_7, %c0_8] : memref<8x32xbf16, #tpu.memory_space<vmem>>, vector<8x32xbf16>
    %cst_9 = arith.constant dense<0.000000e+00> : vector<128x32xf32>
    %9 = tpu.matmul %1, %8, %cst_9 {dimension_numbers = #tpu.dot_dimension_numbers<[1], [0], [0], [1], [0, 0, 1, 1], [], []>} : vector<128x8xbf16>, vector<8x32xbf16>, vector<128x32xf32> -> vector<128x32xf32>
    %10 = vector.shape_cast %9 : vector<128x32xf32> to vector<8x16x32xf32>
    %cst_10 = arith.constant 3.200000e+01 : f32
    %11 = math.sqrt %cst_10 : f32
    %cst_11 = arith.constant 1.000000e+00 : f32
    %12 = arith.divf %cst_11, %11 : f32
    %13 = arith.truncf %4 : vector<8x16x32xf32> to vector<8x16x32xbf16>
    %14 = arith.truncf %7 : vector<8x16x32xf32> to vector<8x16x32xbf16>
    "tpu.trace_start"() <{level = 10 : i32, message = "gnd,gmd->gnm"}> : () -> ()
    %cst_12 = arith.constant dense<0.000000e+00> : vector<8x16x16xf32>
    %15 = tpu.matmul %13, %14, %cst_12 {dimension_numbers = #tpu.dot_dimension_numbers<[2], [2], [1], [1], [0, 0, 0, 1, 1, 1], [0], [0]>} : vector<8x16x32xbf16>, vector<8x16x32xbf16>, vector<8x16x16xf32> -> vector<8x16x16xf32>
    "tpu.trace_stop"() : () -> ()
    %16 = vector.broadcast %12 : f32 to vector<8x16x16xf32>
    %17 = arith.mulf %15, %16 : vector<8x16x16xf32>
    %cst_13 = arith.constant dense<0xFF800000> : vector<8x16xf32>
    %18 = vector.multi_reduction <maximumf>, %17, %cst_13 [2] : vector<8x16x16xf32> to vector<8x16xf32>
    %19 = vector.shape_cast %18 : vector<8x16xf32> to vector<8x16x1xf32>
    %20 = vector.broadcast %19 : vector<8x16x1xf32> to vector<8x16x16xf32>
    %21 = arith.subf %17, %20 : vector<8x16x16xf32>
    %22 = math.exp %21 : vector<8x16x16xf32>
    %cst_14 = arith.constant dense<0.000000e+00> : vector<8x16xf32>
    %23 = vector.multi_reduction <add>, %22, %cst_14 [2] : vector<8x16x16xf32> to vector<8x16xf32>
    %24 = vector.shape_cast %23 : vector<8x16xf32> to vector<8x16x1xf32>
    %25 = tpu.reciprocal %24 {approx = true} : vector<8x16x1xf32> -> vector<8x16x1xf32>
    %26 = vector.broadcast %25 : vector<8x16x1xf32> to vector<8x16x16xf32>
    %27 = arith.mulf %22, %26 : vector<8x16x16xf32>
    %28 = arith.truncf %27 : vector<8x16x16xf32> to vector<8x16x16xbf16>
    %29 = arith.truncf %10 : vector<8x16x32xf32> to vector<8x16x32xbf16>
    "tpu.trace_start"() <{level = 10 : i32, message = "gnm,gmd->gnd"}> : () -> ()
    %cst_15 = arith.constant dense<0.000000e+00> : vector<8x16x32xf32>
    %30 = tpu.matmul %28, %29, %cst_15 {dimension_numbers = #tpu.dot_dimension_numbers<[2], [1], [1], [2], [0, 0, 0, 1, 1, 2], [0], [0]>} : vector<8x16x16xbf16>, vector<8x16x32xbf16>, vector<8x16x32xf32> -> vector<8x16x32xf32>
    "tpu.trace_stop"() : () -> ()
    %cst_16 = arith.constant 0.000000e+00 : f32
    %31 = vector.broadcast %cst_16 : f32 to vector<8x16x32xf32>
    %32 = arith.maximumf %30, %31 : vector<8x16x32xf32>
    %33 = arith.truncf %32 : vector<8x16x32xf32> to vector<8x16x32xbf16>
    %34 = vector.shape_cast %33 : vector<8x16x32xbf16> to vector<128x32xbf16>
    %c0_17 = arith.constant 0 : index
    %c0_18 = arith.constant 0 : index
    %35 = vector.load %arg5[%c0_17, %c0_18] : memref<32x32xbf16, #tpu.memory_space<vmem>>, vector<32x32xbf16>
    %cst_19 = arith.constant dense<0.000000e+00> : vector<128x32xf32>
    %36 = tpu.matmul %34, %35, %cst_19 {dimension_numbers = #tpu.dot_dimension_numbers<[1], [0], [0], [1], [0, 0, 1, 1], [], []>} : vector<128x32xbf16>, vector<32x32xbf16>, vector<128x32xf32> -> vector<128x32xf32>
    %37 = vector.shape_cast %36 : vector<128x32xf32> to vector<8x16x32xf32>
    %c0_20 = arith.constant 0 : index
    %c0_21 = arith.constant 0 : index
    %38 = vector.load %arg6[%c0_20, %c0_21] : memref<32x32xbf16, #tpu.memory_space<vmem>>, vector<32x32xbf16>
    %cst_22 = arith.constant dense<0.000000e+00> : vector<128x32xf32>
    %39 = tpu.matmul %34, %38, %cst_22 {dimension_numbers = #tpu.dot_dimension_numbers<[1], [0], [0], [1], [0, 0, 1, 1], [], []>} : vector<128x32xbf16>, vector<32x32xbf16>, vector<128x32xf32> -> vector<128x32xf32>
    %40 = vector.shape_cast %39 : vector<128x32xf32> to vector<8x16x32xf32>
    %c0_23 = arith.constant 0 : index
    %c0_24 = arith.constant 0 : index
    %41 = vector.load %arg7[%c0_23, %c0_24] : memref<32x32xbf16, #tpu.memory_space<vmem>>, vector<32x32xbf16>
    %cst_25 = arith.constant dense<0.000000e+00> : vector<128x32xf32>
    %42 = tpu.matmul %34, %41, %cst_25 {dimension_numbers = #tpu.dot_dimension_numbers<[1], [0], [0], [1], [0, 0, 1, 1], [], []>} : vector<128x32xbf16>, vector<32x32xbf16>, vector<128x32xf32> -> vector<128x32xf32>
    %43 = vector.shape_cast %42 : vector<128x32xf32> to vector<8x16x32xf32>
    %cst_26 = arith.constant 3.200000e+01 : f32
    %44 = math.sqrt %cst_26 : f32
    %cst_27 = arith.constant 1.000000e+00 : f32
    %45 = arith.divf %cst_27, %44 : f32
    %46 = arith.truncf %37 : vector<8x16x32xf32> to vector<8x16x32xbf16>
    %47 = arith.truncf %40 : vector<8x16x32xf32> to vector<8x16x32xbf16>
    "tpu.trace_start"() <{level = 10 : i32, message = "gnd,gmd->gnm"}> : () -> ()
    %cst_28 = arith.constant dense<0.000000e+00> : vector<8x16x16xf32>
    %48 = tpu.matmul %46, %47, %cst_28 {dimension_numbers = #tpu.dot_dimension_numbers<[2], [2], [1], [1], [0, 0, 0, 1, 1, 1], [0], [0]>} : vector<8x16x32xbf16>, vector<8x16x32xbf16>, vector<8x16x16xf32> -> vector<8x16x16xf32>
    "tpu.trace_stop"() : () -> ()
    %49 = vector.broadcast %45 : f32 to vector<8x16x16xf32>
    %50 = arith.mulf %48, %49 : vector<8x16x16xf32>
    %cst_29 = arith.constant dense<0xFF800000> : vector<8x16xf32>
    %51 = vector.multi_reduction <maximumf>, %50, %cst_29 [2] : vector<8x16x16xf32> to vector<8x16xf32>
    %52 = vector.shape_cast %51 : vector<8x16xf32> to vector<8x16x1xf32>
    %53 = vector.broadcast %52 : vector<8x16x1xf32> to vector<8x16x16xf32>
    %54 = arith.subf %50, %53 : vector<8x16x16xf32>
    %55 = math.exp %54 : vector<8x16x16xf32>
    %cst_30 = arith.constant dense<0.000000e+00> : vector<8x16xf32>
    %56 = vector.multi_reduction <add>, %55, %cst_30 [2] : vector<8x16x16xf32> to vector<8x16xf32>
    %57 = vector.shape_cast %56 : vector<8x16xf32> to vector<8x16x1xf32>
    %58 = tpu.reciprocal %57 {approx = true} : vector<8x16x1xf32> -> vector<8x16x1xf32>
    %59 = vector.broadcast %58 : vector<8x16x1xf32> to vector<8x16x16xf32>
    %60 = arith.mulf %55, %59 : vector<8x16x16xf32>
    %61 = arith.truncf %60 : vector<8x16x16xf32> to vector<8x16x16xbf16>
    %62 = arith.truncf %43 : vector<8x16x32xf32> to vector<8x16x32xbf16>
    "tpu.trace_start"() <{level = 10 : i32, message = "gnm,gmd->gnd"}> : () -> ()
    %cst_31 = arith.constant dense<0.000000e+00> : vector<8x16x32xf32>
    %63 = tpu.matmul %61, %62, %cst_31 {dimension_numbers = #tpu.dot_dimension_numbers<[2], [1], [1], [2], [0, 0, 0, 1, 1, 2], [0], [0]>} : vector<8x16x16xbf16>, vector<8x16x32xbf16>, vector<8x16x32xf32> -> vector<8x16x32xf32>
    "tpu.trace_stop"() : () -> ()
    %cst_32 = arith.constant 0.000000e+00 : f32
    %64 = vector.broadcast %cst_32 : f32 to vector<8x16x32xf32>
    %65 = arith.maximumf %63, %64 : vector<8x16x32xf32>
    %66 = vector.shape_cast %65 : vector<8x16x32xf32> to vector<128x32xf32>
    %67 = arith.truncf %66 : vector<128x32xf32> to vector<128x32xbf16>
    %c0_33 = arith.constant 0 : index
    %c0_34 = arith.constant 0 : index
    %68 = vector.load %arg8[%c0_33, %c0_34] : memref<32x32xbf16, #tpu.memory_space<vmem>>, vector<32x32xbf16>
    %cst_35 = arith.constant dense<0.000000e+00> : vector<128x32xf32>
    %69 = tpu.matmul %67, %68, %cst_35 {dimension_numbers = #tpu.dot_dimension_numbers<[1], [0], [0], [1], [0, 0, 1, 1], [], []>} : vector<128x32xbf16>, vector<32x32xbf16>, vector<128x32xf32> -> vector<128x32xf32>
    %c0_36 = arith.constant 0 : index
    %c0_37 = arith.constant 0 : index
    %70 = vector.load %arg9[%c0_36, %c0_37] : memref<1x32xf32, #tpu.memory_space<vmem>>, vector<1x32xf32>
    %71 = vector.broadcast %70 : vector<1x32xf32> to vector<128x32xf32>
    %72 = arith.addf %69, %71 : vector<128x32xf32>
    %cst_38 = arith.constant 0.000000e+00 : f32
    %73 = vector.broadcast %cst_38 : f32 to vector<128x32xf32>
    %74 = arith.maximumf %72, %73 : vector<128x32xf32>
    %75 = arith.truncf %74 : vector<128x32xf32> to vector<128x32xbf16>
    %c0_39 = arith.constant 0 : index
    %c0_40 = arith.constant 0 : index
    %76 = vector.load %arg10[%c0_39, %c0_40] : memref<32x128xbf16, #tpu.memory_space<vmem>>, vector<32x128xbf16>
    %cst_41 = arith.constant dense<0.000000e+00> : vector<128x128xf32>
    %77 = tpu.matmul %75, %76, %cst_41 {dimension_numbers = #tpu.dot_dimension_numbers<[1], [0], [0], [1], [0, 0, 1, 1], [], []>} : vector<128x32xbf16>, vector<32x128xbf16>, vector<128x128xf32> -> vector<128x128xf32>
    %c0_42 = arith.constant 0 : index
    %c0_43 = arith.constant 0 : index
    %78 = vector.load %arg11[%c0_42, %c0_43] : memref<1x128xf32, #tpu.memory_space<vmem>>, vector<1x128xf32>
    %79 = vector.broadcast %78 : vector<1x128xf32> to vector<128x128xf32>
    %80 = arith.addf %77, %79 : vector<128x128xf32>
    %81 = vector.shape_cast %80 : vector<128x128xf32> to vector<8x16x128xf32>
    %cst_44 = arith.constant dense<0xFF800000> : vector<8x128xf32>
    %82 = vector.multi_reduction <maximumf>, %81, %cst_44 [1] : vector<8x16x128xf32> to vector<8x128xf32>
    %83 = vector.shape_cast %82 : vector<8x128xf32> to vector<1x8x128xf32>
    %c0_45 = arith.constant 0 : index
    %c0_46 = arith.constant 0 : index
    %c0_47 = arith.constant 0 : index
    %84 = vector.load %arg12[%c0_45, %c0_46, %c0_47] : memref<1x8x128xf32, #tpu.memory_space<vmem>>, vector<1x8x128xf32>
    tpu.vector_store %arg12[%c0_45, %c0_46, %c0_47], %83 {strides = array<i32>} : memref<1x8x128xf32, #tpu.memory_space<vmem>>, vector<1x8x128xf32>,
    return
  }
  func.func @transform_0(%arg0: i32) -> (i32, i32, i32) {
    %c0_i32 = arith.constant 0 : i32
    %c0_i32_0 = arith.constant 0 : i32
    %c0_i32_1 = arith.constant 0 : i32
    return %arg0, %c0_i32, %c0_i32_0 : i32, i32, i32
  }
  func.func @transform_1(%arg0: i32) -> (i32, i32) {
    %c0_i32 = arith.constant 0 : i32
    %c0_i32_0 = arith.constant 0 : i32
    %c0_i32_1 = arith.constant 0 : i32
    return %c0_i32, %c0_i32_0 : i32, i32
  }
  func.func @transform_2(%arg0: i32) -> (i32, i32) {
    %c0_i32 = arith.constant 0 : i32
    %c0_i32_0 = arith.constant 0 : i32
    %c0_i32_1 = arith.constant 0 : i32
    return %c0_i32, %c0_i32_0 : i32, i32
  }
  func.func @transform_3(%arg0: i32) -> (i32, i32) {
    %c0_i32 = arith.constant 0 : i32
    %c0_i32_0 = arith.constant 0 : i32
    %c0_i32_1 = arith.constant 0 : i32
    return %c0_i32, %c0_i32_0 : i32, i32
  }
  func.func @transform_4(%arg0: i32) -> (i32, i32) {
    %c0_i32 = arith.constant 0 : i32
    %c0_i32_0 = arith.constant 0 : i32
    %c0_i32_1 = arith.constant 0 : i32
    return %c0_i32, %c0_i32_0 : i32, i32
  }
  func.func @transform_5(%arg0: i32) -> (i32, i32) {
    %c0_i32 = arith.constant 0 : i32
    %c0_i32_0 = arith.constant 0 : i32
    %c0_i32_1 = arith.constant 0 : i32
    return %c0_i32, %c0_i32_0 : i32, i32
  }
  func.func @transform_6(%arg0: i32) -> (i32, i32) {
    %c0_i32 = arith.constant 0 : i32
    %c0_i32_0 = arith.constant 0 : i32
    %c0_i32_1 = arith.constant 0 : i32
    return %c0_i32, %c0_i32_0 : i32, i32
  }
  func.func @transform_7(%arg0: i32) -> (i32, i32) {
    %c0_i32 = arith.constant 0 : i32
    %c0_i32_0 = arith.constant 0 : i32
    %c0_i32_1 = arith.constant 0 : i32
    return %c0_i32, %c0_i32_0 : i32, i32
  }
  func.func @transform_8(%arg0: i32) -> (i32, i32) {
    %c0_i32 = arith.constant 0 : i32
    %c0_i32_0 = arith.constant 0 : i32
    %c0_i32_1 = arith.constant 0 : i32
    return %c0_i32, %c0_i32_0 : i32, i32
  }
  func.func @transform_9(%arg0: i32) -> (i32, i32) {
    %c0_i32 = arith.constant 0 : i32
    %c0_i32_0 = arith.constant 0 : i32
    %c0_i32_1 = arith.constant 0 : i32
    return %c0_i32, %c0_i32_0 : i32, i32
  }
  func.func @transform_10(%arg0: i32) -> (i32, i32) {
    %c0_i32 = arith.constant 0 : i32
    %c0_i32_0 = arith.constant 0 : i32
    %c0_i32_1 = arith.constant 0 : i32
    return %c0_i32, %c0_i32_0 : i32, i32
  }
  func.func @transform_11(%arg0: i32) -> (i32, i32, i32) {
    %c0_i32 = arith.constant 0 : i32
    %c0_i32_0 = arith.constant 0 : i32
    %c0_i32_1 = arith.constant 0 : i32
    return %arg0, %c0_i32, %c0_i32_0 : i32, i32, i32
  }
}

</mosaic_0001>

<llo_original>
// kernel: tpu_custom_call.1
$region0: #{tpu_custom_call.1}
  #allocation0 [shape = 'u32[]', space=smem, size = 0x4, offset = 0x4, fixed_abs, tag = 'smem constant byte address 0x4 - core index']
  #allocation1 [shape = 'u32[144,128]{1,0:T(1,128)}', space=vmem, size = 0x12000, scoped, tag = 'internal scratch']
  %s0 = inlined_call_operand.vmem [shape: bf16[8,16,8], index: 0, kind: input, shape index: {}]
  %s1 = inlined_call_operand.vmem [shape: bf16[8,32], index: 1, kind: input, shape index: {}]
  %s2 = inlined_call_operand.vmem [shape: bf16[8,32], index: 2, kind: input, shape index: {}]
  %s3 = inlined_call_operand.vmem [shape: bf16[8,32], index: 3, kind: input, shape index: {}]
  %s4 = inlined_call_operand.vmem [shape: bf16[32,32], index: 4, kind: input, shape index: {}]
  %s5 = inlined_call_operand.vmem [shape: bf16[32,32], index: 5, kind: input, shape index: {}]
  %s6 = inlined_call_operand.vmem [shape: bf16[32,32], index: 6, kind: input, shape index: {}]
  %s7 = inlined_call_operand.vmem [shape: bf16[32,32], index: 7, kind: input, shape index: {}]
  %s8 = inlined_call_operand.vmem [shape: f32[1,32], index: 8, kind: input, shape index: {}]
  %s9 = inlined_call_operand.vmem [shape: bf16[32,128], index: 9, kind: input, shape index: {}]
  %s10 = inlined_call_operand.vmem [shape: f32[1,128], index: 10, kind: input, shape index: {}]
  %s11 = inlined_call_operand.hbm [shape: f32[1,8,128], index: 11, kind: output, shape index: {}]
  %s12 = sld [smem:[#allocation0]]
  $region54: #{tpu_custom_call.1} parent=0
    _
  %s14 = ssub.s32 1, %s12
  %s15 = scalar_select 0, %s14, %s12
  $region1: #{tpu_custom_call.1} parent=0
    #allocation2 [shape = 'u8[4096]{0}', space=vmem, size = 0x1000, scoped, tag = 'output window, operand 0, single buffered']
    #allocation3 [shape = 's32[1]{0}', space=sflag, size = 0x4, scoped, tag = 'scoped memory for tpu_custom_call.1']
    %16 = vsyncpa [#allocation3], 0
    // Predicated region
    $region2: #{tpu_custom_call.1} parent=1 // pred_check
      _
    $region3: #{tpu_custom_call.1} parent=1 // pred_check_branch
      %18 = sbr.rel (0) target = $region5
    $region4: #{tpu_custom_call.1} parent=1 // pred_region
      _
    $region5: #{tpu_custom_call.1} parent=1 // pred_fallthru
      _
    // Predicated region
    $region6: #{tpu_custom_call.1} parent=1 // pred_check
      _
    $region7: #{tpu_custom_call.1} parent=1 // pred_check_branch
      %20 = sbr.rel (0) target = $region9
    $region8: #{tpu_custom_call.1} parent=1 // pred_region
      _
    $region9: #{tpu_custom_call.1} parent=1 // pred_fallthru
      _
    // Predicated region
    $region10: #{tpu_custom_call.1} parent=1 // pred_check
      _
    $region11: #{tpu_custom_call.1} parent=1 // pred_check_branch
      %22 = sbr.rel (0) target = $region13
    $region12: #{tpu_custom_call.1} parent=1 // pred_region
      _
    $region13: #{tpu_custom_call.1} parent=1 // pred_fallthru
      _
    // Predicated region
    $region14: #{tpu_custom_call.1} parent=1 // pred_check
      _
    $region15: #{tpu_custom_call.1} parent=1 // pred_check_branch
      %24 = sbr.rel (0) target = $region17
    $region16: #{tpu_custom_call.1} parent=1 // pred_region
      _
    $region17: #{tpu_custom_call.1} parent=1 // pred_fallthru
      _
    // Predicated region
    $region18: #{tpu_custom_call.1} parent=1 // pred_check
      _
    $region19: #{tpu_custom_call.1} parent=1 // pred_check_branch
      %26 = sbr.rel (0) target = $region21
    $region20: #{tpu_custom_call.1} parent=1 // pred_region
      _
    $region21: #{tpu_custom_call.1} parent=1 // pred_fallthru
      _
    // Predicated region
    $region22: #{tpu_custom_call.1} parent=1 // pred_check
      _
    $region23: #{tpu_custom_call.1} parent=1 // pred_check_branch
      %28 = sbr.rel (0) target = $region25
    $region24: #{tpu_custom_call.1} parent=1 // pred_region
      _
    $region25: #{tpu_custom_call.1} parent=1 // pred_fallthru
      _
    // Predicated region
    $region26: #{tpu_custom_call.1} parent=1 // pred_check
      _
    $region27: #{tpu_custom_call.1} parent=1 // pred_check_branch
      %30 = sbr.rel (0) target = $region29
    $region28: #{tpu_custom_call.1} parent=1 // pred_region
      _
    $region29: #{tpu_custom_call.1} parent=1 // pred_fallthru
      _
    // Predicated region
    $region30: #{tpu_custom_call.1} parent=1 // pred_check
      _
    $region31: #{tpu_custom_call.1} parent=1 // pred_check_branch
      %32 = sbr.rel (0) target = $region33
    $region32: #{tpu_custom_call.1} parent=1 // pred_region
      _
    $region33: #{tpu_custom_call.1} parent=1 // pred_fallthru
      _
    // Predicated region
    $region34: #{tpu_custom_call.1} parent=1 // pred_check
      _
    $region35: #{tpu_custom_call.1} parent=1 // pred_check_branch
      %34 = sbr.rel (0) target = $region37
    $region36: #{tpu_custom_call.1} parent=1 // pred_region
      _
    $region37: #{tpu_custom_call.1} parent=1 // pred_fallthru
      _
    // Predicated region
    $region38: #{tpu_custom_call.1} parent=1 // pred_check
      _
    $region39: #{tpu_custom_call.1} parent=1 // pred_check_branch
      %36 = sbr.rel (0) target = $region41
    $region40: #{tpu_custom_call.1} parent=1 // pred_region
      _
    $region41: #{tpu_custom_call.1} parent=1 // pred_fallthru
      _
    // Predicated region
    $region42: #{tpu_custom_call.1} parent=1 // pred_check
      _
    $region43: #{tpu_custom_call.1} parent=1 // pred_check_branch
      %38 = sbr.rel (0) target = $region45
    $region44: #{tpu_custom_call.1} parent=1 // pred_region
      _
    $region45: #{tpu_custom_call.1} parent=1 // pred_fallthru
      _
    %v40 = vld [vmem:[%s0] sm:$0xf]
    %v41 = vld [vmem:[%s0 + $0x4] sm:$0xf]
    %v42 = vld [vmem:[%s0 + $0x8] sm:$0xf]
    %v43 = vld [vmem:[%s0 + $0xc] sm:$0xf]
    %v44 = vld [vmem:[%s0 + $0x10] sm:$0xf]
    %v45 = vld [vmem:[%s0 + $0x14] sm:$0xf]
    %v46 = vld [vmem:[%s0 + $0x18] sm:$0xf]
    %v47 = vld [vmem:[%s0 + $0x1c] sm:$0xf]
    %v48 = vld [vmem:[%s0 + $0x20] sm:$0xf]
    %v49 = vld [vmem:[%s0 + $0x24] sm:$0xf]
    %v50 = vld [vmem:[%s0 + $0x28] sm:$0xf]
    %v51 = vld [vmem:[%s0 + $0x2c] sm:$0xf]
    %v52 = vld [vmem:[%s0 + $0x30] sm:$0xf]
    %v53 = vld [vmem:[%s0 + $0x34] sm:$0xf]
    %v54 = vld [vmem:[%s0 + $0x38] sm:$0xf]
    %v55 = vld [vmem:[%s0 + $0x3c] sm:$0xf]
    %v56 = vld [vmem:[%s1] sm:$0xf]
    %v73 = vunpack.c.l.b16 %v40
    %v74 = vunpack.c.l.b16 %v41
    %v75 = vunpack.c.l.b16 %v42
    %v76 = vunpack.c.l.b16 %v43
    %v77 = vunpack.c.l.b16 %v44
    %v78 = vunpack.c.l.b16 %v45
    %v79 = vunpack.c.l.b16 %v46
    %v80 = vunpack.c.l.b16 %v47
    %v81 = vunpack.c.l.b16 %v48
    %v82 = vunpack.c.l.b16 %v49
    %v83 = vunpack.c.l.b16 %v50
    %v84 = vunpack.c.l.b16 %v51
    %v85 = vunpack.c.l.b16 %v52
    %v86 = vunpack.c.l.b16 %v53
    %v87 = vunpack.c.l.b16 %v54
    %v88 = vunpack.c.l.b16 %v55
    %v89 = vpack.c.b16 %v74, %v73
    %v90 = vpack.c.b16 %v76, %v75
    %v91 = vpack.c.b16 %v78, %v77
    %v92 = vpack.c.b16 %v80, %v79
    %v93 = vpack.c.b16 %v82, %v81
    %v94 = vpack.c.b16 %v84, %v83
    %v95 = vpack.c.b16 %v86, %v85
    %v96 = vpack.c.b16 %v88, %v87
    %vm97 = vcmask 64512
    %v99 = vsel %vm97, %v89, 0
    %v102 = vsel %vm97, %v90, 0
    %v105 = vsel %vm97, %v91, 0
    %v108 = vsel %vm97, %v92, 0
    %v111 = vsel %vm97, %v93, 0
    %v114 = vsel %vm97, %v94, 0
    %v117 = vsel %vm97, %v95, 0
    %v120 = vsel %vm97, %v96, 0
    %vm122 = vcmask 1043456
    %v124 = vsel %vm122, %v56, 0
    %126 = vmatprep.subr.bf16.mxu0 0
    %127 = vmatpush1.bf16.msra.mxu0 %v124
    %128 = vmatprep.subr.bf16.mxu0 0
    %129 = vmatpush1.bf16.msra.mxu0 0
    %130 = vmatprep.subr.bf16.mxu0 0
    %131 = vmatpush1.bf16.msra.mxu0 0
    %132 = vmatprep.subr.bf16.mxu0 0
    %133 = vmatpush1.bf16.msra.mxu0 0
    %134 = vmatprep.subr.bf16.mxu0 0
    %135 = vmatpush1.bf16.msra.mxu0 0
    %136 = vmatprep.subr.bf16.mxu0 0
    %137 = vmatpush1.bf16.msra.mxu0 0
    %138 = vmatprep.subr.bf16.mxu0 0
    %139 = vmatpush1.bf16.msra.mxu0 0
    %140 = vmatprep.subr.bf16.mxu0 0
    %141 = vmatpush1.bf16.msra.mxu0 0
    %142 = vmatprep.subr.bf16.mxu0 0
    %143 = vmatpush1.bf16.msra.mxu0 0
    %144 = vmatprep.subr.bf16.mxu0 0
    %145 = vmatpush1.bf16.msra.mxu0 0
    %146 = vmatprep.subr.bf16.mxu0 0
    %147 = vmatpush1.bf16.msra.mxu0 0
    %148 = vmatprep.subr.bf16.mxu0 0
    %149 = vmatpush1.bf16.msra.mxu0 0
    %150 = vmatprep.subr.bf16.mxu0 0
    %151 = vmatpush1.bf16.msra.mxu0 0
    %152 = vmatprep.subr.bf16.mxu0 0
    %153 = vmatpush1.bf16.msra.mxu0 0
    %154 = vmatprep.subr.bf16.mxu0 0
    %155 = vmatpush1.bf16.msra.mxu0 0
    %156 = vmatprep.subr.bf16.mxu0 0
    %157 = vmatpush1.bf16.msra.mxu0 0
    %158 = vmatprep.mubr.bf16.mxu0 0
    %159 = vmatmul.mubr.bf16.gmra.mrb[0].mxu0 %v99
    %v160 = vpop.f32.mrb[0].mxu0
    %v161 = vadd.f32 0.0, %v160
    %v162 = vpop.f32.mrb[0].mxu0
    %v163 = vpop.f32.mrb[0].mxu0
    %v164 = vadd.f32 0.0, %v163
    %v165 = vpop.f32.mrb[0].mxu0
    %166 = vmatprep.mubr.bf16.mxu0 0
    %167 = vmatmul.mubr.bf16.gmra.mrb[0].mxu0 %v102
    %v168 = vpop.f32.mrb[0].mxu0
    %v169 = vadd.f32 0.0, %v168
    %v170 = vpop.f32.mrb[0].mxu0
    %v171 = vpop.f32.mrb[0].mxu0
    %v172 = vadd.f32 0.0, %v171
    %v173 = vpop.f32.mrb[0].mxu0
    %174 = vmatprep.mubr.bf16.mxu0 0
    %175 = vmatmul.mubr.bf16.gmra.mrb[0].mxu0 %v105
    %v176 = vpop.f32.mrb[0].mxu0
    %v177 = vadd.f32 0.0, %v176
    %v178 = vpop.f32.mrb[0].mxu0
    %v179 = vpop.f32.mrb[0].mxu0
    %v180 = vadd.f32 0.0, %v179
    %v181 = vpop.f32.mrb[0].mxu0
    %182 = vmatprep.mubr.bf16.mxu0 0
    %183 = vmatmul.mubr.bf16.gmra.mrb[0].mxu0 %v108
    %v184 = vpop.f32.mrb[0].mxu0
    %v185 = vadd.f32 0.0, %v184
    %v186 = vpop.f32.mrb[0].mxu0
    %v187 = vpop.f32.mrb[0].mxu0
    %v188 = vadd.f32 0.0, %v187
    %v189 = vpop.f32.mrb[0].mxu0
    %190 = vmatprep.mubr.bf16.mxu0 0
    %191 = vmatmul.mubr.bf16.gmra.mrb[0].mxu0 %v111
    %v192 = vpop.f32.mrb[0].mxu0
    %v193 = vadd.f32 0.0, %v192
    %v194 = vpop.f32.mrb[0].mxu0
    %v195 = vpop.f32.mrb[0].mxu0
    %v196 = vadd.f32 0.0, %v195
    %v197 = vpop.f32.mrb[0].mxu0
    %198 = vmatprep.mubr.bf16.mxu0 0
    %199 = vmatmul.mubr.bf16.gmra.mrb[0].mxu0 %v114
    %v200 = vpop.f32.mrb[0].mxu0
    %v201 = vadd.f32 0.0, %v200
    %v202 = vpop.f32.mrb[0].mxu0
    %v203 = vpop.f32.mrb[0].mxu0
    %v204 = vadd.f32 0.0, %v203
    %v205 = vpop.f32.mrb[0].mxu0
    %206 = vmatprep.mubr.bf16.mxu0 0
    %207 = vmatmul.mubr.bf16.gmra.mrb[0].mxu0 %v117
    %v208 = vpop.f32.mrb[0].mxu0
    %v209 = vadd.f32 0.0, %v208
    %v210 = vpop.f32.mrb[0].mxu0
    %v211 = vpop.f32.mrb[0].mxu0
    %v212 = vadd.f32 0.0, %v211
    %v213 = vpop.f32.mrb[0].mxu0
    %214 = vmatprep.mubr.bf16.mxu0 0
    %215 = vmatmul.mubr.bf16.gmra.mrb[0].mxu0 %v120
    %v216 = vpop.f32.mrb[0].mxu0
    %v217 = vadd.f32 0.0, %v216
    %v218 = vpop.f32.mrb[0].mxu0
    %v219 = vpop.f32.mrb[0].mxu0
    %v220 = vadd.f32 0.0, %v219
    %v221 = vpop.f32.mrb[0].mxu0
    %222 = vdwg.mxu0
    %v223 = vld [vmem:[%s2] sm:$0xf]
    %v225 = vsel %vm122, %v223, 0
    %227 = vmatprep.subr.bf16.mxu0 0
    %228 = vmatpush1.bf16.msra.mxu0 %v225
    %229 = vmatprep.subr.bf16.mxu0 0
    %230 = vmatpush1.bf16.msra.mxu0 0
    %231 = vmatprep.subr.bf16.mxu0 0
    %232 = vmatpush1.bf16.msra.mxu0 0
    %233 = vmatprep.subr.bf16.mxu0 0
    %234 = vmatpush1.bf16.msra.mxu0 0
    %235 = vmatprep.subr.bf16.mxu0 0
    %236 = vmatpush1.bf16.msra.mxu0 0
    %237 = vmatprep.subr.bf16.mxu0 0
    %238 = vmatpush1.bf16.msra.mxu0 0
    %239 = vmatprep.subr.bf16.mxu0 0
    %240 = vmatpush1.bf16.msra.mxu0 0
    %241 = vmatprep.subr.bf16.mxu0 0
    %242 = vmatpush1.bf16.msra.mxu0 0
    %243 = vmatprep.subr.bf16.mxu0 0
    %244 = vmatpush1.bf16.msra.mxu0 0
    %245 = vmatprep.subr.bf16.mxu0 0
    %246 = vmatpush1.bf16.msra.mxu0 0
    %247 = vmatprep.subr.bf16.mxu0 0
    %248 = vmatpush1.bf16.msra.mxu0 0
    %249 = vmatprep.subr.bf16.mxu0 0
    %250 = vmatpush1.bf16.msra.mxu0 0
    %251 = vmatprep.subr.bf16.mxu0 0
    %252 = vmatpush1.bf16.msra.mxu0 0
    %253 = vmatprep.subr.bf16.mxu0 0
    %254 = vmatpush1.bf16.msra.mxu0 0
    %255 = vmatprep.subr.bf16.mxu0 0
    %256 = vmatpush1.bf16.msra.mxu0 0
    %257 = vmatprep.subr.bf16.mxu0 0
    %258 = vmatpush1.bf16.msra.mxu0 0
    %259 = vmatprep.mubr.bf16.mxu0 0
    %260 = vmatmul.mubr.bf16.gmra.mrb[0].mxu0 %v99
    %v261 = vpop.f32.mrb[0].mxu0
    %v262 = vadd.f32 0.0, %v261
    %v263 = vpop.f32.mrb[0].mxu0
    %v264 = vpop.f32.mrb[0].mxu0
    %v265 = vadd.f32 0.0, %v264
    %v266 = vpop.f32.mrb[0].mxu0
    %267 = vmatprep.mubr.bf16.mxu0 0
    %268 = vmatmul.mubr.bf16.gmra.mrb[0].mxu0 %v102
    %v269 = vpop.f32.mrb[0].mxu0
    %v270 = vadd.f32 0.0, %v269
    %v271 = vpop.f32.mrb[0].mxu0
    %v272 = vpop.f32.mrb[0].mxu0
    %v273 = vadd.f32 0.0, %v272
    %v274 = vpop.f32.mrb[0].mxu0
    %275 = vmatprep.mubr.bf16.mxu0 0
    %276 = vmatmul.mubr.bf16.gmra.mrb[0].mxu0 %v105
    %v277 = vpop.f32.mrb[0].mxu0
    %v278 = vadd.f32 0.0, %v277
    %v279 = vpop.f32.mrb[0].mxu0
    %v280 = vpop.f32.mrb[0].mxu0
    %v281 = vadd.f32 0.0, %v280
    %v282 = vpop.f32.mrb[0].mxu0
    %283 = vmatprep.mubr.bf16.mxu0 0
    %284 = vmatmul.mubr.bf16.gmra.mrb[0].mxu0 %v108
    %v285 = vpop.f32.mrb[0].mxu0
    %v286 = vadd.f32 0.0, %v285
    %v287 = vpop.f32.mrb[0].mxu0
    %v288 = vpop.f32.mrb[0].mxu0
    %v289 = vadd.f32 0.0, %v288
    %v290 = vpop.f32.mrb[0].mxu0
    %291 = vmatprep.mubr.bf16.mxu0 0
    %292 = vmatmul.mubr.bf16.gmra.mrb[0].mxu0 %v111
    %v293 = vpop.f32.mrb[0].mxu0
    %v294 = vadd.f32 0.0, %v293
    %v295 = vpop.f32.mrb[0].mxu0
    %v296 = vpop.f32.mrb[0].mxu0
    %v297 = vadd.f32 0.0, %v296
    %v298 = vpop.f32.mrb[0].mxu0
    %299 = vmatprep.mubr.bf16.mxu0 0
    %300 = vmatmul.mubr.bf16.gmra.mrb[0].mxu0 %v114
    %v301 = vpop.f32.mrb[0].mxu0
    %v302 = vadd.f32 0.0, %v301
    %v303 = vpop.f32.mrb[0].mxu0
    %v304 = vpop.f32.mrb[0].mxu0
    %v305 = vadd.f32 0.0, %v304
    %v306 = vpop.f32.mrb[0].mxu0
    %307 = vmatprep.mubr.bf16.mxu0 0
    %308 = vmatmul.mubr.bf16.gmra.mrb[0].mxu0 %v117
    %v309 = vpop.f32.mrb[0].mxu0
    %v310 = vadd.f32 0.0, %v309
    %v311 = vpop.f32.mrb[0].mxu0
    %v312 = vpop.f32.mrb[0].mxu0
    %v313 = vadd.f32 0.0, %v312
    %v314 = vpop.f32.mrb[0].mxu0
    %315 = vmatprep.mubr.bf16.mxu0 0
    %316 = vmatmul.mubr.bf16.gmra.mrb[0].mxu0 %v120
    %v317 = vpop.f32.mrb[0].mxu0
    %v318 = vadd.f32 0.0, %v317
    %v319 = vpop.f32.mrb[0].mxu0
    %v320 = vpop.f32.mrb[0].mxu0
    %v321 = vadd.f32 0.0, %v320
    %v322 = vpop.f32.mrb[0].mxu0
    %323 = vdwg.mxu0
    %v324 = vld [vmem:[%s3] sm:$0xf]
    %v326 = vsel %vm122, %v324, 0
    %328 = vmatprep.subr.bf16.mxu0 0
    %329 = vmatpush1.bf16.msra.mxu0 %v326
    %330 = vmatprep.subr.bf16.mxu0 0
    %331 = vmatpush1.bf16.msra.mxu0 0
    %332 = vmatprep.subr.bf16.mxu0 0
    %333 = vmatpush1.bf16.msra.mxu0 0
    %334 = vmatprep.subr.bf16.mxu0 0
    %335 = vmatpush1.bf16.msra.mxu0 0
    %336 = vmatprep.subr.bf16.mxu0 0
    %337 = vmatpush1.bf16.msra.mxu0 0
    %338 = vmatprep.subr.bf16.mxu0 0
    %339 = vmatpush1.bf16.msra.mxu0 0
    %340 = vmatprep.subr.bf16.mxu0 0
    %341 = vmatpush1.bf16.msra.mxu0 0
    %342 = vmatprep.subr.bf16.mxu0 0
    %343 = vmatpush1.bf16.msra.mxu0 0
    %344 = vmatprep.subr.bf16.mxu0 0
    %345 = vmatpush1.bf16.msra.mxu0 0
    %346 = vmatprep.subr.bf16.mxu0 0
    %347 = vmatpush1.bf16.msra.mxu0 0
    %348 = vmatprep.subr.bf16.mxu0 0
    %349 = vmatpush1.bf16.msra.mxu0 0
    %350 = vmatprep.subr.bf16.mxu0 0
    %351 = vmatpush1.bf16.msra.mxu0 0
    %352 = vmatprep.subr.bf16.mxu0 0
    %353 = vmatpush1.bf16.msra.mxu0 0
    %354 = vmatprep.subr.bf16.mxu0 0
    %355 = vmatpush1.bf16.msra.mxu0 0
    %356 = vmatprep.subr.bf16.mxu0 0
    %357 = vmatpush1.bf16.msra.mxu0 0
    %358 = vmatprep.subr.bf16.mxu0 0
    %359 = vmatpush1.bf16.msra.mxu0 0
    %360 = vmatprep.mubr.bf16.mxu0 0
    %361 = vmatmul.mubr.bf16.gmra.mrb[0].mxu0 %v99
    %v362 = vpop.f32.mrb[0].mxu0
    %v363 = vadd.f32 0.0, %v362
    %v364 = vpop.f32.mrb[0].mxu0
    %v365 = vpop.f32.mrb[0].mxu0
    %v366 = vadd.f32 0.0, %v365
    %v367 = vpop.f32.mrb[0].mxu0
    %368 = vmatprep.mubr.bf16.mxu0 0
    %369 = vmatmul.mubr.bf16.gmra.mrb[0].mxu0 %v102
    %v370 = vpop.f32.mrb[0].mxu0
    %v371 = vadd.f32 0.0, %v370
    %v372 = vpop.f32.mrb[0].mxu0
    %v373 = vpop.f32.mrb[0].mxu0
    %v374 = vadd.f32 0.0, %v373
    %v375 = vpop.f32.mrb[0].mxu0
    %376 = vmatprep.mubr.bf16.mxu0 0
    %377 = vmatmul.mubr.bf16.gmra.mrb[0].mxu0 %v105
    %v378 = vpop.f32.mrb[0].mxu0
    %v379 = vadd.f32 0.0, %v378
    %v380 = vpop.f32.mrb[0].mxu0
    %v381 = vpop.f32.mrb[0].mxu0
    %v382 = vadd.f32 0.0, %v381
    %v383 = vpop.f32.mrb[0].mxu0
    %384 = vmatprep.mubr.bf16.mxu0 0
    %385 = vmatmul.mubr.bf16.gmra.mrb[0].mxu0 %v108
    %v386 = vpop.f32.mrb[0].mxu0
    %v387 = vadd.f32 0.0, %v386
    %v388 = vpop.f32.mrb[0].mxu0
    %v389 = vpop.f32.mrb[0].mxu0
    %v390 = vadd.f32 0.0, %v389
    %v391 = vpop.f32.mrb[0].mxu0
    %392 = vmatprep.mubr.bf16.mxu0 0
    %393 = vmatmul.mubr.bf16.gmra.mrb[0].mxu0 %v111
    %v394 = vpop.f32.mrb[0].mxu0
    %v395 = vadd.f32 0.0, %v394
    %v396 = vpop.f32.mrb[0].mxu0
    %v397 = vpop.f32.mrb[0].mxu0
    %v398 = vadd.f32 0.0, %v397
    %v399 = vpop.f32.mrb[0].mxu0
    %400 = vmatprep.mubr.bf16.mxu0 0
    %401 = vmatmul.mubr.bf16.gmra.mrb[0].mxu0 %v114
    %v402 = vpop.f32.mrb[0].mxu0
    %v403 = vadd.f32 0.0, %v402
    %v404 = vpop.f32.mrb[0].mxu0
    %v405 = vpop.f32.mrb[0].mxu0
    %v406 = vadd.f32 0.0, %v405
    %v407 = vpop.f32.mrb[0].mxu0
    %408 = vmatprep.mubr.bf16.mxu0 0
    %409 = vmatmul.mubr.bf16.gmra.mrb[0].mxu0 %v117
    %v410 = vpop.f32.mrb[0].mxu0
    %v411 = vadd.f32 0.0, %v410
    %v412 = vpop.f32.mrb[0].mxu0
    %v413 = vpop.f32.mrb[0].mxu0
    %v414 = vadd.f32 0.0, %v413
    %v415 = vpop.f32.mrb[0].mxu0
    %416 = vmatprep.mubr.bf16.mxu0 0
    %417 = vmatmul.mubr.bf16.gmra.mrb[0].mxu0 %v120
    %v418 = vpop.f32.mrb[0].mxu0
    %v419 = vadd.f32 0.0, %v418
    %v420 = vpop.f32.mrb[0].mxu0
    %v421 = vpop.f32.mrb[0].mxu0
    %v422 = vadd.f32 0.0, %v421
    %v423 = vpop.f32.mrb[0].mxu0
    %424 = vdwg.mxu0
    %v425 = vpack.c.bf16 %v164, %v161
    %v426 = vpack.c.bf16 %v172, %v169
    %v427 = vpack.c.bf16 %v180, %v177
    %v428 = vpack.c.bf16 %v188, %v185
    %v429 = vpack.c.bf16 %v196, %v193
    %v430 = vpack.c.bf16 %v204, %v201
    %v431 = vpack.c.bf16 %v212, %v209
    %v432 = vpack.c.bf16 %v220, %v217
    %v433 = vpack.c.bf16 %v265, %v262
    %v434 = vpack.c.bf16 %v273, %v270
    %v435 = vpack.c.bf16 %v281, %v278
    %v436 = vpack.c.bf16 %v289, %v286
    %v437 = vpack.c.bf16 %v297, %v294
    %v438 = vpack.c.bf16 %v305, %v302
    %v439 = vpack.c.bf16 %v313, %v310
    %v440 = vpack.c.bf16 %v321, %v318
    %vm441 = vcmask 261120
    %v443 = vsel %vm441, %v425, 0
    %v446 = vsel %vm441, %v433, 0
    %448 = vmatprep.subr.bf16.mxu0 0
    %449 = vmatpush1.bf16.xpose.msra.mxu0 %v446
    %450 = vmatprep.subr.bf16.mxu0 0
    %451 = vmatpush1.bf16.xpose.msra.mxu0 0
    %452 = vmatprep.subr.bf16.mxu0 0
    %453 = vmatpush1.bf16.xpose.msra.mxu0 0
    %454 = vmatprep.subr.bf16.mxu0 0
    %455 = vmatpush1.bf16.xpose.msra.mxu0 0
    %456 = vmatprep.subr.bf16.mxu0 0
    %457 = vmatpush1.bf16.xpose.msra.mxu0 0
    %458 = vmatprep.subr.bf16.mxu0 0
    %459 = vmatpush1.bf16.xpose.msra.mxu0 0
    %460 = vmatprep.subr.bf16.mxu0 0
    %461 = vmatpush1.bf16.xpose.msra.mxu0 0
    %462 = vmatprep.subr.bf16.mxu0 0
    %463 = vmatpush1.bf16.xpose.msra.mxu0 0
    %464 = vmatprep.subr.bf16.mxu0 0
    %465 = vmatpush1.bf16.xpose.msra.mxu0 0
    %466 = vmatprep.subr.bf16.mxu0 0
    %467 = vmatpush1.bf16.xpose.msra.mxu0 0
    %468 = vmatprep.subr.bf16.mxu0 0
    %469 = vmatpush1.bf16.xpose.msra.mxu0 0
    %470 = vmatprep.subr.bf16.mxu0 0
    %471 = vmatpush1.bf16.xpose.msra.mxu0 0
    %472 = vmatprep.subr.bf16.mxu0 0
    %473 = vmatpush1.bf16.xpose.msra.mxu0 0
    %474 = vmatprep.subr.bf16.mxu0 0
    %475 = vmatpush1.bf16.xpose.msra.mxu0 0
    %476 = vmatprep.subr.bf16.mxu0 0
    %477 = vmatpush1.bf16.xpose.msra.mxu0 0
    %478 = vmatprep.subr.bf16.mxu0 0
    %479 = vmatpush1.bf16.xpose.msra.mxu0 0
    %480 = vmatprep.mubr.bf16.mxu0 0
    %481 = vmatmul.mubr.bf16.gmra.mrb[0].mxu0 %v443
    %v482 = vpop.f32.mrb[0].mxu0
    %v483 = vadd.f32 0.0, %v482
    %v484 = vpop.f32.mrb[0].mxu0
    %v485 = vpop.f32.mrb[0].mxu0
    %v486 = vadd.f32 0.0, %v485
    %v487 = vpop.f32.mrb[0].mxu0
    %488 = vdwg.mxu0
    %v490 = vsel %vm441, %v426, 0
    %v493 = vsel %vm441, %v434, 0
    %495 = vmatprep.subr.bf16.mxu0 0
    %496 = vmatpush1.bf16.xpose.msra.mxu0 %v493
    %497 = vmatprep.subr.bf16.mxu0 0
    %498 = vmatpush1.bf16.xpose.msra.mxu0 0
    %499 = vmatprep.subr.bf16.mxu0 0
    %500 = vmatpush1.bf16.xpose.msra.mxu0 0
    %501 = vmatprep.subr.bf16.mxu0 0
    %502 = vmatpush1.bf16.xpose.msra.mxu0 0
    %503 = vmatprep.subr.bf16.mxu0 0
    %504 = vmatpush1.bf16.xpose.msra.mxu0 0
    %505 = vmatprep.subr.bf16.mxu0 0
    %506 = vmatpush1.bf16.xpose.msra.mxu0 0
    %507 = vmatprep.subr.bf16.mxu0 0
    %508 = vmatpush1.bf16.xpose.msra.mxu0 0
    %509 = vmatprep.subr.bf16.mxu0 0
    %510 = vmatpush1.bf16.xpose.msra.mxu0 0
    %511 = vmatprep.subr.bf16.mxu0 0
    %512 = vmatpush1.bf16.xpose.msra.mxu0 0
    %513 = vmatprep.subr.bf16.mxu0 0
    %514 = vmatpush1.bf16.xpose.msra.mxu0 0
    %515 = vmatprep.subr.bf16.mxu0 0
    %516 = vmatpush1.bf16.xpose.msra.mxu0 0
    %517 = vmatprep.subr.bf16.mxu0 0
    %518 = vmatpush1.bf16.xpose.msra.mxu0 0
    %519 = vmatprep.subr.bf16.mxu0 0
    %520 = vmatpush1.bf16.xpose.msra.mxu0 0
    %521 = vmatprep.subr.bf16.mxu0 0
    %522 = vmatpush1.bf16.xpose.msra.mxu0 0
    %523 = vmatprep.subr.bf16.mxu0 0
    %524 = vmatpush1.bf16.xpose.msra.mxu0 0
    %525 = vmatprep.subr.bf16.mxu0 0
    %526 = vmatpush1.bf16.xpose.msra.mxu0 0
    %527 = vmatprep.mubr.bf16.mxu0 0
    %528 = vmatmul.mubr.bf16.gmra.mrb[0].mxu0 %v490
    %v529 = vpop.f32.mrb[0].mxu0
    %v530 = vadd.f32 0.0, %v529
    %v531 = vpop.f32.mrb[0].mxu0
    %v532 = vpop.f32.mrb[0].mxu0
    %v533 = vadd.f32 0.0, %v532
    %v534 = vpop.f32.mrb[0].mxu0
    %535 = vdwg.mxu0
    %v537 = vsel %vm441, %v427, 0
    %v540 = vsel %vm441, %v435, 0
    %542 = vmatprep.subr.bf16.mxu0 0
    %543 = vmatpush1.bf16.xpose.msra.mxu0 %v540
    %544 = vmatprep.subr.bf16.mxu0 0
    %545 = vmatpush1.bf16.xpose.msra.mxu0 0
    %546 = vmatprep.subr.bf16.mxu0 0
    %547 = vmatpush1.bf16.xpose.msra.mxu0 0
    %548 = vmatprep.subr.bf16.mxu0 0
    %549 = vmatpush1.bf16.xpose.msra.mxu0 0
    %550 = vmatprep.subr.bf16.mxu0 0
    %551 = vmatpush1.bf16.xpose.msra.mxu0 0
    %552 = vmatprep.subr.bf16.mxu0 0
    %553 = vmatpush1.bf16.xpose.msra.mxu0 0
    %554 = vmatprep.subr.bf16.mxu0 0
    %555 = vmatpush1.bf16.xpose.msra.mxu0 0
    %556 = vmatprep.subr.bf16.mxu0 0
    %557 = vmatpush1.bf16.xpose.msra.mxu0 0
    %558 = vmatprep.subr.bf16.mxu0 0
    %559 = vmatpush1.bf16.xpose.msra.mxu0 0
    %560 = vmatprep.subr.bf16.mxu0 0
    %561 = vmatpush1.bf16.xpose.msra.mxu0 0
    %562 = vmatprep.subr.bf16.mxu0 0
    %563 = vmatpush1.bf16.xpose.msra.mxu0 0
    %564 = vmatprep.subr.bf16.mxu0 0
    %565 = vmatpush1.bf16.xpose.msra.mxu0 0
    %566 = vmatprep.subr.bf16.mxu0 0
    %567 = vmatpush1.bf16.xpose.msra.mxu0 0
    %568 = vmatprep.subr.bf16.mxu0 0
    %569 = vmatpush1.bf16.xpose.msra.mxu0 0
    %570 = vmatprep.subr.bf16.mxu0 0
    %571 = vmatpush1.bf16.xpose.msra.mxu0 0
    %572 = vmatprep.subr.bf16.mxu0 0
    %573 = vmatpush1.bf16.xpose.msra.mxu0 0
    %574 = vmatprep.mubr.bf16.mxu0 0
    %575 = vmatmul.mubr.bf16.gmra.mrb[0].mxu0 %v537
    %v576 = vpop.f32.mrb[0].mxu0
    %v577 = vadd.f32 0.0, %v576
    %v578 = vpop.f32.mrb[0].mxu0
    %v579 = vpop.f32.mrb[0].mxu0
    %v580 = vadd.f32 0.0, %v579
    %v581 = vpop.f32.mrb[0].mxu0
    %582 = vdwg.mxu0
    %v584 = vsel %vm441, %v428, 0
    %v587 = vsel %vm441, %v436, 0
    %589 = vmatprep.subr.bf16.mxu0 0
    %590 = vmatpush1.bf16.xpose.msra.mxu0 %v587
    %591 = vmatprep.subr.bf16.mxu0 0
    %592 = vmatpush1.bf16.xpose.msra.mxu0 0
    %593 = vmatprep.subr.bf16.mxu0 0
    %594 = vmatpush1.bf16.xpose.msra.mxu0 0
    %595 = vmatprep.subr.bf16.mxu0 0
    %596 = vmatpush1.bf16.xpose.msra.mxu0 0
    %597 = vmatprep.subr.bf16.mxu0 0
    %598 = vmatpush1.bf16.xpose.msra.mxu0 0
    %599 = vmatprep.subr.bf16.mxu0 0
    %600 = vmatpush1.bf16.xpose.msra.mxu0 0
    %601 = vmatprep.subr.bf16.mxu0 0
    %602 = vmatpush1.bf16.xpose.msra.mxu0 0
    %603 = vmatprep.subr.bf16.mxu0 0
    %604 = vmatpush1.bf16.xpose.msra.mxu0 0
    %605 = vmatprep.subr.bf16.mxu0 0
    %606 = vmatpush1.bf16.xpose.msra.mxu0 0
    %607 = vmatprep.subr.bf16.mxu0 0
    %608 = vmatpush1.bf16.xpose.msra.mxu0 0
    %609 = vmatprep.subr.bf16.mxu0 0
    %610 = vmatpush1.bf16.xpose.msra.mxu0 0
    %611 = vmatprep.subr.bf16.mxu0 0
    %612 = vmatpush1.bf16.xpose.msra.mxu0 0
    %613 = vmatprep.subr.bf16.mxu0 0
    %614 = vmatpush1.bf16.xpose.msra.mxu0 0
    %615 = vmatprep.subr.bf16.mxu0 0
    %616 = vmatpush1.bf16.xpose.msra.mxu0 0
    %617 = vmatprep.subr.bf16.mxu0 0
    %618 = vmatpush1.bf16.xpose.msra.mxu0 0
    %619 = vmatprep.subr.bf16.mxu0 0
    %620 = vmatpush1.bf16.xpose.msra.mxu0 0
    %621 = vmatprep.mubr.bf16.mxu0 0
    %622 = vmatmul.mubr.bf16.gmra.mrb[0].mxu0 %v584
    %v623 = vpop.f32.mrb[0].mxu0
    %v624 = vadd.f32 0.0, %v623
    %v625 = vpop.f32.mrb[0].mxu0
    %v626 = vpop.f32.mrb[0].mxu0
    %v627 = vadd.f32 0.0, %v626
    %v628 = vpop.f32.mrb[0].mxu0
    %629 = vdwg.mxu0
    %v631 = vsel %vm441, %v429, 0
    %v634 = vsel %vm441, %v437, 0
    %636 = vmatprep.subr.bf16.mxu0 0
    %637 = vmatpush1.bf16.xpose.msra.mxu0 %v634
    %638 = vmatprep.subr.bf16.mxu0 0
    %639 = vmatpush1.bf16.xpose.msra.mxu0 0
    %640 = vmatprep.subr.bf16.mxu0 0
    %641 = vmatpush1.bf16.xpose.msra.mxu0 0
    %642 = vmatprep.subr.bf16.mxu0 0
    %643 = vmatpush1.bf16.xpose.msra.mxu0 0
    %644 = vmatprep.subr.bf16.mxu0 0
    %645 = vmatpush1.bf16.xpose.msra.mxu0 0
    %646 = vmatprep.subr.bf16.mxu0 0
    %647 = vmatpush1.bf16.xpose.msra.mxu0 0
    %648 = vmatprep.subr.bf16.mxu0 0
    %649 = vmatpush1.bf16.xpose.msra.mxu0 0
    %650 = vmatprep.subr.bf16.mxu0 0
    %651 = vmatpush1.bf16.xpose.msra.mxu0 0
    %652 = vmatprep.subr.bf16.mxu0 0
    %653 = vmatpush1.bf16.xpose.msra.mxu0 0
    %654 = vmatprep.subr.bf16.mxu0 0
    %655 = vmatpush1.bf16.xpose.msra.mxu0 0
    %656 = vmatprep.subr.bf16.mxu0 0
    %657 = vmatpush1.bf16.xpose.msra.mxu0 0
    %658 = vmatprep.subr.bf16.mxu0 0
    %659 = vmatpush1.bf16.xpose.msra.mxu0 0
    %660 = vmatprep.subr.bf16.mxu0 0
    %661 = vmatpush1.bf16.xpose.msra.mxu0 0
    %662 = vmatprep.subr.bf16.mxu0 0
    %663 = vmatpush1.bf16.xpose.msra.mxu0 0
    %664 = vmatprep.subr.bf16.mxu0 0
    %665 = vmatpush1.bf16.xpose.msra.mxu0 0
    %666 = vmatprep.subr.bf16.mxu0 0
    %667 = vmatpush1.bf16.xpose.msra.mxu0 0
    %668 = vmatprep.mubr.bf16.mxu0 0
    %669 = vmatmul.mubr.bf16.gmra.mrb[0].mxu0 %v631
    %v670 = vpop.f32.mrb[0].mxu0
    %v671 = vadd.f32 0.0, %v670
    %v672 = vpop.f32.mrb[0].mxu0
    %v673 = vpop.f32.mrb[0].mxu0
    %v674 = vadd.f32 0.0, %v673
    %v675 = vpop.f32.mrb[0].mxu0
    %676 = vdwg.mxu0
    %v678 = vsel %vm441, %v430, 0
    %v681 = vsel %vm441, %v438, 0
    %683 = vmatprep.subr.bf16.mxu0 0
    %684 = vmatpush1.bf16.xpose.msra.mxu0 %v681
    %685 = vmatprep.subr.bf16.mxu0 0
    %686 = vmatpush1.bf16.xpose.msra.mxu0 0
    %687 = vmatprep.subr.bf16.mxu0 0
    %688 = vmatpush1.bf16.xpose.msra.mxu0 0
    %689 = vmatprep.subr.bf16.mxu0 0
    %690 = vmatpush1.bf16.xpose.msra.mxu0 0
    %691 = vmatprep.subr.bf16.mxu0 0
    %692 = vmatpush1.bf16.xpose.msra.mxu0 0
    %693 = vmatprep.subr.bf16.mxu0 0
    %694 = vmatpush1.bf16.xpose.msra.mxu0 0
    %695 = vmatprep.subr.bf16.mxu0 0
    %696 = vmatpush1.bf16.xpose.msra.mxu0 0
    %697 = vmatprep.subr.bf16.mxu0 0
    %698 = vmatpush1.bf16.xpose.msra.mxu0 0
    %699 = vmatprep.subr.bf16.mxu0 0
    %700 = vmatpush1.bf16.xpose.msra.mxu0 0
    %701 = vmatprep.subr.bf16.mxu0 0
    %702 = vmatpush1.bf16.xpose.msra.mxu0 0
    %703 = vmatprep.subr.bf16.mxu0 0
    %704 = vmatpush1.bf16.xpose.msra.mxu0 0
    %705 = vmatprep.subr.bf16.mxu0 0
    %706 = vmatpush1.bf16.xpose.msra.mxu0 0
    %707 = vmatprep.subr.bf16.mxu0 0
    %708 = vmatpush1.bf16.xpose.msra.mxu0 0
    %709 = vmatprep.subr.bf16.mxu0 0
    %710 = vmatpush1.bf16.xpose.msra.mxu0 0
    %711 = vmatprep.subr.bf16.mxu0 0
    %712 = vmatpush1.bf16.xpose.msra.mxu0 0
    %713 = vmatprep.subr.bf16.mxu0 0
    %714 = vmatpush1.bf16.xpose.msra.mxu0 0
    %715 = vmatprep.mubr.bf16.mxu0 0
    %716 = vmatmul.mubr.bf16.gmra.mrb[0].mxu0 %v678
    %v717 = vpop.f32.mrb[0].mxu0
    %v718 = vadd.f32 0.0, %v717
    %v719 = vpop.f32.mrb[0].mxu0
    %v720 = vpop.f32.mrb[0].mxu0
    %v721 = vadd.f32 0.0, %v720
    %v722 = vpop.f32.mrb[0].mxu0
    %723 = vdwg.mxu0
    %v725 = vsel %vm441, %v431, 0
    %v728 = vsel %vm441, %v439, 0
    %730 = vmatprep.subr.bf16.mxu0 0
    %731 = vmatpush1.bf16.xpose.msra.mxu0 %v728
    %732 = vmatprep.subr.bf16.mxu0 0
    %733 = vmatpush1.bf16.xpose.msra.mxu0 0
    %734 = vmatprep.subr.bf16.mxu0 0
    %735 = vmatpush1.bf16.xpose.msra.mxu0 0
    %736 = vmatprep.subr.bf16.mxu0 0
    %737 = vmatpush1.bf16.xpose.msra.mxu0 0
    %738 = vmatprep.subr.bf16.mxu0 0
    %739 = vmatpush1.bf16.xpose.msra.mxu0 0
    %740 = vmatprep.subr.bf16.mxu0 0
    %741 = vmatpush1.bf16.xpose.msra.mxu0 0
    %742 = vmatprep.subr.bf16.mxu0 0
    %743 = vmatpush1.bf16.xpose.msra.mxu0 0
    %744 = vmatprep.subr.bf16.mxu0 0
    %745 = vmatpush1.bf16.xpose.msra.mxu0 0
    %746 = vmatprep.subr.bf16.mxu0 0
    %747 = vmatpush1.bf16.xpose.msra.mxu0 0
    %748 = vmatprep.subr.bf16.mxu0 0
    %749 = vmatpush1.bf16.xpose.msra.mxu0 0
    %750 = vmatprep.subr.bf16.mxu0 0
    %751 = vmatpush1.bf16.xpose.msra.mxu0 0
    %752 = vmatprep.subr.bf16.mxu0 0
    %753 = vmatpush1.bf16.xpose.msra.mxu0 0
    %754 = vmatprep.subr.bf16.mxu0 0
    %755 = vmatpush1.bf16.xpose.msra.mxu0 0
    %756 = vmatprep.subr.bf16.mxu0 0
    %757 = vmatpush1.bf16.xpose.msra.mxu0 0
    %758 = vmatprep.subr.bf16.mxu0 0
    %759 = vmatpush1.bf16.xpose.msra.mxu0 0
    %760 = vmatprep.subr.bf16.mxu0 0
    %761 = vmatpush1.bf16.xpose.msra.mxu0 0
    %762 = vmatprep.mubr.bf16.mxu0 0
    %763 = vmatmul.mubr.bf16.gmra.mrb[0].mxu0 %v725
    %v764 = vpop.f32.mrb[0].mxu0
    %v765 = vadd.f32 0.0, %v764
    %v766 = vpop.f32.mrb[0].mxu0
    %v767 = vpop.f32.mrb[0].mxu0
    %v768 = vadd.f32 0.0, %v767
    %v769 = vpop.f32.mrb[0].mxu0
    %770 = vdwg.mxu0
    %v772 = vsel %vm441, %v432, 0
    %v775 = vsel %vm441, %v440, 0
    %777 = vmatprep.subr.bf16.mxu0 0
    %778 = vmatpush1.bf16.xpose.msra.mxu0 %v775
    %779 = vmatprep.subr.bf16.mxu0 0
    %780 = vmatpush1.bf16.xpose.msra.mxu0 0
    %781 = vmatprep.subr.bf16.mxu0 0
    %782 = vmatpush1.bf16.xpose.msra.mxu0 0
    %783 = vmatprep.subr.bf16.mxu0 0
    %784 = vmatpush1.bf16.xpose.msra.mxu0 0
    %785 = vmatprep.subr.bf16.mxu0 0
    %786 = vmatpush1.bf16.xpose.msra.mxu0 0
    %787 = vmatprep.subr.bf16.mxu0 0
    %788 = vmatpush1.bf16.xpose.msra.mxu0 0
    %789 = vmatprep.subr.bf16.mxu0 0
    %790 = vmatpush1.bf16.xpose.msra.mxu0 0
    %791 = vmatprep.subr.bf16.mxu0 0
    %792 = vmatpush1.bf16.xpose.msra.mxu0 0
    %793 = vmatprep.subr.bf16.mxu0 0
    %794 = vmatpush1.bf16.xpose.msra.mxu0 0
    %795 = vmatprep.subr.bf16.mxu0 0
    %796 = vmatpush1.bf16.xpose.msra.mxu0 0
    %797 = vmatprep.subr.bf16.mxu0 0
    %798 = vmatpush1.bf16.xpose.msra.mxu0 0
    %799 = vmatprep.subr.bf16.mxu0 0
    %800 = vmatpush1.bf16.xpose.msra.mxu0 0
    %801 = vmatprep.subr.bf16.mxu0 0
    %802 = vmatpush1.bf16.xpose.msra.mxu0 0
    %803 = vmatprep.subr.bf16.mxu0 0
    %804 = vmatpush1.bf16.xpose.msra.mxu0 0
    %805 = vmatprep.subr.bf16.mxu0 0
    %806 = vmatpush1.bf16.xpose.msra.mxu0 0
    %807 = vmatprep.subr.bf16.mxu0 0
    %808 = vmatpush1.bf16.xpose.msra.mxu0 0
    %809 = vmatprep.mubr.bf16.mxu0 0
    %810 = vmatmul.mubr.bf16.gmra.mrb[0].mxu0 %v772
    %v811 = vpop.f32.mrb[0].mxu0
    %v812 = vadd.f32 0.0, %v811
    %v813 = vpop.f32.mrb[0].mxu0
    %v814 = vpop.f32.mrb[0].mxu0
    %v815 = vadd.f32 0.0, %v814
    %v816 = vpop.f32.mrb[0].mxu0
    %817 = vdwg.mxu0
    %v818 = vmul.f32 %v483, 0.17677669
    %v819 = vmul.f32 %v486, 0.17677669
    %v820 = vmul.f32 %v530, 0.17677669
    %v821 = vmul.f32 %v533, 0.17677669
    %v822 = vmul.f32 %v577, 0.17677669
    %v823 = vmul.f32 %v580, 0.17677669
    %v824 = vmul.f32 %v624, 0.17677669
    %v825 = vmul.f32 %v627, 0.17677669
    %v826 = vmul.f32 %v671, 0.17677669
    %v827 = vmul.f32 %v674, 0.17677669
    %v828 = vmul.f32 %v718, 0.17677669
    %v829 = vmul.f32 %v721, 0.17677669
    %v830 = vmul.f32 %v765, 0.17677669
    %v831 = vmul.f32 %v768, 0.17677669
    %v832 = vmul.f32 %v812, 0.17677669
    %v833 = vmul.f32 %v815, 0.17677669
    %vm834 = vcmask 130048
    %v835 = vsel %vm834, %v818, -inf
    %836 = vmax.xlane.f32.xlu0 %v835
    %v837 = vpop.xlane.xlu0 %836
    %v838 = vsel %vm834, %v819, -inf
    %839 = vmax.xlane.f32.xlu0 %v838
    %v840 = vpop.xlane.xlu0 %839
    %v841 = vsel %vm834, %v820, -inf
    %842 = vmax.xlane.f32.xlu0 %v841
    %v843 = vpop.xlane.xlu0 %842
    %v844 = vsel %vm834, %v821, -inf
    %845 = vmax.xlane.f32.xlu0 %v844
    %v846 = vpop.xlane.xlu0 %845
    %v847 = vsel %vm834, %v822, -inf
    %848 = vmax.xlane.f32.xlu0 %v847
    %v849 = vpop.xlane.xlu0 %848
    %v850 = vsel %vm834, %v823, -inf
    %851 = vmax.xlane.f32.xlu0 %v850
    %v852 = vpop.xlane.xlu0 %851
    %v853 = vsel %vm834, %v824, -inf
    %854 = vmax.xlane.f32.xlu0 %v853
    %v855 = vpop.xlane.xlu0 %854
    %v856 = vsel %vm834, %v825, -inf
    %857 = vmax.xlane.f32.xlu0 %v856
    %v858 = vpop.xlane.xlu0 %857
    %v859 = vsel %vm834, %v826, -inf
    %860 = vmax.xlane.f32.xlu0 %v859
    %v861 = vpop.xlane.xlu0 %860
    %v862 = vsel %vm834, %v827, -inf
    %863 = vmax.xlane.f32.xlu0 %v862
    %v864 = vpop.xlane.xlu0 %863
    %v865 = vsel %vm834, %v828, -inf
    %866 = vmax.xlane.f32.xlu0 %v865
    %v867 = vpop.xlane.xlu0 %866
    %v868 = vsel %vm834, %v829, -inf
    %869 = vmax.xlane.f32.xlu0 %v868
    %v870 = vpop.xlane.xlu0 %869
    %v871 = vsel %vm834, %v830, -inf
    %872 = vmax.xlane.f32.xlu0 %v871
    %v873 = vpop.xlane.xlu0 %872
    %v874 = vsel %vm834, %v831, -inf
    %875 = vmax.xlane.f32.xlu0 %v874
    %v876 = vpop.xlane.xlu0 %875
    %v877 = vsel %vm834, %v832, -inf
    %878 = vmax.xlane.f32.xlu0 %v877
    %v879 = vpop.xlane.xlu0 %878
    %v880 = vsel %vm834, %v833, -inf
    %881 = vmax.xlane.f32.xlu0 %v880
    %v882 = vpop.xlane.xlu0 %881
    %v883 = vsub.f32 %v818, %v837
    %v884 = vsub.f32 %v819, %v840
    %v885 = vsub.f32 %v820, %v843
    %v886 = vsub.f32 %v821, %v846
    %v887 = vsub.f32 %v822, %v849
    %v888 = vsub.f32 %v823, %v852
    %v889 = vsub.f32 %v824, %v855
    %v890 = vsub.f32 %v825, %v858
    %v891 = vsub.f32 %v826, %v861
    %v892 = vsub.f32 %v827, %v864
    %v893 = vsub.f32 %v828, %v867
    %v894 = vsub.f32 %v829, %v870
    %v895 = vsub.f32 %v830, %v873
    %v896 = vsub.f32 %v831, %v876
    %v897 = vsub.f32 %v832, %v879
    %v898 = vsub.f32 %v833, %v882
    %v899 = vmul.f32 %v883, 1.442695
    %v900 = vpow.pop %v899
    %v901 = vmul.f32 %v884, 1.442695
    %v902 = vpow.pop %v901
    %v903 = vmul.f32 %v885, 1.442695
    %v904 = vpow.pop %v903
    %v905 = vmul.f32 %v886, 1.442695
    %v906 = vpow.pop %v905
    %v907 = vmul.f32 %v887, 1.442695
    %v908 = vpow.pop %v907
    %v909 = vmul.f32 %v888, 1.442695
    %v910 = vpow.pop %v909
    %v911 = vmul.f32 %v889, 1.442695
    %v912 = vpow.pop %v911
    %v913 = vmul.f32 %v890, 1.442695
    %v914 = vpow.pop %v913
    %v915 = vmul.f32 %v891, 1.442695
    %v916 = vpow.pop %v915
    %v917 = vmul.f32 %v892, 1.442695
    %v918 = vpow.pop %v917
    %v919 = vmul.f32 %v893, 1.442695
    %v920 = vpow.pop %v919
    %v921 = vmul.f32 %v894, 1.442695
    %v922 = vpow.pop %v921
    %v923 = vmul.f32 %v895, 1.442695
    %v924 = vpow.pop %v923
    %v925 = vmul.f32 %v896, 1.442695
    %v926 = vpow.pop %v925
    %v927 = vmul.f32 %v897, 1.442695
    %v928 = vpow.pop %v927
    %v929 = vmul.f32 %v898, 1.442695
    %v930 = vpow.pop %v929
    %v931 = vsel %vm834, %v900, 0.0
    %932 = vadd.xlane.f32.xlu0 %v931
    %v933 = vpop.xlane.xlu0 %932
    %v934 = vsel %vm834, %v902, 0.0
    %935 = vadd.xlane.f32.xlu0 %v934
    %v936 = vpop.xlane.xlu0 %935
    %v937 = vsel %vm834, %v904, 0.0
    %938 = vadd.xlane.f32.xlu0 %v937
    %v939 = vpop.xlane.xlu0 %938
    %v940 = vsel %vm834, %v906, 0.0
    %941 = vadd.xlane.f32.xlu0 %v940
    %v942 = vpop.xlane.xlu0 %941
    %v943 = vsel %vm834, %v908, 0.0
    %944 = vadd.xlane.f32.xlu0 %v943
    %v945 = vpop.xlane.xlu0 %944
    %v946 = vsel %vm834, %v910, 0.0
    %947 = vadd.xlane.f32.xlu0 %v946
    %v948 = vpop.xlane.xlu0 %947
    %v949 = vsel %vm834, %v912, 0.0
    %950 = vadd.xlane.f32.xlu0 %v949
    %v951 = vpop.xlane.xlu0 %950
    %v952 = vsel %vm834, %v914, 0.0
    %953 = vadd.xlane.f32.xlu0 %v952
    %v954 = vpop.xlane.xlu0 %953
    %v955 = vsel %vm834, %v916, 0.0
    %956 = vadd.xlane.f32.xlu0 %v955
    %v957 = vpop.xlane.xlu0 %956
    %v958 = vsel %vm834, %v918, 0.0
    %959 = vadd.xlane.f32.xlu0 %v958
    %v960 = vpop.xlane.xlu0 %959
    %v961 = vsel %vm834, %v920, 0.0
    %962 = vadd.xlane.f32.xlu0 %v961
    %v963 = vpop.xlane.xlu0 %962
    %v964 = vsel %vm834, %v922, 0.0
    %965 = vadd.xlane.f32.xlu0 %v964
    %v966 = vpop.xlane.xlu0 %965
    %v967 = vsel %vm834, %v924, 0.0
    %968 = vadd.xlane.f32.xlu0 %v967
    %v969 = vpop.xlane.xlu0 %968
    %v970 = vsel %vm834, %v926, 0.0
    %971 = vadd.xlane.f32.xlu0 %v970
    %v972 = vpop.xlane.xlu0 %971
    %v973 = vsel %vm834, %v928, 0.0
    %974 = vadd.xlane.f32.xlu0 %v973
    %v975 = vpop.xlane.xlu0 %974
    %v976 = vsel %vm834, %v930, 0.0
    %977 = vadd.xlane.f32.xlu0 %v976
    %v978 = vpop.xlane.xlu0 %977
    %v979 = vrcp.pop %v933
    %v980 = vrcp.pop %v936
    %v981 = vrcp.pop %v939
    %v982 = vrcp.pop %v942
    %v983 = vrcp.pop %v945
    %v984 = vrcp.pop %v948
    %v985 = vrcp.pop %v951
    %v986 = vrcp.pop %v954
    %v987 = vrcp.pop %v957
    %v988 = vrcp.pop %v960
    %v989 = vrcp.pop %v963
    %v990 = vrcp.pop %v966
    %v991 = vrcp.pop %v969
    %v992 = vrcp.pop %v972
    %v993 = vrcp.pop %v975
    %v994 = vrcp.pop %v978
    %v995 = vmul.f32 %v900, %v979
    %v996 = vmul.f32 %v902, %v980
    %v997 = vmul.f32 %v904, %v981
    %v998 = vmul.f32 %v906, %v982
    %v999 = vmul.f32 %v908, %v983
    %v1000 = vmul.f32 %v910, %v984
    %v1001 = vmul.f32 %v912, %v985
    %v1002 = vmul.f32 %v914, %v986
    %v1003 = vmul.f32 %v916, %v987
    %v1004 = vmul.f32 %v918, %v988
    %v1005 = vmul.f32 %v920, %v989
    %v1006 = vmul.f32 %v922, %v990
    %v1007 = vmul.f32 %v924, %v991
    %v1008 = vmul.f32 %v926, %v992
    %v1009 = vmul.f32 %v928, %v993
    %v1010 = vmul.f32 %v930, %v994
    %v1011 = vpack.c.bf16 %v996, %v995
    %v1012 = vpack.c.bf16 %v998, %v997
    %v1013 = vpack.c.bf16 %v1000, %v999
    %v1014 = vpack.c.bf16 %v1002, %v1001
    %v1015 = vpack.c.bf16 %v1004, %v1003
    %v1016 = vpack.c.bf16 %v1006, %v1005
    %v1017 = vpack.c.bf16 %v1008, %v1007
    %v1018 = vpack.c.bf16 %v1010, %v1009
    %v1019 = vpack.c.bf16 %v366, %v363
    %v1020 = vpack.c.bf16 %v374, %v371
    %v1021 = vpack.c.bf16 %v382, %v379
    %v1022 = vpack.c.bf16 %v390, %v387
    %v1023 = vpack.c.bf16 %v398, %v395
    %v1024 = vpack.c.bf16 %v406, %v403
    %v1025 = vpack.c.bf16 %v414, %v411
    %v1026 = vpack.c.bf16 %v422, %v419
    %v1028 = vsel %vm834, %v1011, 0
    %1030 = vmatprep.subr.bf16.mxu0 0
    %1031 = vmatpush1.bf16.msra.mxu0 %v1019
    %1032 = vmatprep.subr.bf16.mxu0 0
    %1033 = vmatpush1.bf16.msra.mxu0 0
    %1034 = vmatprep.subr.bf16.mxu0 0
    %1035 = vmatpush1.bf16.msra.mxu0 0
    %1036 = vmatprep.subr.bf16.mxu0 0
    %1037 = vmatpush1.bf16.msra.mxu0 0
    %1038 = vmatprep.subr.bf16.mxu0 0
    %1039 = vmatpush1.bf16.msra.mxu0 0
    %1040 = vmatprep.subr.bf16.mxu0 0
    %1041 = vmatpush1.bf16.msra.mxu0 0
    %1042 = vmatprep.subr.bf16.mxu0 0
    %1043 = vmatpush1.bf16.msra.mxu0 0
    %1044 = vmatprep.subr.bf16.mxu0 0
    %1045 = vmatpush1.bf16.msra.mxu0 0
    %1046 = vmatprep.subr.bf16.mxu0 0
    %1047 = vmatpush1.bf16.msra.mxu0 0
    %1048 = vmatprep.subr.bf16.mxu0 0
    %1049 = vmatpush1.bf16.msra.mxu0 0
    %1050 = vmatprep.subr.bf16.mxu0 0
    %1051 = vmatpush1.bf16.msra.mxu0 0
    %1052 = vmatprep.subr.bf16.mxu0 0
    %1053 = vmatpush1.bf16.msra.mxu0 0
    %1054 = vmatprep.subr.bf16.mxu0 0
    %1055 = vmatpush1.bf16.msra.mxu0 0
    %1056 = vmatprep.subr.bf16.mxu0 0
    %1057 = vmatpush1.bf16.msra.mxu0 0
    %1058 = vmatprep.subr.bf16.mxu0 0
    %1059 = vmatpush1.bf16.msra.mxu0 0
    %1060 = vmatprep.subr.bf16.mxu0 0
    %1061 = vmatpush1.bf16.msra.mxu0 0
    %1062 = vmatprep.mubr.bf16.mxu0 0
    %1063 = vmatmul.mubr.bf16.gmra.mrb[0].mxu0 %v1028
    %v1064 = vpop.f32.mrb[0].mxu0
    %v1065 = vadd.f32 0.0, %v1064
    %v1066 = vpop.f32.mrb[0].mxu0
    %v1067 = vpop.f32.mrb[0].mxu0
    %v1068 = vadd.f32 0.0, %v1067
    %v1069 = vpop.f32.mrb[0].mxu0
    %1070 = vdwg.mxu0
    %v1072 = vsel %vm834, %v1012, 0
    %1074 = vmatprep.subr.bf16.mxu0 0
    %1075 = vmatpush1.bf16.msra.mxu0 %v1020
    %1076 = vmatprep.subr.bf16.mxu0 0
    %1077 = vmatpush1.bf16.msra.mxu0 0
    %1078 = vmatprep.subr.bf16.mxu0 0
    %1079 = vmatpush1.bf16.msra.mxu0 0
    %1080 = vmatprep.subr.bf16.mxu0 0
    %1081 = vmatpush1.bf16.msra.mxu0 0
    %1082 = vmatprep.subr.bf16.mxu0 0
    %1083 = vmatpush1.bf16.msra.mxu0 0
    %1084 = vmatprep.subr.bf16.mxu0 0
    %1085 = vmatpush1.bf16.msra.mxu0 0
    %1086 = vmatprep.subr.bf16.mxu0 0
    %1087 = vmatpush1.bf16.msra.mxu0 0
    %1088 = vmatprep.subr.bf16.mxu0 0
    %1089 = vmatpush1.bf16.msra.mxu0 0
    %1090 = vmatprep.subr.bf16.mxu0 0
    %1091 = vmatpush1.bf16.msra.mxu0 0
    %1092 = vmatprep.subr.bf16.mxu0 0
    %1093 = vmatpush1.bf16.msra.mxu0 0
    %1094 = vmatprep.subr.bf16.mxu0 0
    %1095 = vmatpush1.bf16.msra.mxu0 0
    %1096 = vmatprep.subr.bf16.mxu0 0
    %1097 = vmatpush1.bf16.msra.mxu0 0
    %1098 = vmatprep.subr.bf16.mxu0 0
    %1099 = vmatpush1.bf16.msra.mxu0 0
    %1100 = vmatprep.subr.bf16.mxu0 0
    %1101 = vmatpush1.bf16.msra.mxu0 0
    %1102 = vmatprep.subr.bf16.mxu0 0
    %1103 = vmatpush1.bf16.msra.mxu0 0
    %1104 = vmatprep.subr.bf16.mxu0 0
    %1105 = vmatpush1.bf16.msra.mxu0 0
    %1106 = vmatprep.mubr.bf16.mxu0 0
    %1107 = vmatmul.mubr.bf16.gmra.mrb[0].mxu0 %v1072
    %v1108 = vpop.f32.mrb[0].mxu0
    %v1109 = vadd.f32 0.0, %v1108
    %v1110 = vpop.f32.mrb[0].mxu0
    %v1111 = vpop.f32.mrb[0].mxu0
    %v1112 = vadd.f32 0.0, %v1111
    %v1113 = vpop.f32.mrb[0].mxu0
    %1114 = vdwg.mxu0
    %v1116 = vsel %vm834, %v1013, 0
    %1118 = vmatprep.subr.bf16.mxu0 0
    %1119 = vmatpush1.bf16.msra.mxu0 %v1021
    %1120 = vmatprep.subr.bf16.mxu0 0
    %1121 = vmatpush1.bf16.msra.mxu0 0
    %1122 = vmatprep.subr.bf16.mxu0 0
    %1123 = vmatpush1.bf16.msra.mxu0 0
    %1124 = vmatprep.subr.bf16.mxu0 0
    %1125 = vmatpush1.bf16.msra.mxu0 0
    %1126 = vmatprep.subr.bf16.mxu0 0
    %1127 = vmatpush1.bf16.msra.mxu0 0
    %1128 = vmatprep.subr.bf16.mxu0 0
    %1129 = vmatpush1.bf16.msra.mxu0 0
    %1130 = vmatprep.subr.bf16.mxu0 0
    %1131 = vmatpush1.bf16.msra.mxu0 0
    %1132 = vmatprep.subr.bf16.mxu0 0
    %1133 = vmatpush1.bf16.msra.mxu0 0
    %1134 = vmatprep.subr.bf16.mxu0 0
    %1135 = vmatpush1.bf16.msra.mxu0 0
    %1136 = vmatprep.subr.bf16.mxu0 0
    %1137 = vmatpush1.bf16.msra.mxu0 0
    %1138 = vmatprep.subr.bf16.mxu0 0
    %1139 = vmatpush1.bf16.msra.mxu0 0
    %1140 = vmatprep.subr.bf16.mxu0 0
    %1141 = vmatpush1.bf16.msra.mxu0 0
    %1142 = vmatprep.subr.bf16.mxu0 0
    %1143 = vmatpush1.bf16.msra.mxu0 0
    %1144 = vmatprep.subr.bf16.mxu0 0
    %1145 = vmatpush1.bf16.msra.mxu0 0
    %1146 = vmatprep.subr.bf16.mxu0 0
    %1147 = vmatpush1.bf16.msra.mxu0 0
    %1148 = vmatprep.subr.bf16.mxu0 0
    %1149 = vmatpush1.bf16.msra.mxu0 0
    %1150 = vmatprep.mubr.bf16.mxu0 0
    %1151 = vmatmul.mubr.bf16.gmra.mrb[0].mxu0 %v1116
    %v1152 = vpop.f32.mrb[0].mxu0
    %v1153 = vadd.f32 0.0, %v1152
    %v1154 = vpop.f32.mrb[0].mxu0
    %v1155 = vpop.f32.mrb[0].mxu0
    %v1156 = vadd.f32 0.0, %v1155
    %v1157 = vpop.f32.mrb[0].mxu0
    %1158 = vdwg.mxu0
    %v1160 = vsel %vm834, %v1014, 0
    %1162 = vmatprep.subr.bf16.mxu0 0
    %1163 = vmatpush1.bf16.msra.mxu0 %v1022
    %1164 = vmatprep.subr.bf16.mxu0 0
    %1165 = vmatpush1.bf16.msra.mxu0 0
    %1166 = vmatprep.subr.bf16.mxu0 0
    %1167 = vmatpush1.bf16.msra.mxu0 0
    %1168 = vmatprep.subr.bf16.mxu0 0
    %1169 = vmatpush1.bf16.msra.mxu0 0
    %1170 = vmatprep.subr.bf16.mxu0 0
    %1171 = vmatpush1.bf16.msra.mxu0 0
    %1172 = vmatprep.subr.bf16.mxu0 0
    %1173 = vmatpush1.bf16.msra.mxu0 0
    %1174 = vmatprep.subr.bf16.mxu0 0
    %1175 = vmatpush1.bf16.msra.mxu0 0
    %1176 = vmatprep.subr.bf16.mxu0 0
    %1177 = vmatpush1.bf16.msra.mxu0 0
    %1178 = vmatprep.subr.bf16.mxu0 0
    %1179 = vmatpush1.bf16.msra.mxu0 0
    %1180 = vmatprep.subr.bf16.mxu0 0
    %1181 = vmatpush1.bf16.msra.mxu0 0
    %1182 = vmatprep.subr.bf16.mxu0 0
    %1183 = vmatpush1.bf16.msra.mxu0 0
    %1184 = vmatprep.subr.bf16.mxu0 0
    %1185 = vmatpush1.bf16.msra.mxu0 0
    %1186 = vmatprep.subr.bf16.mxu0 0
    %1187 = vmatpush1.bf16.msra.mxu0 0
    %1188 = vmatprep.subr.bf16.mxu0 0
    %1189 = vmatpush1.bf16.msra.mxu0 0
    %1190 = vmatprep.subr.bf16.mxu0 0
    %1191 = vmatpush1.bf16.msra.mxu0 0
    %1192 = vmatprep.subr.bf16.mxu0 0
    %1193 = vmatpush1.bf16.msra.mxu0 0
    %1194 = vmatprep.mubr.bf16.mxu0 0
    %1195 = vmatmul.mubr.bf16.gmra.mrb[0].mxu0 %v1160
    %v1196 = vpop.f32.mrb[0].mxu0
    %v1197 = vadd.f32 0.0, %v1196
    %v1198 = vpop.f32.mrb[0].mxu0
    %v1199 = vpop.f32.mrb[0].mxu0
    %v1200 = vadd.f32 0.0, %v1199
    %v1201 = vpop.f32.mrb[0].mxu0
    %1202 = vdwg.mxu0
    %v1204 = vsel %vm834, %v1015, 0
    %1206 = vmatprep.subr.bf16.mxu0 0
    %1207 = vmatpush1.bf16.msra.mxu0 %v1023
    %1208 = vmatprep.subr.bf16.mxu0 0
    %1209 = vmatpush1.bf16.msra.mxu0 0
    %1210 = vmatprep.subr.bf16.mxu0 0
    %1211 = vmatpush1.bf16.msra.mxu0 0
    %1212 = vmatprep.subr.bf16.mxu0 0
    %1213 = vmatpush1.bf16.msra.mxu0 0
    %1214 = vmatprep.subr.bf16.mxu0 0
    %1215 = vmatpush1.bf16.msra.mxu0 0
    %1216 = vmatprep.subr.bf16.mxu0 0
    %1217 = vmatpush1.bf16.msra.mxu0 0
    %1218 = vmatprep.subr.bf16.mxu0 0
    %1219 = vmatpush1.bf16.msra.mxu0 0
    %1220 = vmatprep.subr.bf16.mxu0 0
    %1221 = vmatpush1.bf16.msra.mxu0 0
    %1222 = vmatprep.subr.bf16.mxu0 0
    %1223 = vmatpush1.bf16.msra.mxu0 0
    %1224 = vmatprep.subr.bf16.mxu0 0
    %1225 = vmatpush1.bf16.msra.mxu0 0
    %1226 = vmatprep.subr.bf16.mxu0 0
    %1227 = vmatpush1.bf16.msra.mxu0 0
    %1228 = vmatprep.subr.bf16.mxu0 0
    %1229 = vmatpush1.bf16.msra.mxu0 0
    %1230 = vmatprep.subr.bf16.mxu0 0
    %1231 = vmatpush1.bf16.msra.mxu0 0
    %1232 = vmatprep.subr.bf16.mxu0 0
    %1233 = vmatpush1.bf16.msra.mxu0 0
    %1234 = vmatprep.subr.bf16.mxu0 0
    %1235 = vmatpush1.bf16.msra.mxu0 0
    %1236 = vmatprep.subr.bf16.mxu0 0
    %1237 = vmatpush1.bf16.msra.mxu0 0
    %1238 = vmatprep.mubr.bf16.mxu0 0
    %1239 = vmatmul.mubr.bf16.gmra.mrb[0].mxu0 %v1204
    %v1240 = vpop.f32.mrb[0].mxu0
    %v1241 = vadd.f32 0.0, %v1240
    %v1242 = vpop.f32.mrb[0].mxu0
    %v1243 = vpop.f32.mrb[0].mxu0
    %v1244 = vadd.f32 0.0, %v1243
    %v1245 = vpop.f32.mrb[0].mxu0
    %1246 = vdwg.mxu0
    %v1248 = vsel %vm834, %v1016, 0
    %1250 = vmatprep.subr.bf16.mxu0 0
    %1251 = vmatpush1.bf16.msra.mxu0 %v1024
    %1252 = vmatprep.subr.bf16.mxu0 0
    %1253 = vmatpush1.bf16.msra.mxu0 0
    %1254 = vmatprep.subr.bf16.mxu0 0
    %1255 = vmatpush1.bf16.msra.mxu0 0
    %1256 = vmatprep.subr.bf16.mxu0 0
    %1257 = vmatpush1.bf16.msra.mxu0 0
    %1258 = vmatprep.subr.bf16.mxu0 0
    %1259 = vmatpush1.bf16.msra.mxu0 0
    %1260 = vmatprep.subr.bf16.mxu0 0
    %1261 = vmatpush1.bf16.msra.mxu0 0
    %1262 = vmatprep.subr.bf16.mxu0 0
    %1263 = vmatpush1.bf16.msra.mxu0 0
    %1264 = vmatprep.subr.bf16.mxu0 0
    %1265 = vmatpush1.bf16.msra.mxu0 0
    %1266 = vmatprep.subr.bf16.mxu0 0
    %1267 = vmatpush1.bf16.msra.mxu0 0
    %1268 = vmatprep.subr.bf16.mxu0 0
    %1269 = vmatpush1.bf16.msra.mxu0 0
    %1270 = vmatprep.subr.bf16.mxu0 0
    %1271 = vmatpush1.bf16.msra.mxu0 0
    %1272 = vmatprep.subr.bf16.mxu0 0
    %1273 = vmatpush1.bf16.msra.mxu0 0
    %1274 = vmatprep.subr.bf16.mxu0 0
    %1275 = vmatpush1.bf16.msra.mxu0 0
    %1276 = vmatprep.subr.bf16.mxu0 0
    %1277 = vmatpush1.bf16.msra.mxu0 0
    %1278 = vmatprep.subr.bf16.mxu0 0
    %1279 = vmatpush1.bf16.msra.mxu0 0
    %1280 = vmatprep.subr.bf16.mxu0 0
    %1281 = vmatpush1.bf16.msra.mxu0 0
    %1282 = vmatprep.mubr.bf16.mxu0 0
    %1283 = vmatmul.mubr.bf16.gmra.mrb[0].mxu0 %v1248
    %v1284 = vpop.f32.mrb[0].mxu0
    %v1285 = vadd.f32 0.0, %v1284
    %v1286 = vpop.f32.mrb[0].mxu0
    %v1287 = vpop.f32.mrb[0].mxu0
    %v1288 = vadd.f32 0.0, %v1287
    %v1289 = vpop.f32.mrb[0].mxu0
    %1290 = vdwg.mxu0
    %v1292 = vsel %vm834, %v1017, 0
    %1294 = vmatprep.subr.bf16.mxu0 0
    %1295 = vmatpush1.bf16.msra.mxu0 %v1025
    %1296 = vmatprep.subr.bf16.mxu0 0
    %1297 = vmatpush1.bf16.msra.mxu0 0
    %1298 = vmatprep.subr.bf16.mxu0 0
    %1299 = vmatpush1.bf16.msra.mxu0 0
    %1300 = vmatprep.subr.bf16.mxu0 0
    %1301 = vmatpush1.bf16.msra.mxu0 0
    %1302 = vmatprep.subr.bf16.mxu0 0
    %1303 = vmatpush1.bf16.msra.mxu0 0
    %1304 = vmatprep.subr.bf16.mxu0 0
    %1305 = vmatpush1.bf16.msra.mxu0 0
    %1306 = vmatprep.subr.bf16.mxu0 0
    %1307 = vmatpush1.bf16.msra.mxu0 0
    %1308 = vmatprep.subr.bf16.mxu0 0
    %1309 = vmatpush1.bf16.msra.mxu0 0
    %1310 = vmatprep.subr.bf16.mxu0 0
    %1311 = vmatpush1.bf16.msra.mxu0 0
    %1312 = vmatprep.subr.bf16.mxu0 0
    %1313 = vmatpush1.bf16.msra.mxu0 0
    %1314 = vmatprep.subr.bf16.mxu0 0
    %1315 = vmatpush1.bf16.msra.mxu0 0
    %1316 = vmatprep.subr.bf16.mxu0 0
    %1317 = vmatpush1.bf16.msra.mxu0 0
    %1318 = vmatprep.subr.bf16.mxu0 0
    %1319 = vmatpush1.bf16.msra.mxu0 0
    %1320 = vmatprep.subr.bf16.mxu0 0
    %1321 = vmatpush1.bf16.msra.mxu0 0
    %1322 = vmatprep.subr.bf16.mxu0 0
    %1323 = vmatpush1.bf16.msra.mxu0 0
    %1324 = vmatprep.subr.bf16.mxu0 0
    %1325 = vmatpush1.bf16.msra.mxu0 0
    %1326 = vmatprep.mubr.bf16.mxu0 0
    %1327 = vmatmul.mubr.bf16.gmra.mrb[0].mxu0 %v1292
    %v1328 = vpop.f32.mrb[0].mxu0
    %v1329 = vadd.f32 0.0, %v1328
    %v1330 = vpop.f32.mrb[0].mxu0
    %v1331 = vpop.f32.mrb[0].mxu0
    %v1332 = vadd.f32 0.0, %v1331
    %v1333 = vpop.f32.mrb[0].mxu0
    %1334 = vdwg.mxu0
    %v1336 = vsel %vm834, %v1018, 0
    %1338 = vmatprep.subr.bf16.mxu0 0
    %1339 = vmatpush1.bf16.msra.mxu0 %v1026
    %1340 = vmatprep.subr.bf16.mxu0 0
    %1341 = vmatpush1.bf16.msra.mxu0 0
    %1342 = vmatprep.subr.bf16.mxu0 0
    %1343 = vmatpush1.bf16.msra.mxu0 0
    %1344 = vmatprep.subr.bf16.mxu0 0
    %1345 = vmatpush1.bf16.msra.mxu0 0
    %1346 = vmatprep.subr.bf16.mxu0 0
    %1347 = vmatpush1.bf16.msra.mxu0 0
    %1348 = vmatprep.subr.bf16.mxu0 0
    %1349 = vmatpush1.bf16.msra.mxu0 0
    %1350 = vmatprep.subr.bf16.mxu0 0
    %1351 = vmatpush1.bf16.msra.mxu0 0
    %1352 = vmatprep.subr.bf16.mxu0 0
    %1353 = vmatpush1.bf16.msra.mxu0 0
    %1354 = vmatprep.subr.bf16.mxu0 0
    %1355 = vmatpush1.bf16.msra.mxu0 0
    %1356 = vmatprep.subr.bf16.mxu0 0
    %1357 = vmatpush1.bf16.msra.mxu0 0
    %1358 = vmatprep.subr.bf16.mxu0 0
    %1359 = vmatpush1.bf16.msra.mxu0 0
    %1360 = vmatprep.subr.bf16.mxu0 0
    %1361 = vmatpush1.bf16.msra.mxu0 0
    %1362 = vmatprep.subr.bf16.mxu0 0
    %1363 = vmatpush1.bf16.msra.mxu0 0
    %1364 = vmatprep.subr.bf16.mxu0 0
    %1365 = vmatpush1.bf16.msra.mxu0 0
    %1366 = vmatprep.subr.bf16.mxu0 0
    %1367 = vmatpush1.bf16.msra.mxu0 0
    %1368 = vmatprep.subr.bf16.mxu0 0
    %1369 = vmatpush1.bf16.msra.mxu0 0
    %1370 = vmatprep.mubr.bf16.mxu0 0
    %1371 = vmatmul.mubr.bf16.gmra.mrb[0].mxu0 %v1336
    %v1372 = vpop.f32.mrb[0].mxu0
    %v1373 = vadd.f32 0.0, %v1372
    %v1374 = vpop.f32.mrb[0].mxu0
    %v1375 = vpop.f32.mrb[0].mxu0
    %v1376 = vadd.f32 0.0, %v1375
    %v1377 = vpop.f32.mrb[0].mxu0
    %1378 = vdwg.mxu0
    %v1379 = vmax.f32 %v1065, 0.0
    %v1380 = vmax.f32 %v1068, 0.0
    %v1381 = vmax.f32 %v1109, 0.0
    %v1382 = vmax.f32 %v1112, 0.0
    %v1383 = vmax.f32 %v1153, 0.0
    %v1384 = vmax.f32 %v1156, 0.0
    %v1385 = vmax.f32 %v1197, 0.0
    %v1386 = vmax.f32 %v1200, 0.0
    %v1387 = vmax.f32 %v1241, 0.0
    %v1388 = vmax.f32 %v1244, 0.0
    %v1389 = vmax.f32 %v1285, 0.0
    %v1390 = vmax.f32 %v1288, 0.0
    %v1391 = vmax.f32 %v1329, 0.0
    %v1392 = vmax.f32 %v1332, 0.0
    %v1393 = vmax.f32 %v1373, 0.0
    %v1394 = vmax.f32 %v1376, 0.0
    %v1395 = vpack.c.bf16 %v1380, %v1379
    %v1396 = vpack.c.bf16 %v1382, %v1381
    %v1397 = vpack.c.bf16 %v1384, %v1383
    %v1398 = vpack.c.bf16 %v1386, %v1385
    %v1399 = vpack.c.bf16 %v1388, %v1387
    %v1400 = vpack.c.bf16 %v1390, %v1389
    %v1401 = vpack.c.bf16 %v1392, %v1391
    %v1402 = vpack.c.bf16 %v1394, %v1393
    %v1403 = vld [vmem:[%s4] sm:$0xf]
    %v1404 = vld [vmem:[%s4 + $0x4] sm:$0xf]
    %v1405 = vld [vmem:[%s4 + $0x8] sm:$0xf]
    %v1406 = vld [vmem:[%s4 + $0xc] sm:$0xf]
    %v1411 = vunpack.c.l.b16 %v1403
    %v1412 = vunpack.c.l.b16 %v1404
    %v1413 = vunpack.c.l.b16 %v1405
    %v1414 = vunpack.c.l.b16 %v1406
    %v1415 = vpack.c.b16 %v1412, %v1411
    %v1416 = vpack.c.b16 %v1414, %v1413
    %v1420 = vsel %vm441, %v1395, 0
    %v1423 = vsel %vm441, %v1396, 0
    %v1426 = vsel %vm441, %v1397, 0
    %v1429 = vsel %vm441, %v1398, 0
    %v1432 = vsel %vm441, %v1399, 0
    %v1435 = vsel %vm441, %v1400, 0
    %v1438 = vsel %vm441, %v1401, 0
    %v1441 = vsel %vm441, %v1402, 0
    %1443 = vmatprep.subr.bf16.mxu0 0
    %1444 = vmatpush1.bf16.msra.mxu0 %v1415
    %1445 = vmatprep.subr.bf16.mxu0 0
    %1446 = vmatpush1.bf16.msra.mxu0 %v1416
    %1447 = vmatprep.subr.bf16.mxu0 0
    %1448 = vmatpush1.bf16.msra.mxu0 0
    %1449 = vmatprep.subr.bf16.mxu0 0
    %1450 = vmatpush1.bf16.msra.mxu0 0
    %1451 = vmatprep.subr.bf16.mxu0 0
    %1452 = vmatpush1.bf16.msra.mxu0 0
    %1453 = vmatprep.subr.bf16.mxu0 0
    %1454 = vmatpush1.bf16.msra.mxu0 0
    %1455 = vmatprep.subr.bf16.mxu0 0
    %1456 = vmatpush1.bf16.msra.mxu0 0
    %1457 = vmatprep.subr.bf16.mxu0 0
    %1458 = vmatpush1.bf16.msra.mxu0 0
    %1459 = vmatprep.subr.bf16.mxu0 0
    %1460 = vmatpush1.bf16.msra.mxu0 0
    %1461 = vmatprep.subr.bf16.mxu0 0
    %1462 = vmatpush1.bf16.msra.mxu0 0
    %1463 = vmatprep.subr.bf16.mxu0 0
    %1464 = vmatpush1.bf16.msra.mxu0 0
    %1465 = vmatprep.subr.bf16.mxu0 0
    %1466 = vmatpush1.bf16.msra.mxu0 0
    %1467 = vmatprep.subr.bf16.mxu0 0
    %1468 = vmatpush1.bf16.msra.mxu0 0
    %1469 = vmatprep.subr.bf16.mxu0 0
    %1470 = vmatpush1.bf16.msra.mxu0 0
    %1471 = vmatprep.subr.bf16.mxu0 0
    %1472 = vmatpush1.bf16.msra.mxu0 0
    %1473 = vmatprep.subr.bf16.mxu0 0
    %1474 = vmatpush1.bf16.msra.mxu0 0
    %1475 = vmatprep.mubr.bf16.mxu0 0
    %1476 = vmatmul.mubr.bf16.gmra.mrb[0].mxu0 %v1420
    %v1477 = vpop.f32.mrb[0].mxu0
    %v1478 = vadd.f32 0.0, %v1477
    %v1479 = vpop.f32.mrb[0].mxu0
    %v1480 = vpop.f32.mrb[0].mxu0
    %v1481 = vadd.f32 0.0, %v1480
    %v1482 = vpop.f32.mrb[0].mxu0
    %1483 = vmatprep.mubr.bf16.mxu0 0
    %1484 = vmatmul.mubr.bf16.gmra.mrb[0].mxu0 %v1423
    %v1485 = vpop.f32.mrb[0].mxu0
    %v1486 = vadd.f32 0.0, %v1485
    %v1487 = vpop.f32.mrb[0].mxu0
    %v1488 = vpop.f32.mrb[0].mxu0
    %v1489 = vadd.f32 0.0, %v1488
    %v1490 = vpop.f32.mrb[0].mxu0
    %1491 = vmatprep.mubr.bf16.mxu0 0
    %1492 = vmatmul.mubr.bf16.gmra.mrb[0].mxu0 %v1426
    %v1493 = vpop.f32.mrb[0].mxu0
    %v1494 = vadd.f32 0.0, %v1493
    %v1495 = vpop.f32.mrb[0].mxu0
    %v1496 = vpop.f32.mrb[0].mxu0
    %v1497 = vadd.f32 0.0, %v1496
    %v1498 = vpop.f32.mrb[0].mxu0
    %1499 = vmatprep.mubr.bf16.mxu0 0
    %1500 = vmatmul.mubr.bf16.gmra.mrb[0].mxu0 %v1429
    %v1501 = vpop.f32.mrb[0].mxu0
    %v1502 = vadd.f32 0.0, %v1501
    %v1503 = vpop.f32.mrb[0].mxu0
    %v1504 = vpop.f32.mrb[0].mxu0
    %v1505 = vadd.f32 0.0, %v1504
    %v1506 = vpop.f32.mrb[0].mxu0
    %1507 = vmatprep.mubr.bf16.mxu0 0
    %1508 = vmatmul.mubr.bf16.gmra.mrb[0].mxu0 %v1432
    %v1509 = vpop.f32.mrb[0].mxu0
    %v1510 = vadd.f32 0.0, %v1509
    %v1511 = vpop.f32.mrb[0].mxu0
    %v1512 = vpop.f32.mrb[0].mxu0
    %v1513 = vadd.f32 0.0, %v1512
    %v1514 = vpop.f32.mrb[0].mxu0
    %1515 = vmatprep.mubr.bf16.mxu0 0
    %1516 = vmatmul.mubr.bf16.gmra.mrb[0].mxu0 %v1435
    %v1517 = vpop.f32.mrb[0].mxu0
    %v1518 = vadd.f32 0.0, %v1517
    %v1519 = vpop.f32.mrb[0].mxu0
    %v1520 = vpop.f32.mrb[0].mxu0
    %v1521 = vadd.f32 0.0, %v1520
    %v1522 = vpop.f32.mrb[0].mxu0
    %1523 = vmatprep.mubr.bf16.mxu0 0
    %1524 = vmatmul.mubr.bf16.gmra.mrb[0].mxu0 %v1438
    %v1525 = vpop.f32.mrb[0].mxu0
    %v1526 = vadd.f32 0.0, %v1525
    %v1527 = vpop.f32.mrb[0].mxu0
    %v1528 = vpop.f32.mrb[0].mxu0
    %v1529 = vadd.f32 0.0, %v1528
    %v1530 = vpop.f32.mrb[0].mxu0
    %1531 = vmatprep.mubr.bf16.mxu0 0
    %1532 = vmatmul.mubr.bf16.gmra.mrb[0].mxu0 %v1441
    %v1533 = vpop.f32.mrb[0].mxu0
    %v1534 = vadd.f32 0.0, %v1533
    %v1535 = vpop.f32.mrb[0].mxu0
    %v1536 = vpop.f32.mrb[0].mxu0
    %v1537 = vadd.f32 0.0, %v1536
    %v1538 = vpop.f32.mrb[0].mxu0
    %1539 = vdwg.mxu0
    %v1540 = vld [vmem:[%s5] sm:$0xf]
    %v1541 = vld [vmem:[%s5 + $0x4] sm:$0xf]
    %v1542 = vld [vmem:[%s5 + $0x8] sm:$0xf]
    %v1543 = vld [vmem:[%s5 + $0xc] sm:$0xf]
    %v1548 = vunpack.c.l.b16 %v1540
    %v1549 = vunpack.c.l.b16 %v1541
    %v1550 = vunpack.c.l.b16 %v1542
    %v1551 = vunpack.c.l.b16 %v1543
    %v1552 = vpack.c.b16 %v1549, %v1548
    %v1553 = vpack.c.b16 %v1551, %v1550
    %1556 = vmatprep.subr.bf16.mxu0 0
    %1557 = vmatpush1.bf16.msra.mxu0 %v1552
    %1558 = vmatprep.subr.bf16.mxu0 0
    %1559 = vmatpush1.bf16.msra.mxu0 %v1553
    %1560 = vmatprep.subr.bf16.mxu0 0
    %1561 = vmatpush1.bf16.msra.mxu0 0
    %1562 = vmatprep.subr.bf16.mxu0 0
    %1563 = vmatpush1.bf16.msra.mxu0 0
    %1564 = vmatprep.subr.bf16.mxu0 0
    %1565 = vmatpush1.bf16.msra.mxu0 0
    %1566 = vmatprep.subr.bf16.mxu0 0
    %1567 = vmatpush1.bf16.msra.mxu0 0
    %1568 = vmatprep.subr.bf16.mxu0 0
    %1569 = vmatpush1.bf16.msra.mxu0 0
    %1570 = vmatprep.subr.bf16.mxu0 0
    %1571 = vmatpush1.bf16.msra.mxu0 0
    %1572 = vmatprep.subr.bf16.mxu0 0
    %1573 = vmatpush1.bf16.msra.mxu0 0
    %1574 = vmatprep.subr.bf16.mxu0 0
    %1575 = vmatpush1.bf16.msra.mxu0 0
    %1576 = vmatprep.subr.bf16.mxu0 0
    %1577 = vmatpush1.bf16.msra.mxu0 0
    %1578 = vmatprep.subr.bf16.mxu0 0
    %1579 = vmatpush1.bf16.msra.mxu0 0
    %1580 = vmatprep.subr.bf16.mxu0 0
    %1581 = vmatpush1.bf16.msra.mxu0 0
    %1582 = vmatprep.subr.bf16.mxu0 0
    %1583 = vmatpush1.bf16.msra.mxu0 0
    %1584 = vmatprep.subr.bf16.mxu0 0
    %1585 = vmatpush1.bf16.msra.mxu0 0
    %1586 = vmatprep.subr.bf16.mxu0 0
    %1587 = vmatpush1.bf16.msra.mxu0 0
    %1588 = vmatprep.mubr.bf16.mxu0 0
    %1589 = vmatmul.mubr.bf16.gmra.mrb[0].mxu0 %v1420
    %v1590 = vpop.f32.mrb[0].mxu0
    %v1591 = vadd.f32 0.0, %v1590
    %v1592 = vpop.f32.mrb[0].mxu0
    %v1593 = vpop.f32.mrb[0].mxu0
    %v1594 = vadd.f32 0.0, %v1593
    %v1595 = vpop.f32.mrb[0].mxu0
    %1596 = vmatprep.mubr.bf16.mxu0 0
    %1597 = vmatmul.mubr.bf16.gmra.mrb[0].mxu0 %v1423
    %v1598 = vpop.f32.mrb[0].mxu0
    %v1599 = vadd.f32 0.0, %v1598
    %v1600 = vpop.f32.mrb[0].mxu0
    %v1601 = vpop.f32.mrb[0].mxu0
    %v1602 = vadd.f32 0.0, %v1601
    %v1603 = vpop.f32.mrb[0].mxu0
    %1604 = vmatprep.mubr.bf16.mxu0 0
    %1605 = vmatmul.mubr.bf16.gmra.mrb[0].mxu0 %v1426
    %v1606 = vpop.f32.mrb[0].mxu0
    %v1607 = vadd.f32 0.0, %v1606
    %v1608 = vpop.f32.mrb[0].mxu0
    %v1609 = vpop.f32.mrb[0].mxu0
    %v1610 = vadd.f32 0.0, %v1609
    %v1611 = vpop.f32.mrb[0].mxu0
    %1612 = vmatprep.mubr.bf16.mxu0 0
    %1613 = vmatmul.mubr.bf16.gmra.mrb[0].mxu0 %v1429
    %v1614 = vpop.f32.mrb[0].mxu0
    %v1615 = vadd.f32 0.0, %v1614
    %v1616 = vpop.f32.mrb[0].mxu0
    %v1617 = vpop.f32.mrb[0].mxu0
    %v1618 = vadd.f32 0.0, %v1617
    %v1619 = vpop.f32.mrb[0].mxu0
    %1620 = vmatprep.mubr.bf16.mxu0 0
    %1621 = vmatmul.mubr.bf16.gmra.mrb[0].mxu0 %v1432
    %v1622 = vpop.f32.mrb[0].mxu0
    %v1623 = vadd.f32 0.0, %v1622
    %v1624 = vpop.f32.mrb[0].mxu0
    %v1625 = vpop.f32.mrb[0].mxu0
    %v1626 = vadd.f32 0.0, %v1625
    %v1627 = vpop.f32.mrb[0].mxu0
    %1628 = vmatprep.mubr.bf16.mxu0 0
    %1629 = vmatmul.mubr.bf16.gmra.mrb[0].mxu0 %v1435
    %v1630 = vpop.f32.mrb[0].mxu0
    %v1631 = vadd.f32 0.0, %v1630
    %v1632 = vpop.f32.mrb[0].mxu0
    %v1633 = vpop.f32.mrb[0].mxu0
    %v1634 = vadd.f32 0.0, %v1633
    %v1635 = vpop.f32.mrb[0].mxu0
    %1636 = vmatprep.mubr.bf16.mxu0 0
    %1637 = vmatmul.mubr.bf16.gmra.mrb[0].mxu0 %v1438
    %v1638 = vpop.f32.mrb[0].mxu0
    %v1639 = vadd.f32 0.0, %v1638
    %v1640 = vpop.f32.mrb[0].mxu0
    %v1641 = vpop.f32.mrb[0].mxu0
    %v1642 = vadd.f32 0.0, %v1641
    %v1643 = vpop.f32.mrb[0].mxu0
    %1644 = vmatprep.mubr.bf16.mxu0 0
    %1645 = vmatmul.mubr.bf16.gmra.mrb[0].mxu0 %v1441
    %v1646 = vpop.f32.mrb[0].mxu0
    %v1647 = vadd.f32 0.0, %v1646
    %v1648 = vpop.f32.mrb[0].mxu0
    %v1649 = vpop.f32.mrb[0].mxu0
    %v1650 = vadd.f32 0.0, %v1649
    %v1651 = vpop.f32.mrb[0].mxu0
    %1652 = vdwg.mxu0
    %v1653 = vld [vmem:[%s6] sm:$0xf]
    %v1654 = vld [vmem:[%s6 + $0x4] sm:$0xf]
    %v1655 = vld [vmem:[%s6 + $0x8] sm:$0xf]
    %v1656 = vld [vmem:[%s6 + $0xc] sm:$0xf]
    %v1661 = vunpack.c.l.b16 %v1653
    %v1662 = vunpack.c.l.b16 %v1654
    %v1663 = vunpack.c.l.b16 %v1655
    %v1664 = vunpack.c.l.b16 %v1656
    %v1665 = vpack.c.b16 %v1662, %v1661
    %v1666 = vpack.c.b16 %v1664, %v1663
    %1669 = vmatprep.subr.bf16.mxu0 0
    %1670 = vmatpush1.bf16.msra.mxu0 %v1665
    %1671 = vmatprep.subr.bf16.mxu0 0
    %1672 = vmatpush1.bf16.msra.mxu0 %v1666
    %1673 = vmatprep.subr.bf16.mxu0 0
    %1674 = vmatpush1.bf16.msra.mxu0 0
    %1675 = vmatprep.subr.bf16.mxu0 0
    %1676 = vmatpush1.bf16.msra.mxu0 0
    %1677 = vmatprep.subr.bf16.mxu0 0
    %1678 = vmatpush1.bf16.msra.mxu0 0
    %1679 = vmatprep.subr.bf16.mxu0 0
    %1680 = vmatpush1.bf16.msra.mxu0 0
    %1681 = vmatprep.subr.bf16.mxu0 0
    %1682 = vmatpush1.bf16.msra.mxu0 0
    %1683 = vmatprep.subr.bf16.mxu0 0
    %1684 = vmatpush1.bf16.msra.mxu0 0
    %1685 = vmatprep.subr.bf16.mxu0 0
    %1686 = vmatpush1.bf16.msra.mxu0 0
    %1687 = vmatprep.subr.bf16.mxu0 0
    %1688 = vmatpush1.bf16.msra.mxu0 0
    %1689 = vmatprep.subr.bf16.mxu0 0
    %1690 = vmatpush1.bf16.msra.mxu0 0
    %1691 = vmatprep.subr.bf16.mxu0 0
    %1692 = vmatpush1.bf16.msra.mxu0 0
    %1693 = vmatprep.subr.bf16.mxu0 0
    %1694 = vmatpush1.bf16.msra.mxu0 0
    %1695 = vmatprep.subr.bf16.mxu0 0
    %1696 = vmatpush1.bf16.msra.mxu0 0
    %1697 = vmatprep.subr.bf16.mxu0 0
    %1698 = vmatpush1.bf16.msra.mxu0 0
    %1699 = vmatprep.subr.bf16.mxu0 0
    %1700 = vmatpush1.bf16.msra.mxu0 0
    %1701 = vmatprep.mubr.bf16.mxu0 0
    %1702 = vmatmul.mubr.bf16.gmra.mrb[0].mxu0 %v1420
    %v1703 = vpop.f32.mrb[0].mxu0
    %v1704 = vadd.f32 0.0, %v1703
    %v1705 = vpop.f32.mrb[0].mxu0
    %v1706 = vpop.f32.mrb[0].mxu0
    %v1707 = vadd.f32 0.0, %v1706
    %v1708 = vpop.f32.mrb[0].mxu0
    %1709 = vmatprep.mubr.bf16.mxu0 0
    %1710 = vmatmul.mubr.bf16.gmra.mrb[0].mxu0 %v1423
    %v1711 = vpop.f32.mrb[0].mxu0
    %v1712 = vadd.f32 0.0, %v1711
    %v1713 = vpop.f32.mrb[0].mxu0
    %v1714 = vpop.f32.mrb[0].mxu0
    %v1715 = vadd.f32 0.0, %v1714
    %v1716 = vpop.f32.mrb[0].mxu0
    %1717 = vmatprep.mubr.bf16.mxu0 0
    %1718 = vmatmul.mubr.bf16.gmra.mrb[0].mxu0 %v1426
    %v1719 = vpop.f32.mrb[0].mxu0
    %v1720 = vadd.f32 0.0, %v1719
    %v1721 = vpop.f32.mrb[0].mxu0
    %v1722 = vpop.f32.mrb[0].mxu0
    %v1723 = vadd.f32 0.0, %v1722
    %v1724 = vpop.f32.mrb[0].mxu0
    %1725 = vmatprep.mubr.bf16.mxu0 0
    %1726 = vmatmul.mubr.bf16.gmra.mrb[0].mxu0 %v1429
    %v1727 = vpop.f32.mrb[0].mxu0
    %v1728 = vadd.f32 0.0, %v1727
    %v1729 = vpop.f32.mrb[0].mxu0
    %v1730 = vpop.f32.mrb[0].mxu0
    %v1731 = vadd.f32 0.0, %v1730
    %v1732 = vpop.f32.mrb[0].mxu0
    %1733 = vmatprep.mubr.bf16.mxu0 0
    %1734 = vmatmul.mubr.bf16.gmra.mrb[0].mxu0 %v1432
    %v1735 = vpop.f32.mrb[0].mxu0
    %v1736 = vadd.f32 0.0, %v1735
    %v1737 = vpop.f32.mrb[0].mxu0
    %v1738 = vpop.f32.mrb[0].mxu0
    %v1739 = vadd.f32 0.0, %v1738
    %v1740 = vpop.f32.mrb[0].mxu0
    %1741 = vmatprep.mubr.bf16.mxu0 0
    %1742 = vmatmul.mubr.bf16.gmra.mrb[0].mxu0 %v1435
    %v1743 = vpop.f32.mrb[0].mxu0
    %v1744 = vadd.f32 0.0, %v1743
    %v1745 = vpop.f32.mrb[0].mxu0
    %v1746 = vpop.f32.mrb[0].mxu0
    %v1747 = vadd.f32 0.0, %v1746
    %v1748 = vpop.f32.mrb[0].mxu0
    %1749 = vmatprep.mubr.bf16.mxu0 0
    %1750 = vmatmul.mubr.bf16.gmra.mrb[0].mxu0 %v1438
    %v1751 = vpop.f32.mrb[0].mxu0
    %v1752 = vadd.f32 0.0, %v1751
    %v1753 = vpop.f32.mrb[0].mxu0
    %v1754 = vpop.f32.mrb[0].mxu0
    %v1755 = vadd.f32 0.0, %v1754
    %v1756 = vpop.f32.mrb[0].mxu0
    %1757 = vmatprep.mubr.bf16.mxu0 0
    %1758 = vmatmul.mubr.bf16.gmra.mrb[0].mxu0 %v1441
    %v1759 = vpop.f32.mrb[0].mxu0
    %v1760 = vadd.f32 0.0, %v1759
    %v1761 = vpop.f32.mrb[0].mxu0
    %v1762 = vpop.f32.mrb[0].mxu0
    %v1763 = vadd.f32 0.0, %v1762
    %v1764 = vpop.f32.mrb[0].mxu0
    %1765 = vdwg.mxu0
    %v1766 = vpack.c.bf16 %v1481, %v1478
    %v1767 = vpack.c.bf16 %v1489, %v1486
    %v1768 = vpack.c.bf16 %v1497, %v1494
    %v1769 = vpack.c.bf16 %v1505, %v1502
    %v1770 = vpack.c.bf16 %v1513, %v1510
    %v1771 = vpack.c.bf16 %v1521, %v1518
    %v1772 = vpack.c.bf16 %v1529, %v1526
    %v1773 = vpack.c.bf16 %v1537, %v1534
    %v1774 = vpack.c.bf16 %v1594, %v1591
    %v1775 = vpack.c.bf16 %v1602, %v1599
    %v1776 = vpack.c.bf16 %v1610, %v1607
    %v1777 = vpack.c.bf16 %v1618, %v1615
    %v1778 = vpack.c.bf16 %v1626, %v1623
    %v1779 = vpack.c.bf16 %v1634, %v1631
    %v1780 = vpack.c.bf16 %v1642, %v1639
    %v1781 = vpack.c.bf16 %v1650, %v1647
    %v1783 = vsel %vm441, %v1766, 0
    %v1786 = vsel %vm441, %v1774, 0
    %1788 = vmatprep.subr.bf16.mxu0 0
    %1789 = vmatpush1.bf16.xpose.msra.mxu0 %v1786
    %1790 = vmatprep.subr.bf16.mxu0 0
    %1791 = vmatpush1.bf16.xpose.msra.mxu0 0
    %1792 = vmatprep.subr.bf16.mxu0 0
    %1793 = vmatpush1.bf16.xpose.msra.mxu0 0
    %1794 = vmatprep.subr.bf16.mxu0 0
    %1795 = vmatpush1.bf16.xpose.msra.mxu0 0
    %1796 = vmatprep.subr.bf16.mxu0 0
    %1797 = vmatpush1.bf16.xpose.msra.mxu0 0
    %1798 = vmatprep.subr.bf16.mxu0 0
    %1799 = vmatpush1.bf16.xpose.msra.mxu0 0
    %1800 = vmatprep.subr.bf16.mxu0 0
    %1801 = vmatpush1.bf16.xpose.msra.mxu0 0
    %1802 = vmatprep.subr.bf16.mxu0 0
    %1803 = vmatpush1.bf16.xpose.msra.mxu0 0
    %1804 = vmatprep.subr.bf16.mxu0 0
    %1805 = vmatpush1.bf16.xpose.msra.mxu0 0
    %1806 = vmatprep.subr.bf16.mxu0 0
    %1807 = vmatpush1.bf16.xpose.msra.mxu0 0
    %1808 = vmatprep.subr.bf16.mxu0 0
    %1809 = vmatpush1.bf16.xpose.msra.mxu0 0
    %1810 = vmatprep.subr.bf16.mxu0 0
    %1811 = vmatpush1.bf16.xpose.msra.mxu0 0
    %1812 = vmatprep.subr.bf16.mxu0 0
    %1813 = vmatpush1.bf16.xpose.msra.mxu0 0
    %1814 = vmatprep.subr.bf16.mxu0 0
    %1815 = vmatpush1.bf16.xpose.msra.mxu0 0
    %1816 = vmatprep.subr.bf16.mxu0 0
    %1817 = vmatpush1.bf16.xpose.msra.mxu0 0
    %1818 = vmatprep.subr.bf16.mxu0 0
    %1819 = vmatpush1.bf16.xpose.msra.mxu0 0
    %1820 = vmatprep.mubr.bf16.mxu0 0
    %1821 = vmatmul.mubr.bf16.gmra.mrb[0].mxu0 %v1783
    %v1822 = vpop.f32.mrb[0].mxu0
    %v1823 = vadd.f32 0.0, %v1822
    %v1824 = vpop.f32.mrb[0].mxu0
    %v1825 = vpop.f32.mrb[0].mxu0
    %v1826 = vadd.f32 0.0, %v1825
    %v1827 = vpop.f32.mrb[0].mxu0
    %1828 = vdwg.mxu0
    %v1830 = vsel %vm441, %v1767, 0
    %v1833 = vsel %vm441, %v1775, 0
    %1835 = vmatprep.subr.bf16.mxu0 0
    %1836 = vmatpush1.bf16.xpose.msra.mxu0 %v1833
    %1837 = vmatprep.subr.bf16.mxu0 0
    %1838 = vmatpush1.bf16.xpose.msra.mxu0 0
    %1839 = vmatprep.subr.bf16.mxu0 0
    %1840 = vmatpush1.bf16.xpose.msra.mxu0 0
    %1841 = vmatprep.subr.bf16.mxu0 0
    %1842 = vmatpush1.bf16.xpose.msra.mxu0 0
    %1843 = vmatprep.subr.bf16.mxu0 0
    %1844 = vmatpush1.bf16.xpose.msra.mxu0 0
    %1845 = vmatprep.subr.bf16.mxu0 0
    %1846 = vmatpush1.bf16.xpose.msra.mxu0 0
    %1847 = vmatprep.subr.bf16.mxu0 0
    %1848 = vmatpush1.bf16.xpose.msra.mxu0 0
    %1849 = vmatprep.subr.bf16.mxu0 0
    %1850 = vmatpush1.bf16.xpose.msra.mxu0 0
    %1851 = vmatprep.subr.bf16.mxu0 0
    %1852 = vmatpush1.bf16.xpose.msra.mxu0 0
    %1853 = vmatprep.subr.bf16.mxu0 0
    %1854 = vmatpush1.bf16.xpose.msra.mxu0 0
    %1855 = vmatprep.subr.bf16.mxu0 0
    %1856 = vmatpush1.bf16.xpose.msra.mxu0 0
    %1857 = vmatprep.subr.bf16.mxu0 0
    %1858 = vmatpush1.bf16.xpose.msra.mxu0 0
    %1859 = vmatprep.subr.bf16.mxu0 0
    %1860 = vmatpush1.bf16.xpose.msra.mxu0 0
    %1861 = vmatprep.subr.bf16.mxu0 0
    %1862 = vmatpush1.bf16.xpose.msra.mxu0 0
    %1863 = vmatprep.subr.bf16.mxu0 0
    %1864 = vmatpush1.bf16.xpose.msra.mxu0 0
    %1865 = vmatprep.subr.bf16.mxu0 0
    %1866 = vmatpush1.bf16.xpose.msra.mxu0 0
    %1867 = vmatprep.mubr.bf16.mxu0 0
    %1868 = vmatmul.mubr.bf16.gmra.mrb[0].mxu0 %v1830
    %v1869 = vpop.f32.mrb[0].mxu0
    %v1870 = vadd.f32 0.0, %v1869
    %v1871 = vpop.f32.mrb[0].mxu0
    %v1872 = vpop.f32.mrb[0].mxu0
    %v1873 = vadd.f32 0.0, %v1872
    %v1874 = vpop.f32.mrb[0].mxu0
    %1875 = vdwg.mxu0
    %v1877 = vsel %vm441, %v1768, 0
    %v1880 = vsel %vm441, %v1776, 0
    %1882 = vmatprep.subr.bf16.mxu0 0
    %1883 = vmatpush1.bf16.xpose.msra.mxu0 %v1880
    %1884 = vmatprep.subr.bf16.mxu0 0
    %1885 = vmatpush1.bf16.xpose.msra.mxu0 0
    %1886 = vmatprep.subr.bf16.mxu0 0
    %1887 = vmatpush1.bf16.xpose.msra.mxu0 0
    %1888 = vmatprep.subr.bf16.mxu0 0
    %1889 = vmatpush1.bf16.xpose.msra.mxu0 0
    %1890 = vmatprep.subr.bf16.mxu0 0
    %1891 = vmatpush1.bf16.xpose.msra.mxu0 0
    %1892 = vmatprep.subr.bf16.mxu0 0
    %1893 = vmatpush1.bf16.xpose.msra.mxu0 0
    %1894 = vmatprep.subr.bf16.mxu0 0
    %1895 = vmatpush1.bf16.xpose.msra.mxu0 0
    %1896 = vmatprep.subr.bf16.mxu0 0
    %1897 = vmatpush1.bf16.xpose.msra.mxu0 0
    %1898 = vmatprep.subr.bf16.mxu0 0
    %1899 = vmatpush1.bf16.xpose.msra.mxu0 0
    %1900 = vmatprep.subr.bf16.mxu0 0
    %1901 = vmatpush1.bf16.xpose.msra.mxu0 0
    %1902 = vmatprep.subr.bf16.mxu0 0
    %1903 = vmatpush1.bf16.xpose.msra.mxu0 0
    %1904 = vmatprep.subr.bf16.mxu0 0
    %1905 = vmatpush1.bf16.xpose.msra.mxu0 0
    %1906 = vmatprep.subr.bf16.mxu0 0
    %1907 = vmatpush1.bf16.xpose.msra.mxu0 0
    %1908 = vmatprep.subr.bf16.mxu0 0
    %1909 = vmatpush1.bf16.xpose.msra.mxu0 0
    %1910 = vmatprep.subr.bf16.mxu0 0
    %1911 = vmatpush1.bf16.xpose.msra.mxu0 0
    %1912 = vmatprep.subr.bf16.mxu0 0
    %1913 = vmatpush1.bf16.xpose.msra.mxu0 0
    %1914 = vmatprep.mubr.bf16.mxu0 0
    %1915 = vmatmul.mubr.bf16.gmra.mrb[0].mxu0 %v1877
    %v1916 = vpop.f32.mrb[0].mxu0
    %v1917 = vadd.f32 0.0, %v1916
    %v1918 = vpop.f32.mrb[0].mxu0
    %v1919 = vpop.f32.mrb[0].mxu0
    %v1920 = vadd.f32 0.0, %v1919
    %v1921 = vpop.f32.mrb[0].mxu0
    %1922 = vdwg.mxu0
    %v1924 = vsel %vm441, %v1769, 0
    %v1927 = vsel %vm441, %v1777, 0
    %1929 = vmatprep.subr.bf16.mxu0 0
    %1930 = vmatpush1.bf16.xpose.msra.mxu0 %v1927
    %1931 = vmatprep.subr.bf16.mxu0 0
    %1932 = vmatpush1.bf16.xpose.msra.mxu0 0
    %1933 = vmatprep.subr.bf16.mxu0 0
    %1934 = vmatpush1.bf16.xpose.msra.mxu0 0
    %1935 = vmatprep.subr.bf16.mxu0 0
    %1936 = vmatpush1.bf16.xpose.msra.mxu0 0
    %1937 = vmatprep.subr.bf16.mxu0 0
    %1938 = vmatpush1.bf16.xpose.msra.mxu0 0
    %1939 = vmatprep.subr.bf16.mxu0 0
    %1940 = vmatpush1.bf16.xpose.msra.mxu0 0
    %1941 = vmatprep.subr.bf16.mxu0 0
    %1942 = vmatpush1.bf16.xpose.msra.mxu0 0
    %1943 = vmatprep.subr.bf16.mxu0 0
    %1944 = vmatpush1.bf16.xpose.msra.mxu0 0
    %1945 = vmatprep.subr.bf16.mxu0 0
    %1946 = vmatpush1.bf16.xpose.msra.mxu0 0
    %1947 = vmatprep.subr.bf16.mxu0 0
    %1948 = vmatpush1.bf16.xpose.msra.mxu0 0
    %1949 = vmatprep.subr.bf16.mxu0 0
    %1950 = vmatpush1.bf16.xpose.msra.mxu0 0
    %1951 = vmatprep.subr.bf16.mxu0 0
    %1952 = vmatpush1.bf16.xpose.msra.mxu0 0
    %1953 = vmatprep.subr.bf16.mxu0 0
    %1954 = vmatpush1.bf16.xpose.msra.mxu0 0
    %1955 = vmatprep.subr.bf16.mxu0 0
    %1956 = vmatpush1.bf16.xpose.msra.mxu0 0
    %1957 = vmatprep.subr.bf16.mxu0 0
    %1958 = vmatpush1.bf16.xpose.msra.mxu0 0
    %1959 = vmatprep.subr.bf16.mxu0 0
    %1960 = vmatpush1.bf16.xpose.msra.mxu0 0
    %1961 = vmatprep.mubr.bf16.mxu0 0
    %1962 = vmatmul.mubr.bf16.gmra.mrb[0].mxu0 %v1924
    %v1963 = vpop.f32.mrb[0].mxu0
    %v1964 = vadd.f32 0.0, %v1963
    %v1965 = vpop.f32.mrb[0].mxu0
    %v1966 = vpop.f32.mrb[0].mxu0
    %v1967 = vadd.f32 0.0, %v1966
    %v1968 = vpop.f32.mrb[0].mxu0
    %1969 = vdwg.mxu0
    %v1971 = vsel %vm441, %v1770, 0
    %v1974 = vsel %vm441, %v1778, 0
    %1976 = vmatprep.subr.bf16.mxu0 0
    %1977 = vmatpush1.bf16.xpose.msra.mxu0 %v1974
    %1978 = vmatprep.subr.bf16.mxu0 0
    %1979 = vmatpush1.bf16.xpose.msra.mxu0 0
    %1980 = vmatprep.subr.bf16.mxu0 0
    %1981 = vmatpush1.bf16.xpose.msra.mxu0 0
    %1982 = vmatprep.subr.bf16.mxu0 0
    %1983 = vmatpush1.bf16.xpose.msra.mxu0 0
    %1984 = vmatprep.subr.bf16.mxu0 0
    %1985 = vmatpush1.bf16.xpose.msra.mxu0 0
    %1986 = vmatprep.subr.bf16.mxu0 0
    %1987 = vmatpush1.bf16.xpose.msra.mxu0 0
    %1988 = vmatprep.subr.bf16.mxu0 0
    %1989 = vmatpush1.bf16.xpose.msra.mxu0 0
    %1990 = vmatprep.subr.bf16.mxu0 0
    %1991 = vmatpush1.bf16.xpose.msra.mxu0 0
    %1992 = vmatprep.subr.bf16.mxu0 0
    %1993 = vmatpush1.bf16.xpose.msra.mxu0 0
    %1994 = vmatprep.subr.bf16.mxu0 0
    %1995 = vmatpush1.bf16.xpose.msra.mxu0 0
    %1996 = vmatprep.subr.bf16.mxu0 0
    %1997 = vmatpush1.bf16.xpose.msra.mxu0 0
    %1998 = vmatprep.subr.bf16.mxu0 0
    %1999 = vmatpush1.bf16.xpose.msra.mxu0 0
    %2000 = vmatprep.subr.bf16.mxu0 0
    %2001 = vmatpush1.bf16.xpose.msra.mxu0 0
    %2002 = vmatprep.subr.bf16.mxu0 0
    %2003 = vmatpush1.bf16.xpose.msra.mxu0 0
    %2004 = vmatprep.subr.bf16.mxu0 0
    %2005 = vmatpush1.bf16.xpose.msra.mxu0 0
    %2006 = vmatprep.subr.bf16.mxu0 0
    %2007 = vmatpush1.bf16.xpose.msra.mxu0 0
    %2008 = vmatprep.mubr.bf16.mxu0 0
    %2009 = vmatmul.mubr.bf16.gmra.mrb[0].mxu0 %v1971
    %v2010 = vpop.f32.mrb[0].mxu0
    %v2011 = vadd.f32 0.0, %v2010
    %v2012 = vpop.f32.mrb[0].mxu0
    %v2013 = vpop.f32.mrb[0].mxu0
    %v2014 = vadd.f32 0.0, %v2013
    %v2015 = vpop.f32.mrb[0].mxu0
    %2016 = vdwg.mxu0
    %v2018 = vsel %vm441, %v1771, 0
    %v2021 = vsel %vm441, %v1779, 0
    %2023 = vmatprep.subr.bf16.mxu0 0
    %2024 = vmatpush1.bf16.xpose.msra.mxu0 %v2021
    %2025 = vmatprep.subr.bf16.mxu0 0
    %2026 = vmatpush1.bf16.xpose.msra.mxu0 0
    %2027 = vmatprep.subr.bf16.mxu0 0
    %2028 = vmatpush1.bf16.xpose.msra.mxu0 0
    %2029 = vmatprep.subr.bf16.mxu0 0
    %2030 = vmatpush1.bf16.xpose.msra.mxu0 0
    %2031 = vmatprep.subr.bf16.mxu0 0
    %2032 = vmatpush1.bf16.xpose.msra.mxu0 0
    %2033 = vmatprep.subr.bf16.mxu0 0
    %2034 = vmatpush1.bf16.xpose.msra.mxu0 0
    %2035 = vmatprep.subr.bf16.mxu0 0
    %2036 = vmatpush1.bf16.xpose.msra.mxu0 0
    %2037 = vmatprep.subr.bf16.mxu0 0
    %2038 = vmatpush1.bf16.xpose.msra.mxu0 0
    %2039 = vmatprep.subr.bf16.mxu0 0
    %2040 = vmatpush1.bf16.xpose.msra.mxu0 0
    %2041 = vmatprep.subr.bf16.mxu0 0
    %2042 = vmatpush1.bf16.xpose.msra.mxu0 0
    %2043 = vmatprep.subr.bf16.mxu0 0
    %2044 = vmatpush1.bf16.xpose.msra.mxu0 0
    %2045 = vmatprep.subr.bf16.mxu0 0
    %2046 = vmatpush1.bf16.xpose.msra.mxu0 0
    %2047 = vmatprep.subr.bf16.mxu0 0
    %2048 = vmatpush1.bf16.xpose.msra.mxu0 0
    %2049 = vmatprep.subr.bf16.mxu0 0
    %2050 = vmatpush1.bf16.xpose.msra.mxu0 0
    %2051 = vmatprep.subr.bf16.mxu0 0
    %2052 = vmatpush1.bf16.xpose.msra.mxu0 0
    %2053 = vmatprep.subr.bf16.mxu0 0
    %2054 = vmatpush1.bf16.xpose.msra.mxu0 0
    %2055 = vmatprep.mubr.bf16.mxu0 0
    %2056 = vmatmul.mubr.bf16.gmra.mrb[0].mxu0 %v2018
    %v2057 = vpop.f32.mrb[0].mxu0
    %v2058 = vadd.f32 0.0, %v2057
    %v2059 = vpop.f32.mrb[0].mxu0
    %v2060 = vpop.f32.mrb[0].mxu0
    %v2061 = vadd.f32 0.0, %v2060
    %v2062 = vpop.f32.mrb[0].mxu0
    %2063 = vdwg.mxu0
    %v2065 = vsel %vm441, %v1772, 0
    %v2068 = vsel %vm441, %v1780, 0
    %2070 = vmatprep.subr.bf16.mxu0 0
    %2071 = vmatpush1.bf16.xpose.msra.mxu0 %v2068
    %2072 = vmatprep.subr.bf16.mxu0 0
    %2073 = vmatpush1.bf16.xpose.msra.mxu0 0
    %2074 = vmatprep.subr.bf16.mxu0 0
    %2075 = vmatpush1.bf16.xpose.msra.mxu0 0
    %2076 = vmatprep.subr.bf16.mxu0 0
    %2077 = vmatpush1.bf16.xpose.msra.mxu0 0
    %2078 = vmatprep.subr.bf16.mxu0 0
    %2079 = vmatpush1.bf16.xpose.msra.mxu0 0
    %2080 = vmatprep.subr.bf16.mxu0 0
    %2081 = vmatpush1.bf16.xpose.msra.mxu0 0
    %2082 = vmatprep.subr.bf16.mxu0 0
    %2083 = vmatpush1.bf16.xpose.msra.mxu0 0
    %2084 = vmatprep.subr.bf16.mxu0 0
    %2085 = vmatpush1.bf16.xpose.msra.mxu0 0
    %2086 = vmatprep.subr.bf16.mxu0 0
    %2087 = vmatpush1.bf16.xpose.msra.mxu0 0
    %2088 = vmatprep.subr.bf16.mxu0 0
    %2089 = vmatpush1.bf16.xpose.msra.mxu0 0
    %2090 = vmatprep.subr.bf16.mxu0 0
    %2091 = vmatpush1.bf16.xpose.msra.mxu0 0
    %2092 = vmatprep.subr.bf16.mxu0 0
    %2093 = vmatpush1.bf16.xpose.msra.mxu0 0
    %2094 = vmatprep.subr.bf16.mxu0 0
    %2095 = vmatpush1.bf16.xpose.msra.mxu0 0
    %2096 = vmatprep.subr.bf16.mxu0 0
    %2097 = vmatpush1.bf16.xpose.msra.mxu0 0
    %2098 = vmatprep.subr.bf16.mxu0 0
    %2099 = vmatpush1.bf16.xpose.msra.mxu0 0
    %2100 = vmatprep.subr.bf16.mxu0 0
    %2101 = vmatpush1.bf16.xpose.msra.mxu0 0
    %2102 = vmatprep.mubr.bf16.mxu0 0
    %2103 = vmatmul.mubr.bf16.gmra.mrb[0].mxu0 %v2065
    %v2104 = vpop.f32.mrb[0].mxu0
    %v2105 = vadd.f32 0.0, %v2104
    %v2106 = vpop.f32.mrb[0].mxu0
    %v2107 = vpop.f32.mrb[0].mxu0
    %v2108 = vadd.f32 0.0, %v2107
    %v2109 = vpop.f32.mrb[0].mxu0
    %2110 = vdwg.mxu0
    %v2112 = vsel %vm441, %v1773, 0
    %v2115 = vsel %vm441, %v1781, 0
    %2117 = vmatprep.subr.bf16.mxu0 0
    %2118 = vmatpush1.bf16.xpose.msra.mxu0 %v2115
    %2119 = vmatprep.subr.bf16.mxu0 0
    %2120 = vmatpush1.bf16.xpose.msra.mxu0 0
    %2121 = vmatprep.subr.bf16.mxu0 0
    %2122 = vmatpush1.bf16.xpose.msra.mxu0 0
    %2123 = vmatprep.subr.bf16.mxu0 0
    %2124 = vmatpush1.bf16.xpose.msra.mxu0 0
    %2125 = vmatprep.subr.bf16.mxu0 0
    %2126 = vmatpush1.bf16.xpose.msra.mxu0 0
    %2127 = vmatprep.subr.bf16.mxu0 0
    %2128 = vmatpush1.bf16.xpose.msra.mxu0 0
    %2129 = vmatprep.subr.bf16.mxu0 0
    %2130 = vmatpush1.bf16.xpose.msra.mxu0 0
    %2131 = vmatprep.subr.bf16.mxu0 0
    %2132 = vmatpush1.bf16.xpose.msra.mxu0 0
    %2133 = vmatprep.subr.bf16.mxu0 0
    %2134 = vmatpush1.bf16.xpose.msra.mxu0 0
    %2135 = vmatprep.subr.bf16.mxu0 0
    %2136 = vmatpush1.bf16.xpose.msra.mxu0 0
    %2137 = vmatprep.subr.bf16.mxu0 0
    %2138 = vmatpush1.bf16.xpose.msra.mxu0 0
    %2139 = vmatprep.subr.bf16.mxu0 0
    %2140 = vmatpush1.bf16.xpose.msra.mxu0 0
    %2141 = vmatprep.subr.bf16.mxu0 0
    %2142 = vmatpush1.bf16.xpose.msra.mxu0 0
    %2143 = vmatprep.subr.bf16.mxu0 0
    %2144 = vmatpush1.bf16.xpose.msra.mxu0 0
    %2145 = vmatprep.subr.bf16.mxu0 0
    %2146 = vmatpush1.bf16.xpose.msra.mxu0 0
    %2147 = vmatprep.subr.bf16.mxu0 0
    %2148 = vmatpush1.bf16.xpose.msra.mxu0 0
    %2149 = vmatprep.mubr.bf16.mxu0 0
    %2150 = vmatmul.mubr.bf16.gmra.mrb[0].mxu0 %v2112
    %v2151 = vpop.f32.mrb[0].mxu0
    %v2152 = vadd.f32 0.0, %v2151
    %v2153 = vpop.f32.mrb[0].mxu0
    %v2154 = vpop.f32.mrb[0].mxu0
    %v2155 = vadd.f32 0.0, %v2154
    %v2156 = vpop.f32.mrb[0].mxu0
    %2157 = vdwg.mxu0
    %v2158 = vmul.f32 %v1823, 0.17677669
    %v2159 = vmul.f32 %v1826, 0.17677669
    %v2160 = vmul.f32 %v1870, 0.17677669
    %v2161 = vmul.f32 %v1873, 0.17677669
    %v2162 = vmul.f32 %v1917, 0.17677669
    %v2163 = vmul.f32 %v1920, 0.17677669
    %v2164 = vmul.f32 %v1964, 0.17677669
    %v2165 = vmul.f32 %v1967, 0.17677669
    %v2166 = vmul.f32 %v2011, 0.17677669
    %v2167 = vmul.f32 %v2014, 0.17677669
    %v2168 = vmul.f32 %v2058, 0.17677669
    %v2169 = vmul.f32 %v2061, 0.17677669
    %v2170 = vmul.f32 %v2105, 0.17677669
    %v2171 = vmul.f32 %v2108, 0.17677669
    %v2172 = vmul.f32 %v2152, 0.17677669
    %v2173 = vmul.f32 %v2155, 0.17677669
    %v2174 = vsel %vm834, %v2158, -inf
    %2175 = vmax.xlane.f32.xlu0 %v2174
    %v2176 = vpop.xlane.xlu0 %2175
    %v2177 = vsel %vm834, %v2159, -inf
    %2178 = vmax.xlane.f32.xlu0 %v2177
    %v2179 = vpop.xlane.xlu0 %2178
    %v2180 = vsel %vm834, %v2160, -inf
    %2181 = vmax.xlane.f32.xlu0 %v2180
    %v2182 = vpop.xlane.xlu0 %2181
    %v2183 = vsel %vm834, %v2161, -inf
    %2184 = vmax.xlane.f32.xlu0 %v2183
    %v2185 = vpop.xlane.xlu0 %2184
    %v2186 = vsel %vm834, %v2162, -inf
    %2187 = vmax.xlane.f32.xlu0 %v2186
    %v2188 = vpop.xlane.xlu0 %2187
    %v2189 = vsel %vm834, %v2163, -inf
    %2190 = vmax.xlane.f32.xlu0 %v2189
    %v2191 = vpop.xlane.xlu0 %2190
    %v2192 = vsel %vm834, %v2164, -inf
    %2193 = vmax.xlane.f32.xlu0 %v2192
    %v2194 = vpop.xlane.xlu0 %2193
    %v2195 = vsel %vm834, %v2165, -inf
    %2196 = vmax.xlane.f32.xlu0 %v2195
    %v2197 = vpop.xlane.xlu0 %2196
    %v2198 = vsel %vm834, %v2166, -inf
    %2199 = vmax.xlane.f32.xlu0 %v2198
    %v2200 = vpop.xlane.xlu0 %2199
    %v2201 = vsel %vm834, %v2167, -inf
    %2202 = vmax.xlane.f32.xlu0 %v2201
    %v2203 = vpop.xlane.xlu0 %2202
    %v2204 = vsel %vm834, %v2168, -inf
    %2205 = vmax.xlane.f32.xlu0 %v2204
    %v2206 = vpop.xlane.xlu0 %2205
    %v2207 = vsel %vm834, %v2169, -inf
    %2208 = vmax.xlane.f32.xlu0 %v2207
    %v2209 = vpop.xlane.xlu0 %2208
    %v2210 = vsel %vm834, %v2170, -inf
    %2211 = vmax.xlane.f32.xlu0 %v2210
    %v2212 = vpop.xlane.xlu0 %2211
    %v2213 = vsel %vm834, %v2171, -inf
    %2214 = vmax.xlane.f32.xlu0 %v2213
    %v2215 = vpop.xlane.xlu0 %2214
    %v2216 = vsel %vm834, %v2172, -inf
    %2217 = vmax.xlane.f32.xlu0 %v2216
    %v2218 = vpop.xlane.xlu0 %2217
    %v2219 = vsel %vm834, %v2173, -inf
    %2220 = vmax.xlane.f32.xlu0 %v2219
    %v2221 = vpop.xlane.xlu0 %2220
    %v2222 = vsub.f32 %v2158, %v2176
    %v2223 = vsub.f32 %v2159, %v2179
    %v2224 = vsub.f32 %v2160, %v2182
    %v2225 = vsub.f32 %v2161, %v2185
    %v2226 = vsub.f32 %v2162, %v2188
    %v2227 = vsub.f32 %v2163, %v2191
    %v2228 = vsub.f32 %v2164, %v2194
    %v2229 = vsub.f32 %v2165, %v2197
    %v2230 = vsub.f32 %v2166, %v2200
    %v2231 = vsub.f32 %v2167, %v2203
    %v2232 = vsub.f32 %v2168, %v2206
    %v2233 = vsub.f32 %v2169, %v2209
    %v2234 = vsub.f32 %v2170, %v2212
    %v2235 = vsub.f32 %v2171, %v2215
    %v2236 = vsub.f32 %v2172, %v2218
    %v2237 = vsub.f32 %v2173, %v2221
    %v2238 = vmul.f32 %v2222, 1.442695
    %v2239 = vpow.pop %v2238
    %v2240 = vmul.f32 %v2223, 1.442695
    %v2241 = vpow.pop %v2240
    %v2242 = vmul.f32 %v2224, 1.442695
    %v2243 = vpow.pop %v2242
    %v2244 = vmul.f32 %v2225, 1.442695
    %v2245 = vpow.pop %v2244
    %v2246 = vmul.f32 %v2226, 1.442695
    %v2247 = vpow.pop %v2246
    %v2248 = vmul.f32 %v2227, 1.442695
    %v2249 = vpow.pop %v2248
    %v2250 = vmul.f32 %v2228, 1.442695
    %v2251 = vpow.pop %v2250
    %v2252 = vmul.f32 %v2229, 1.442695
    %v2253 = vpow.pop %v2252
    %v2254 = vmul.f32 %v2230, 1.442695
    %v2255 = vpow.pop %v2254
    %v2256 = vmul.f32 %v2231, 1.442695
    %v2257 = vpow.pop %v2256
    %v2258 = vmul.f32 %v2232, 1.442695
    %v2259 = vpow.pop %v2258
    %v2260 = vmul.f32 %v2233, 1.442695
    %v2261 = vpow.pop %v2260
    %v2262 = vmul.f32 %v2234, 1.442695
    %v2263 = vpow.pop %v2262
    %v2264 = vmul.f32 %v2235, 1.442695
    %v2265 = vpow.pop %v2264
    %v2266 = vmul.f32 %v2236, 1.442695
    %v2267 = vpow.pop %v2266
    %v2268 = vmul.f32 %v2237, 1.442695
    %v2269 = vpow.pop %v2268
    %v2270 = vsel %vm834, %v2239, 0.0
    %2271 = vadd.xlane.f32.xlu0 %v2270
    %v2272 = vpop.xlane.xlu0 %2271
    %v2273 = vsel %vm834, %v2241, 0.0
    %2274 = vadd.xlane.f32.xlu0 %v2273
    %v2275 = vpop.xlane.xlu0 %2274
    %v2276 = vsel %vm834, %v2243, 0.0
    %2277 = vadd.xlane.f32.xlu0 %v2276
    %v2278 = vpop.xlane.xlu0 %2277
    %v2279 = vsel %vm834, %v2245, 0.0
    %2280 = vadd.xlane.f32.xlu0 %v2279
    %v2281 = vpop.xlane.xlu0 %2280
    %v2282 = vsel %vm834, %v2247, 0.0
    %2283 = vadd.xlane.f32.xlu0 %v2282
    %v2284 = vpop.xlane.xlu0 %2283
    %v2285 = vsel %vm834, %v2249, 0.0
    %2286 = vadd.xlane.f32.xlu0 %v2285
    %v2287 = vpop.xlane.xlu0 %2286
    %v2288 = vsel %vm834, %v2251, 0.0
    %2289 = vadd.xlane.f32.xlu0 %v2288
    %v2290 = vpop.xlane.xlu0 %2289
    %v2291 = vsel %vm834, %v2253, 0.0
    %2292 = vadd.xlane.f32.xlu0 %v2291
    %v2293 = vpop.xlane.xlu0 %2292
    %v2294 = vsel %vm834, %v2255, 0.0
    %2295 = vadd.xlane.f32.xlu0 %v2294
    %v2296 = vpop.xlane.xlu0 %2295
    %v2297 = vsel %vm834, %v2257, 0.0
    %2298 = vadd.xlane.f32.xlu0 %v2297
    %v2299 = vpop.xlane.xlu0 %2298
    %v2300 = vsel %vm834, %v2259, 0.0
    %2301 = vadd.xlane.f32.xlu0 %v2300
    %v2302 = vpop.xlane.xlu0 %2301
    %v2303 = vsel %vm834, %v2261, 0.0
    %2304 = vadd.xlane.f32.xlu0 %v2303
    %v2305 = vpop.xlane.xlu0 %2304
    %v2306 = vsel %vm834, %v2263, 0.0
    %2307 = vadd.xlane.f32.xlu0 %v2306
    %v2308 = vpop.xlane.xlu0 %2307
    %v2309 = vsel %vm834, %v2265, 0.0
    %2310 = vadd.xlane.f32.xlu0 %v2309
    %v2311 = vpop.xlane.xlu0 %2310
    %v2312 = vsel %vm834, %v2267, 0.0
    %2313 = vadd.xlane.f32.xlu0 %v2312
    %v2314 = vpop.xlane.xlu0 %2313
    %v2315 = vsel %vm834, %v2269, 0.0
    %2316 = vadd.xlane.f32.xlu0 %v2315
    %v2317 = vpop.xlane.xlu0 %2316
    %v2318 = vrcp.pop %v2272
    %v2319 = vrcp.pop %v2275
    %v2320 = vrcp.pop %v2278
    %v2321 = vrcp.pop %v2281
    %v2322 = vrcp.pop %v2284
    %v2323 = vrcp.pop %v2287
    %v2324 = vrcp.pop %v2290
    %v2325 = vrcp.pop %v2293
    %v2326 = vrcp.pop %v2296
    %v2327 = vrcp.pop %v2299
    %v2328 = vrcp.pop %v2302
    %v2329 = vrcp.pop %v2305
    %v2330 = vrcp.pop %v2308
    %v2331 = vrcp.pop %v2311
    %v2332 = vrcp.pop %v2314
    %v2333 = vrcp.pop %v2317
    %v2334 = vmul.f32 %v2239, %v2318
    %v2335 = vmul.f32 %v2241, %v2319
    %v2336 = vmul.f32 %v2243, %v2320
    %v2337 = vmul.f32 %v2245, %v2321
    %v2338 = vmul.f32 %v2247, %v2322
    %v2339 = vmul.f32 %v2249, %v2323
    %v2340 = vmul.f32 %v2251, %v2324
    %v2341 = vmul.f32 %v2253, %v2325
    %v2342 = vmul.f32 %v2255, %v2326
    %v2343 = vmul.f32 %v2257, %v2327
    %v2344 = vmul.f32 %v2259, %v2328
    %v2345 = vmul.f32 %v2261, %v2329
    %v2346 = vmul.f32 %v2263, %v2330
    %v2347 = vmul.f32 %v2265, %v2331
    %v2348 = vmul.f32 %v2267, %v2332
    %v2349 = vmul.f32 %v2269, %v2333
    %v2350 = vpack.c.bf16 %v2335, %v2334
    %v2351 = vpack.c.bf16 %v2337, %v2336
    %v2352 = vpack.c.bf16 %v2339, %v2338
    %v2353 = vpack.c.bf16 %v2341, %v2340
    %v2354 = vpack.c.bf16 %v2343, %v2342
    %v2355 = vpack.c.bf16 %v2345, %v2344
    %v2356 = vpack.c.bf16 %v2347, %v2346
    %v2357 = vpack.c.bf16 %v2349, %v2348
    %v2358 = vpack.c.bf16 %v1707, %v1704
    %v2359 = vpack.c.bf16 %v1715, %v1712
    %v2360 = vpack.c.bf16 %v1723, %v1720
    %v2361 = vpack.c.bf16 %v1731, %v1728
    %v2362 = vpack.c.bf16 %v1739, %v1736
    %v2363 = vpack.c.bf16 %v1747, %v1744
    %v2364 = vpack.c.bf16 %v1755, %v1752
    %v2365 = vpack.c.bf16 %v1763, %v1760
    %v2367 = vsel %vm834, %v2350, 0
    %2369 = vmatprep.subr.bf16.mxu0 0
    %2370 = vmatpush1.bf16.msra.mxu0 %v2358
    %2371 = vmatprep.subr.bf16.mxu0 0
    %2372 = vmatpush1.bf16.msra.mxu0 0
    %2373 = vmatprep.subr.bf16.mxu0 0
    %2374 = vmatpush1.bf16.msra.mxu0 0
    %2375 = vmatprep.subr.bf16.mxu0 0
    %2376 = vmatpush1.bf16.msra.mxu0 0
    %2377 = vmatprep.subr.bf16.mxu0 0
    %2378 = vmatpush1.bf16.msra.mxu0 0
    %2379 = vmatprep.subr.bf16.mxu0 0
    %2380 = vmatpush1.bf16.msra.mxu0 0
    %2381 = vmatprep.subr.bf16.mxu0 0
    %2382 = vmatpush1.bf16.msra.mxu0 0
    %2383 = vmatprep.subr.bf16.mxu0 0
    %2384 = vmatpush1.bf16.msra.mxu0 0
    %2385 = vmatprep.subr.bf16.mxu0 0
    %2386 = vmatpush1.bf16.msra.mxu0 0
    %2387 = vmatprep.subr.bf16.mxu0 0
    %2388 = vmatpush1.bf16.msra.mxu0 0
    %2389 = vmatprep.subr.bf16.mxu0 0
    %2390 = vmatpush1.bf16.msra.mxu0 0
    %2391 = vmatprep.subr.bf16.mxu0 0
    %2392 = vmatpush1.bf16.msra.mxu0 0
    %2393 = vmatprep.subr.bf16.mxu0 0
    %2394 = vmatpush1.bf16.msra.mxu0 0
    %2395 = vmatprep.subr.bf16.mxu0 0
    %2396 = vmatpush1.bf16.msra.mxu0 0
    %2397 = vmatprep.subr.bf16.mxu0 0
    %2398 = vmatpush1.bf16.msra.mxu0 0
    %2399 = vmatprep.subr.bf16.mxu0 0
    %2400 = vmatpush1.bf16.msra.mxu0 0
    %2401 = vmatprep.mubr.bf16.mxu0 0
    %2402 = vmatmul.mubr.bf16.gmra.mrb[0].mxu0 %v2367
    %v2403 = vpop.f32.mrb[0].mxu0
    %v2404 = vadd.f32 0.0, %v2403
    %v2405 = vpop.f32.mrb[0].mxu0
    %v2406 = vpop.f32.mrb[0].mxu0
    %v2407 = vadd.f32 0.0, %v2406
    %v2408 = vpop.f32.mrb[0].mxu0
    %2409 = vdwg.mxu0
    %v2411 = vsel %vm834, %v2351, 0
    %2413 = vmatprep.subr.bf16.mxu0 0
    %2414 = vmatpush1.bf16.msra.mxu0 %v2359
    %2415 = vmatprep.subr.bf16.mxu0 0
    %2416 = vmatpush1.bf16.msra.mxu0 0
    %2417 = vmatprep.subr.bf16.mxu0 0
    %2418 = vmatpush1.bf16.msra.mxu0 0
    %2419 = vmatprep.subr.bf16.mxu0 0
    %2420 = vmatpush1.bf16.msra.mxu0 0
    %2421 = vmatprep.subr.bf16.mxu0 0
    %2422 = vmatpush1.bf16.msra.mxu0 0
    %2423 = vmatprep.subr.bf16.mxu0 0
    %2424 = vmatpush1.bf16.msra.mxu0 0
    %2425 = vmatprep.subr.bf16.mxu0 0
    %2426 = vmatpush1.bf16.msra.mxu0 0
    %2427 = vmatprep.subr.bf16.mxu0 0
    %2428 = vmatpush1.bf16.msra.mxu0 0
    %2429 = vmatprep.subr.bf16.mxu0 0
    %2430 = vmatpush1.bf16.msra.mxu0 0
    %2431 = vmatprep.subr.bf16.mxu0 0
    %2432 = vmatpush1.bf16.msra.mxu0 0
    %2433 = vmatprep.subr.bf16.mxu0 0
    %2434 = vmatpush1.bf16.msra.mxu0 0
    %2435 = vmatprep.subr.bf16.mxu0 0
    %2436 = vmatpush1.bf16.msra.mxu0 0
    %2437 = vmatprep.subr.bf16.mxu0 0
    %2438 = vmatpush1.bf16.msra.mxu0 0
    %2439 = vmatprep.subr.bf16.mxu0 0
    %2440 = vmatpush1.bf16.msra.mxu0 0
    %2441 = vmatprep.subr.bf16.mxu0 0
    %2442 = vmatpush1.bf16.msra.mxu0 0
    %2443 = vmatprep.subr.bf16.mxu0 0
    %2444 = vmatpush1.bf16.msra.mxu0 0
    %2445 = vmatprep.mubr.bf16.mxu0 0
    %2446 = vmatmul.mubr.bf16.gmra.mrb[0].mxu0 %v2411
    %v2447 = vpop.f32.mrb[0].mxu0
    %v2448 = vadd.f32 0.0, %v2447
    %v2449 = vpop.f32.mrb[0].mxu0
    %v2450 = vpop.f32.mrb[0].mxu0
    %v2451 = vadd.f32 0.0, %v2450
    %v2452 = vpop.f32.mrb[0].mxu0
    %2453 = vdwg.mxu0
    %v2455 = vsel %vm834, %v2352, 0
    %2457 = vmatprep.subr.bf16.mxu0 0
    %2458 = vmatpush1.bf16.msra.mxu0 %v2360
    %2459 = vmatprep.subr.bf16.mxu0 0
    %2460 = vmatpush1.bf16.msra.mxu0 0
    %2461 = vmatprep.subr.bf16.mxu0 0
    %2462 = vmatpush1.bf16.msra.mxu0 0
    %2463 = vmatprep.subr.bf16.mxu0 0
    %2464 = vmatpush1.bf16.msra.mxu0 0
    %2465 = vmatprep.subr.bf16.mxu0 0
    %2466 = vmatpush1.bf16.msra.mxu0 0
    %2467 = vmatprep.subr.bf16.mxu0 0
    %2468 = vmatpush1.bf16.msra.mxu0 0
    %2469 = vmatprep.subr.bf16.mxu0 0
    %2470 = vmatpush1.bf16.msra.mxu0 0
    %2471 = vmatprep.subr.bf16.mxu0 0
    %2472 = vmatpush1.bf16.msra.mxu0 0
    %2473 = vmatprep.subr.bf16.mxu0 0
    %2474 = vmatpush1.bf16.msra.mxu0 0
    %2475 = vmatprep.subr.bf16.mxu0 0
    %2476 = vmatpush1.bf16.msra.mxu0 0
    %2477 = vmatprep.subr.bf16.mxu0 0
    %2478 = vmatpush1.bf16.msra.mxu0 0
    %2479 = vmatprep.subr.bf16.mxu0 0
    %2480 = vmatpush1.bf16.msra.mxu0 0
    %2481 = vmatprep.subr.bf16.mxu0 0
    %2482 = vmatpush1.bf16.msra.mxu0 0
    %2483 = vmatprep.subr.bf16.mxu0 0
    %2484 = vmatpush1.bf16.msra.mxu0 0
    %2485 = vmatprep.subr.bf16.mxu0 0
    %2486 = vmatpush1.bf16.msra.mxu0 0
    %2487 = vmatprep.subr.bf16.mxu0 0
    %2488 = vmatpush1.bf16.msra.mxu0 0
    %2489 = vmatprep.mubr.bf16.mxu0 0
    %2490 = vmatmul.mubr.bf16.gmra.mrb[0].mxu0 %v2455
    %v2491 = vpop.f32.mrb[0].mxu0
    %v2492 = vadd.f32 0.0, %v2491
    %v2493 = vpop.f32.mrb[0].mxu0
    %v2494 = vpop.f32.mrb[0].mxu0
    %v2495 = vadd.f32 0.0, %v2494
    %v2496 = vpop.f32.mrb[0].mxu0
    %2497 = vdwg.mxu0
    %v2499 = vsel %vm834, %v2353, 0
    %2501 = vmatprep.subr.bf16.mxu0 0
    %2502 = vmatpush1.bf16.msra.mxu0 %v2361
    %2503 = vmatprep.subr.bf16.mxu0 0
    %2504 = vmatpush1.bf16.msra.mxu0 0
    %2505 = vmatprep.subr.bf16.mxu0 0
    %2506 = vmatpush1.bf16.msra.mxu0 0
    %2507 = vmatprep.subr.bf16.mxu0 0
    %2508 = vmatpush1.bf16.msra.mxu0 0
    %2509 = vmatprep.subr.bf16.mxu0 0
    %2510 = vmatpush1.bf16.msra.mxu0 0
    %2511 = vmatprep.subr.bf16.mxu0 0
    %2512 = vmatpush1.bf16.msra.mxu0 0
    %2513 = vmatprep.subr.bf16.mxu0 0
    %2514 = vmatpush1.bf16.msra.mxu0 0
    %2515 = vmatprep.subr.bf16.mxu0 0
    %2516 = vmatpush1.bf16.msra.mxu0 0
    %2517 = vmatprep.subr.bf16.mxu0 0
    %2518 = vmatpush1.bf16.msra.mxu0 0
    %2519 = vmatprep.subr.bf16.mxu0 0
    %2520 = vmatpush1.bf16.msra.mxu0 0
    %2521 = vmatprep.subr.bf16.mxu0 0
    %2522 = vmatpush1.bf16.msra.mxu0 0
    %2523 = vmatprep.subr.bf16.mxu0 0
    %2524 = vmatpush1.bf16.msra.mxu0 0
    %2525 = vmatprep.subr.bf16.mxu0 0
    %2526 = vmatpush1.bf16.msra.mxu0 0
    %2527 = vmatprep.subr.bf16.mxu0 0
    %2528 = vmatpush1.bf16.msra.mxu0 0
    %2529 = vmatprep.subr.bf16.mxu0 0
    %2530 = vmatpush1.bf16.msra.mxu0 0
    %2531 = vmatprep.subr.bf16.mxu0 0
    %2532 = vmatpush1.bf16.msra.mxu0 0
    %2533 = vmatprep.mubr.bf16.mxu0 0
    %2534 = vmatmul.mubr.bf16.gmra.mrb[0].mxu0 %v2499
    %v2535 = vpop.f32.mrb[0].mxu0
    %v2536 = vadd.f32 0.0, %v2535
    %v2537 = vpop.f32.mrb[0].mxu0
    %v2538 = vpop.f32.mrb[0].mxu0
    %v2539 = vadd.f32 0.0, %v2538
    %v2540 = vpop.f32.mrb[0].mxu0
    %2541 = vdwg.mxu0
    %v2543 = vsel %vm834, %v2354, 0
    %2545 = vmatprep.subr.bf16.mxu0 0
    %2546 = vmatpush1.bf16.msra.mxu0 %v2362
    %2547 = vmatprep.subr.bf16.mxu0 0
    %2548 = vmatpush1.bf16.msra.mxu0 0
    %2549 = vmatprep.subr.bf16.mxu0 0
    %2550 = vmatpush1.bf16.msra.mxu0 0
    %2551 = vmatprep.subr.bf16.mxu0 0
    %2552 = vmatpush1.bf16.msra.mxu0 0
    %2553 = vmatprep.subr.bf16.mxu0 0
    %2554 = vmatpush1.bf16.msra.mxu0 0
    %2555 = vmatprep.subr.bf16.mxu0 0
    %2556 = vmatpush1.bf16.msra.mxu0 0
    %2557 = vmatprep.subr.bf16.mxu0 0
    %2558 = vmatpush1.bf16.msra.mxu0 0
    %2559 = vmatprep.subr.bf16.mxu0 0
    %2560 = vmatpush1.bf16.msra.mxu0 0
    %2561 = vmatprep.subr.bf16.mxu0 0
    %2562 = vmatpush1.bf16.msra.mxu0 0
    %2563 = vmatprep.subr.bf16.mxu0 0
    %2564 = vmatpush1.bf16.msra.mxu0 0
    %2565 = vmatprep.subr.bf16.mxu0 0
    %2566 = vmatpush1.bf16.msra.mxu0 0
    %2567 = vmatprep.subr.bf16.mxu0 0
    %2568 = vmatpush1.bf16.msra.mxu0 0
    %2569 = vmatprep.subr.bf16.mxu0 0
    %2570 = vmatpush1.bf16.msra.mxu0 0
    %2571 = vmatprep.subr.bf16.mxu0 0
    %2572 = vmatpush1.bf16.msra.mxu0 0
    %2573 = vmatprep.subr.bf16.mxu0 0
    %2574 = vmatpush1.bf16.msra.mxu0 0
    %2575 = vmatprep.subr.bf16.mxu0 0
    %2576 = vmatpush1.bf16.msra.mxu0 0
    %2577 = vmatprep.mubr.bf16.mxu0 0
    %2578 = vmatmul.mubr.bf16.gmra.mrb[0].mxu0 %v2543
    %v2579 = vpop.f32.mrb[0].mxu0
    %v2580 = vadd.f32 0.0, %v2579
    %v2581 = vpop.f32.mrb[0].mxu0
    %v2582 = vpop.f32.mrb[0].mxu0
    %v2583 = vadd.f32 0.0, %v2582
    %v2584 = vpop.f32.mrb[0].mxu0
    %2585 = vdwg.mxu0
    %v2587 = vsel %vm834, %v2355, 0
    %2589 = vmatprep.subr.bf16.mxu0 0
    %2590 = vmatpush1.bf16.msra.mxu0 %v2363
    %2591 = vmatprep.subr.bf16.mxu0 0
    %2592 = vmatpush1.bf16.msra.mxu0 0
    %2593 = vmatprep.subr.bf16.mxu0 0
    %2594 = vmatpush1.bf16.msra.mxu0 0
    %2595 = vmatprep.subr.bf16.mxu0 0
    %2596 = vmatpush1.bf16.msra.mxu0 0
    %2597 = vmatprep.subr.bf16.mxu0 0
    %2598 = vmatpush1.bf16.msra.mxu0 0
    %2599 = vmatprep.subr.bf16.mxu0 0
    %2600 = vmatpush1.bf16.msra.mxu0 0
    %2601 = vmatprep.subr.bf16.mxu0 0
    %2602 = vmatpush1.bf16.msra.mxu0 0
    %2603 = vmatprep.subr.bf16.mxu0 0
    %2604 = vmatpush1.bf16.msra.mxu0 0
    %2605 = vmatprep.subr.bf16.mxu0 0
    %2606 = vmatpush1.bf16.msra.mxu0 0
    %2607 = vmatprep.subr.bf16.mxu0 0
    %2608 = vmatpush1.bf16.msra.mxu0 0
    %2609 = vmatprep.subr.bf16.mxu0 0
    %2610 = vmatpush1.bf16.msra.mxu0 0
    %2611 = vmatprep.subr.bf16.mxu0 0
    %2612 = vmatpush1.bf16.msra.mxu0 0
    %2613 = vmatprep.subr.bf16.mxu0 0
    %2614 = vmatpush1.bf16.msra.mxu0 0
    %2615 = vmatprep.subr.bf16.mxu0 0
    %2616 = vmatpush1.bf16.msra.mxu0 0
    %2617 = vmatprep.subr.bf16.mxu0 0
    %2618 = vmatpush1.bf16.msra.mxu0 0
    %2619 = vmatprep.subr.bf16.mxu0 0
    %2620 = vmatpush1.bf16.msra.mxu0 0
    %2621 = vmatprep.mubr.bf16.mxu0 0
    %2622 = vmatmul.mubr.bf16.gmra.mrb[0].mxu0 %v2587
    %v2623 = vpop.f32.mrb[0].mxu0
    %v2624 = vadd.f32 0.0, %v2623
    %v2625 = vpop.f32.mrb[0].mxu0
    %v2626 = vpop.f32.mrb[0].mxu0
    %v2627 = vadd.f32 0.0, %v2626
    %v2628 = vpop.f32.mrb[0].mxu0
    %2629 = vdwg.mxu0
    %v2631 = vsel %vm834, %v2356, 0
    %2633 = vmatprep.subr.bf16.mxu0 0
    %2634 = vmatpush1.bf16.msra.mxu0 %v2364
    %2635 = vmatprep.subr.bf16.mxu0 0
    %2636 = vmatpush1.bf16.msra.mxu0 0
    %2637 = vmatprep.subr.bf16.mxu0 0
    %2638 = vmatpush1.bf16.msra.mxu0 0
    %2639 = vmatprep.subr.bf16.mxu0 0
    %2640 = vmatpush1.bf16.msra.mxu0 0
    %2641 = vmatprep.subr.bf16.mxu0 0
    %2642 = vmatpush1.bf16.msra.mxu0 0
    %2643 = vmatprep.subr.bf16.mxu0 0
    %2644 = vmatpush1.bf16.msra.mxu0 0
    %2645 = vmatprep.subr.bf16.mxu0 0
    %2646 = vmatpush1.bf16.msra.mxu0 0
    %2647 = vmatprep.subr.bf16.mxu0 0
    %2648 = vmatpush1.bf16.msra.mxu0 0
    %2649 = vmatprep.subr.bf16.mxu0 0
    %2650 = vmatpush1.bf16.msra.mxu0 0
    %2651 = vmatprep.subr.bf16.mxu0 0
    %2652 = vmatpush1.bf16.msra.mxu0 0
    %2653 = vmatprep.subr.bf16.mxu0 0
    %2654 = vmatpush1.bf16.msra.mxu0 0
    %2655 = vmatprep.subr.bf16.mxu0 0
    %2656 = vmatpush1.bf16.msra.mxu0 0
    %2657 = vmatprep.subr.bf16.mxu0 0
    %2658 = vmatpush1.bf16.msra.mxu0 0
    %2659 = vmatprep.subr.bf16.mxu0 0
    %2660 = vmatpush1.bf16.msra.mxu0 0
    %2661 = vmatprep.subr.bf16.mxu0 0
    %2662 = vmatpush1.bf16.msra.mxu0 0
    %2663 = vmatprep.subr.bf16.mxu0 0
    %2664 = vmatpush1.bf16.msra.mxu0 0
    %2665 = vmatprep.mubr.bf16.mxu0 0
    %2666 = vmatmul.mubr.bf16.gmra.mrb[0].mxu0 %v2631
    %v2667 = vpop.f32.mrb[0].mxu0
    %v2668 = vadd.f32 0.0, %v2667
    %v2669 = vpop.f32.mrb[0].mxu0
    %v2670 = vpop.f32.mrb[0].mxu0
    %v2671 = vadd.f32 0.0, %v2670
    %v2672 = vpop.f32.mrb[0].mxu0
    %2673 = vdwg.mxu0
    %v2675 = vsel %vm834, %v2357, 0
    %2677 = vmatprep.subr.bf16.mxu0 0
    %2678 = vmatpush1.bf16.msra.mxu0 %v2365
    %2679 = vmatprep.subr.bf16.mxu0 0
    %2680 = vmatpush1.bf16.msra.mxu0 0
    %2681 = vmatprep.subr.bf16.mxu0 0
    %2682 = vmatpush1.bf16.msra.mxu0 0
    %2683 = vmatprep.subr.bf16.mxu0 0
    %2684 = vmatpush1.bf16.msra.mxu0 0
    %2685 = vmatprep.subr.bf16.mxu0 0
    %2686 = vmatpush1.bf16.msra.mxu0 0
    %2687 = vmatprep.subr.bf16.mxu0 0
    %2688 = vmatpush1.bf16.msra.mxu0 0
    %2689 = vmatprep.subr.bf16.mxu0 0
    %2690 = vmatpush1.bf16.msra.mxu0 0
    %2691 = vmatprep.subr.bf16.mxu0 0
    %2692 = vmatpush1.bf16.msra.mxu0 0
    %2693 = vmatprep.subr.bf16.mxu0 0
    %2694 = vmatpush1.bf16.msra.mxu0 0
    %2695 = vmatprep.subr.bf16.mxu0 0
    %2696 = vmatpush1.bf16.msra.mxu0 0
    %2697 = vmatprep.subr.bf16.mxu0 0
    %2698 = vmatpush1.bf16.msra.mxu0 0
    %2699 = vmatprep.subr.bf16.mxu0 0
    %2700 = vmatpush1.bf16.msra.mxu0 0
    %2701 = vmatprep.subr.bf16.mxu0 0
    %2702 = vmatpush1.bf16.msra.mxu0 0
    %2703 = vmatprep.subr.bf16.mxu0 0
    %2704 = vmatpush1.bf16.msra.mxu0 0
    %2705 = vmatprep.subr.bf16.mxu0 0
    %2706 = vmatpush1.bf16.msra.mxu0 0
    %2707 = vmatprep.subr.bf16.mxu0 0
    %2708 = vmatpush1.bf16.msra.mxu0 0
    %2709 = vmatprep.mubr.bf16.mxu0 0
    %2710 = vmatmul.mubr.bf16.gmra.mrb[0].mxu0 %v2675
    %v2711 = vpop.f32.mrb[0].mxu0
    %v2712 = vadd.f32 0.0, %v2711
    %v2713 = vpop.f32.mrb[0].mxu0
    %v2714 = vpop.f32.mrb[0].mxu0
    %v2715 = vadd.f32 0.0, %v2714
    %v2716 = vpop.f32.mrb[0].mxu0
    %2717 = vdwg.mxu0
    %v2718 = vmax.f32 %v2404, 0.0
    %v2719 = vmax.f32 %v2407, 0.0
    %v2720 = vmax.f32 %v2448, 0.0
    %v2721 = vmax.f32 %v2451, 0.0
    %v2722 = vmax.f32 %v2492, 0.0
    %v2723 = vmax.f32 %v2495, 0.0
    %v2724 = vmax.f32 %v2536, 0.0
    %v2725 = vmax.f32 %v2539, 0.0
    %v2726 = vmax.f32 %v2580, 0.0
    %v2727 = vmax.f32 %v2583, 0.0
    %v2728 = vmax.f32 %v2624, 0.0
    %v2729 = vmax.f32 %v2627, 0.0
    %v2730 = vmax.f32 %v2668, 0.0
    %v2731 = vmax.f32 %v2671, 0.0
    %v2732 = vmax.f32 %v2712, 0.0
    %v2733 = vmax.f32 %v2715, 0.0
    %v2734 = vpack.c.bf16 %v2719, %v2718
    %v2735 = vpack.c.bf16 %v2721, %v2720
    %v2736 = vpack.c.bf16 %v2723, %v2722
    %v2737 = vpack.c.bf16 %v2725, %v2724
    %v2738 = vpack.c.bf16 %v2727, %v2726
    %v2739 = vpack.c.bf16 %v2729, %v2728
    %v2740 = vpack.c.bf16 %v2731, %v2730
    %v2741 = vpack.c.bf16 %v2733, %v2732
    %v2742 = vld [vmem:[%s7] sm:$0xf]
    %v2743 = vld [vmem:[%s7 + $0x4] sm:$0xf]
    %v2744 = vld [vmem:[%s7 + $0x8] sm:$0xf]
    %v2745 = vld [vmem:[%s7 + $0xc] sm:$0xf]
    %v2746 = vld [vmem:[%s8] sm:$0x1]
    %v2748 = vlaneseq
    %v2749 = vshrl.u32 %v2748, 7
    %v2750 = vsub.s32 0, %v2749
    %v2751 = vrot.slane %v2746, %v2750
    %v2757 = vunpack.c.l.b16 %v2742
    %v2758 = vunpack.c.l.b16 %v2743
    %v2759 = vunpack.c.l.b16 %v2744
    %v2760 = vunpack.c.l.b16 %v2745
    %v2761 = vpack.c.b16 %v2758, %v2757
    %v2762 = vpack.c.b16 %v2760, %v2759
    %v2766 = vsel %vm441, %v2734, 0
    %v2769 = vsel %vm441, %v2735, 0
    %v2772 = vsel %vm441, %v2736, 0
    %v2775 = vsel %vm441, %v2737, 0
    %v2778 = vsel %vm441, %v2738, 0
    %v2781 = vsel %vm441, %v2739, 0
    %v2784 = vsel %vm441, %v2740, 0
    %v2787 = vsel %vm441, %v2741, 0
    %2789 = vmatprep.subr.bf16.mxu0 0
    %2790 = vmatpush1.bf16.msra.mxu0 %v2761
    %2791 = vmatprep.subr.bf16.mxu0 0
    %2792 = vmatpush1.bf16.msra.mxu0 %v2762
    %2793 = vmatprep.subr.bf16.mxu0 0
    %2794 = vmatpush1.bf16.msra.mxu0 0
    %2795 = vmatprep.subr.bf16.mxu0 0
    %2796 = vmatpush1.bf16.msra.mxu0 0
    %2797 = vmatprep.subr.bf16.mxu0 0
    %2798 = vmatpush1.bf16.msra.mxu0 0
    %2799 = vmatprep.subr.bf16.mxu0 0
    %2800 = vmatpush1.bf16.msra.mxu0 0
    %2801 = vmatprep.subr.bf16.mxu0 0
    %2802 = vmatpush1.bf16.msra.mxu0 0
    %2803 = vmatprep.subr.bf16.mxu0 0
    %2804 = vmatpush1.bf16.msra.mxu0 0
    %2805 = vmatprep.subr.bf16.mxu0 0
    %2806 = vmatpush1.bf16.msra.mxu0 0
    %2807 = vmatprep.subr.bf16.mxu0 0
    %2808 = vmatpush1.bf16.msra.mxu0 0
    %2809 = vmatprep.subr.bf16.mxu0 0
    %2810 = vmatpush1.bf16.msra.mxu0 0
    %2811 = vmatprep.subr.bf16.mxu0 0
    %2812 = vmatpush1.bf16.msra.mxu0 0
    %2813 = vmatprep.subr.bf16.mxu0 0
    %2814 = vmatpush1.bf16.msra.mxu0 0
    %2815 = vmatprep.subr.bf16.mxu0 0
    %2816 = vmatpush1.bf16.msra.mxu0 0
    %2817 = vmatprep.subr.bf16.mxu0 0
    %2818 = vmatpush1.bf16.msra.mxu0 0
    %2819 = vmatprep.subr.bf16.mxu0 0
    %2820 = vmatpush1.bf16.msra.mxu0 0
    %2821 = vmatprep.mubr.bf16.mxu0 0
    %2822 = vmatmul.mubr.bf16.gmra.mrb[0].mxu0 %v2766
    %v2823 = vpop.f32.mrb[0].mxu0
    %v2824 = vadd.f32 %v2751, %v2823
    %v2825 = vpop.f32.mrb[0].mxu0
    %v2826 = vpop.f32.mrb[0].mxu0
    %v2827 = vadd.f32 %v2751, %v2826
    %v2828 = vpop.f32.mrb[0].mxu0
    %2829 = vmatprep.mubr.bf16.mxu0 0
    %2830 = vmatmul.mubr.bf16.gmra.mrb[0].mxu0 %v2769
    %v2831 = vpop.f32.mrb[0].mxu0
    %v2832 = vadd.f32 %v2751, %v2831
    %v2833 = vpop.f32.mrb[0].mxu0
    %v2834 = vpop.f32.mrb[0].mxu0
    %v2835 = vadd.f32 %v2751, %v2834
    %v2836 = vpop.f32.mrb[0].mxu0
    %2837 = vmatprep.mubr.bf16.mxu0 0
    %2838 = vmatmul.mubr.bf16.gmra.mrb[0].mxu0 %v2772
    %v2839 = vpop.f32.mrb[0].mxu0
    %v2840 = vadd.f32 %v2751, %v2839
    %v2841 = vpop.f32.mrb[0].mxu0
    %v2842 = vpop.f32.mrb[0].mxu0
    %v2843 = vadd.f32 %v2751, %v2842
    %v2844 = vpop.f32.mrb[0].mxu0
    %2845 = vmatprep.mubr.bf16.mxu0 0
    %2846 = vmatmul.mubr.bf16.gmra.mrb[0].mxu0 %v2775
    %v2847 = vpop.f32.mrb[0].mxu0
    %v2848 = vadd.f32 %v2751, %v2847
    %v2849 = vpop.f32.mrb[0].mxu0
    %v2850 = vpop.f32.mrb[0].mxu0
    %v2851 = vadd.f32 %v2751, %v2850
    %v2852 = vpop.f32.mrb[0].mxu0
    %2853 = vmatprep.mubr.bf16.mxu0 0
    %2854 = vmatmul.mubr.bf16.gmra.mrb[0].mxu0 %v2778
    %v2855 = vpop.f32.mrb[0].mxu0
    %v2856 = vadd.f32 %v2751, %v2855
    %v2857 = vpop.f32.mrb[0].mxu0
    %v2858 = vpop.f32.mrb[0].mxu0
    %v2859 = vadd.f32 %v2751, %v2858
    %v2860 = vpop.f32.mrb[0].mxu0
    %2861 = vmatprep.mubr.bf16.mxu0 0
    %2862 = vmatmul.mubr.bf16.gmra.mrb[0].mxu0 %v2781
    %v2863 = vpop.f32.mrb[0].mxu0
    %v2864 = vadd.f32 %v2751, %v2863
    %v2865 = vpop.f32.mrb[0].mxu0
    %v2866 = vpop.f32.mrb[0].mxu0
    %v2867 = vadd.f32 %v2751, %v2866
    %v2868 = vpop.f32.mrb[0].mxu0
    %2869 = vmatprep.mubr.bf16.mxu0 0
    %2870 = vmatmul.mubr.bf16.gmra.mrb[0].mxu0 %v2784
    %v2871 = vpop.f32.mrb[0].mxu0
    %v2872 = vadd.f32 %v2751, %v2871
    %v2873 = vpop.f32.mrb[0].mxu0
    %v2874 = vpop.f32.mrb[0].mxu0
    %v2875 = vadd.f32 %v2751, %v2874
    %v2876 = vpop.f32.mrb[0].mxu0
    %2877 = vmatprep.mubr.bf16.mxu0 0
    %2878 = vmatmul.mubr.bf16.gmra.mrb[0].mxu0 %v2787
    %v2879 = vpop.f32.mrb[0].mxu0
    %v2880 = vadd.f32 %v2751, %v2879
    %v2881 = vpop.f32.mrb[0].mxu0
    %v2882 = vpop.f32.mrb[0].mxu0
    %v2883 = vadd.f32 %v2751, %v2882
    %v2884 = vpop.f32.mrb[0].mxu0
    %2885 = vdwg.mxu0
    %v2886 = vmax.f32 %v2824, 0.0
    %v2887 = vmax.f32 %v2827, 0.0
    %v2888 = vmax.f32 %v2832, 0.0
    %v2889 = vmax.f32 %v2835, 0.0
    %v2890 = vmax.f32 %v2840, 0.0
    %v2891 = vmax.f32 %v2843, 0.0
    %v2892 = vmax.f32 %v2848, 0.0
    %v2893 = vmax.f32 %v2851, 0.0
    %v2894 = vmax.f32 %v2856, 0.0
    %v2895 = vmax.f32 %v2859, 0.0
    %v2896 = vmax.f32 %v2864, 0.0
    %v2897 = vmax.f32 %v2867, 0.0
    %v2898 = vmax.f32 %v2872, 0.0
    %v2899 = vmax.f32 %v2875, 0.0
    %v2900 = vmax.f32 %v2880, 0.0
    %v2901 = vmax.f32 %v2883, 0.0
    %v2902 = vpack.c.bf16 %v2887, %v2886
    %v2903 = vpack.c.bf16 %v2889, %v2888
    %v2904 = vpack.c.bf16 %v2891, %v2890
    %v2905 = vpack.c.bf16 %v2893, %v2892
    %v2906 = vpack.c.bf16 %v2895, %v2894
    %v2907 = vpack.c.bf16 %v2897, %v2896
    %v2908 = vpack.c.bf16 %v2899, %v2898
    %v2909 = vpack.c.bf16 %v2901, %v2900
    %v2910 = vld [vmem:[%s9] sm:$0xf]
    %v2911 = vld [vmem:[%s9 + $0x4] sm:$0xf]
    %v2912 = vld [vmem:[%s9 + $0x8] sm:$0xf]
    %v2913 = vld [vmem:[%s9 + $0xc] sm:$0xf]
    %v2914 = vld [vmem:[%s10] sm:$0x1]
    %v2916 = vlaneseq
    %v2917 = vshrl.u32 %v2916, 7
    %v2918 = vsub.s32 0, %v2917
    %v2919 = vrot.slane %v2914, %v2918
    %v2925 = vunpack.c.l.b16 %v2910
    %v2926 = vunpack.c.l.b16 %v2911
    %v2927 = vunpack.c.l.b16 %v2912
    %v2928 = vunpack.c.l.b16 %v2913
    %v2929 = vpack.c.b16 %v2926, %v2925
    %v2930 = vpack.c.b16 %v2928, %v2927
    %v2934 = vsel %vm441, %v2902, 0
    %v2937 = vsel %vm441, %v2903, 0
    %v2940 = vsel %vm441, %v2904, 0
    %v2943 = vsel %vm441, %v2905, 0
    %v2946 = vsel %vm441, %v2906, 0
    %v2949 = vsel %vm441, %v2907, 0
    %v2952 = vsel %vm441, %v2908, 0
    %v2955 = vsel %vm441, %v2909, 0
    %2957 = vmatprep.subr.bf16.mxu0 0
    %2958 = vmatpush1.bf16.msra.mxu0 %v2929
    %2959 = vmatprep.subr.bf16.mxu0 0
    %2960 = vmatpush1.bf16.msra.mxu0 %v2930
    %2961 = vmatprep.subr.bf16.mxu0 0
    %2962 = vmatpush1.bf16.msra.mxu0 0
    %2963 = vmatprep.subr.bf16.mxu0 0
    %2964 = vmatpush1.bf16.msra.mxu0 0
    %2965 = vmatprep.subr.bf16.mxu0 0
    %2966 = vmatpush1.bf16.msra.mxu0 0
    %2967 = vmatprep.subr.bf16.mxu0 0
    %2968 = vmatpush1.bf16.msra.mxu0 0
    %2969 = vmatprep.subr.bf16.mxu0 0
    %2970 = vmatpush1.bf16.msra.mxu0 0
    %2971 = vmatprep.subr.bf16.mxu0 0
    %2972 = vmatpush1.bf16.msra.mxu0 0
    %2973 = vmatprep.subr.bf16.mxu0 0
    %2974 = vmatpush1.bf16.msra.mxu0 0
    %2975 = vmatprep.subr.bf16.mxu0 0
    %2976 = vmatpush1.bf16.msra.mxu0 0
    %2977 = vmatprep.subr.bf16.mxu0 0
    %2978 = vmatpush1.bf16.msra.mxu0 0
    %2979 = vmatprep.subr.bf16.mxu0 0
    %2980 = vmatpush1.bf16.msra.mxu0 0
    %2981 = vmatprep.subr.bf16.mxu0 0
    %2982 = vmatpush1.bf16.msra.mxu0 0
    %2983 = vmatprep.subr.bf16.mxu0 0
    %2984 = vmatpush1.bf16.msra.mxu0 0
    %2985 = vmatprep.subr.bf16.mxu0 0
    %2986 = vmatpush1.bf16.msra.mxu0 0
    %2987 = vmatprep.subr.bf16.mxu0 0
    %2988 = vmatpush1.bf16.msra.mxu0 0
    %2989 = vmatprep.mubr.bf16.mxu0 0
    %2990 = vmatmul.mubr.bf16.gmra.mrb[0].mxu0 %v2934
    %v2991 = vpop.f32.mrb[0].mxu0
    %v2992 = vadd.f32 %v2919, %v2991
    %v2993 = vpop.f32.mrb[0].mxu0
    %v2994 = vpop.f32.mrb[0].mxu0
    %v2995 = vadd.f32 %v2919, %v2994
    %v2996 = vpop.f32.mrb[0].mxu0
    %2997 = vmatprep.mubr.bf16.mxu0 0
    %2998 = vmatmul.mubr.bf16.gmra.mrb[0].mxu0 %v2937
    %v2999 = vpop.f32.mrb[0].mxu0
    %v3000 = vadd.f32 %v2919, %v2999
    %v3001 = vpop.f32.mrb[0].mxu0
    %v3002 = vpop.f32.mrb[0].mxu0
    %v3003 = vadd.f32 %v2919, %v3002
    %v3004 = vpop.f32.mrb[0].mxu0
    %3005 = vmatprep.mubr.bf16.mxu0 0
    %3006 = vmatmul.mubr.bf16.gmra.mrb[0].mxu0 %v2940
    %v3007 = vpop.f32.mrb[0].mxu0
    %v3008 = vadd.f32 %v2919, %v3007
    %v3009 = vpop.f32.mrb[0].mxu0
    %v3010 = vpop.f32.mrb[0].mxu0
    %v3011 = vadd.f32 %v2919, %v3010
    %v3012 = vpop.f32.mrb[0].mxu0
    %3013 = vmatprep.mubr.bf16.mxu0 0
    %3014 = vmatmul.mubr.bf16.gmra.mrb[0].mxu0 %v2943
    %v3015 = vpop.f32.mrb[0].mxu0
    %v3016 = vadd.f32 %v2919, %v3015
    %v3017 = vpop.f32.mrb[0].mxu0
    %v3018 = vpop.f32.mrb[0].mxu0
    %v3019 = vadd.f32 %v2919, %v3018
    %v3020 = vpop.f32.mrb[0].mxu0
    %3021 = vmatprep.mubr.bf16.mxu0 0
    %3022 = vmatmul.mubr.bf16.gmra.mrb[0].mxu0 %v2946
    %v3023 = vpop.f32.mrb[0].mxu0
    %v3024 = vadd.f32 %v2919, %v3023
    %v3025 = vpop.f32.mrb[0].mxu0
    %v3026 = vpop.f32.mrb[0].mxu0
    %v3027 = vadd.f32 %v2919, %v3026
    %v3028 = vpop.f32.mrb[0].mxu0
    %3029 = vmatprep.mubr.bf16.mxu0 0
    %3030 = vmatmul.mubr.bf16.gmra.mrb[0].mxu0 %v2949
    %v3031 = vpop.f32.mrb[0].mxu0
    %v3032 = vadd.f32 %v2919, %v3031
    %v3033 = vpop.f32.mrb[0].mxu0
    %v3034 = vpop.f32.mrb[0].mxu0
    %v3035 = vadd.f32 %v2919, %v3034
    %v3036 = vpop.f32.mrb[0].mxu0
    %3037 = vmatprep.mubr.bf16.mxu0 0
    %3038 = vmatmul.mubr.bf16.gmra.mrb[0].mxu0 %v2952
    %v3039 = vpop.f32.mrb[0].mxu0
    %v3040 = vadd.f32 %v2919, %v3039
    %v3041 = vpop.f32.mrb[0].mxu0
    %v3042 = vpop.f32.mrb[0].mxu0
    %v3043 = vadd.f32 %v2919, %v3042
    %v3044 = vpop.f32.mrb[0].mxu0
    %3045 = vmatprep.mubr.bf16.mxu0 0
    %3046 = vmatmul.mubr.bf16.gmra.mrb[0].mxu0 %v2955
    %v3047 = vpop.f32.mrb[0].mxu0
    %v3048 = vadd.f32 %v2919, %v3047
    %v3049 = vpop.f32.mrb[0].mxu0
    %v3050 = vpop.f32.mrb[0].mxu0
    %v3051 = vadd.f32 %v2919, %v3050
    %v3052 = vpop.f32.mrb[0].mxu0
    %3053 = vdwg.mxu0
    %v3054 = vmax.f32 %v2992, %v2995
    %v3055 = vrot.slane %v3054, 4
    %v3056 = vmax.f32 %v3054, %v3055
    %v3057 = vrot.slane %v3056, 2
    %v3058 = vmax.f32 %v3056, %v3057
    %v3059 = vrot.slane %v3058, 1
    %v3060 = vmax.f32 %v3058, %v3059
    %v3061 = vmax.f32 %v3000, %v3003
    %v3062 = vrot.slane %v3061, 4
    %v3063 = vmax.f32 %v3061, %v3062
    %v3064 = vrot.slane %v3063, 2
    %v3065 = vmax.f32 %v3063, %v3064
    %v3066 = vrot.slane %v3065, 1
    %v3067 = vmax.f32 %v3065, %v3066
    %v3068 = vmax.f32 %v3008, %v3011
    %v3069 = vrot.slane %v3068, 4
    %v3070 = vmax.f32 %v3068, %v3069
    %v3071 = vrot.slane %v3070, 2
    %v3072 = vmax.f32 %v3070, %v3071
    %v3073 = vrot.slane %v3072, 1
    %v3074 = vmax.f32 %v3072, %v3073
    %v3075 = vmax.f32 %v3016, %v3019
    %v3076 = vrot.slane %v3075, 4
    %v3077 = vmax.f32 %v3075, %v3076
    %v3078 = vrot.slane %v3077, 2
    %v3079 = vmax.f32 %v3077, %v3078
    %v3080 = vrot.slane %v3079, 1
    %v3081 = vmax.f32 %v3079, %v3080
    %v3082 = vmax.f32 %v3024, %v3027
    %v3083 = vrot.slane %v3082, 4
    %v3084 = vmax.f32 %v3082, %v3083
    %v3085 = vrot.slane %v3084, 2
    %v3086 = vmax.f32 %v3084, %v3085
    %v3087 = vrot.slane %v3086, 1
    %v3088 = vmax.f32 %v3086, %v3087
    %v3089 = vmax.f32 %v3032, %v3035
    %v3090 = vrot.slane %v3089, 4
    %v3091 = vmax.f32 %v3089, %v3090
    %v3092 = vrot.slane %v3091, 2
    %v3093 = vmax.f32 %v3091, %v3092
    %v3094 = vrot.slane %v3093, 1
    %v3095 = vmax.f32 %v3093, %v3094
    %v3096 = vmax.f32 %v3040, %v3043
    %v3097 = vrot.slane %v3096, 4
    %v3098 = vmax.f32 %v3096, %v3097
    %v3099 = vrot.slane %v3098, 2
    %v3100 = vmax.f32 %v3098, %v3099
    %v3101 = vrot.slane %v3100, 1
    %v3102 = vmax.f32 %v3100, %v3101
    %v3103 = vmax.f32 %v3048, %v3051
    %v3104 = vrot.slane %v3103, 4
    %v3105 = vmax.f32 %v3103, %v3104
    %v3106 = vrot.slane %v3105, 2
    %v3107 = vmax.f32 %v3105, %v3106
    %v3108 = vrot.slane %v3107, 1
    %v3109 = vmax.f32 %v3107, %v3108
    %vm3118 = vcmask 1041409
    %v3119 = vsel %vm3118, %v3067, %v3060
    %vm3120 = vcmask 1042434
    %v3121 = vsel %vm3120, %v3074, %v3119
    %vm3122 = vcmask 1043459
    %v3123 = vsel %vm3122, %v3081, %v3121
    %vm3124 = vcmask 1044484
    %v3125 = vsel %vm3124, %v3088, %v3123
    %vm3126 = vcmask 1045509
    %v3127 = vsel %vm3126, %v3095, %v3125
    %vm3128 = vcmask 1046534
    %v3129 = vsel %vm3128, %v3102, %v3127
    %vm3130 = vcmask 1047559
    %v3131 = vsel %vm3130, %v3109, %v3129
    %3133 = vst [vmem:[#allocation2] sm:$0xff] %v3131
    // Predicated region
    $region46: #{tpu_custom_call.1} parent=1 // pred_check
      _
    $region47: #{tpu_custom_call.1} parent=1 // pred_check_branch
      %3135 = sbr.rel (0) target = $region49
    $region48: #{tpu_custom_call.1} parent=1 // pred_region
      %s3137 = ssub.s32 128, 128
      %3138 = vsyncadd [#allocation3], %s3137
      %s3140 = sshll.u32 [#allocation2], 4
      %s3141 = int_to_ptr.vmem [resolvable:$true] %s3140
      %3143 = dma.vmem_to_hbm [thread:$0]  %s3141, 128, %s11, [#allocation3]
    $region49: #{tpu_custom_call.1} parent=1 // pred_fallthru
      _
    // Predicated region
    $region50: #{tpu_custom_call.1} parent=1 // pred_check
      _
    $region51: #{tpu_custom_call.1} parent=1 // pred_check_branch
      %3145 = sbr.rel (0) target = $region53
    $region52: #{tpu_custom_call.1} parent=1 // pred_region
      %3146 = dma.done [#allocation3], 128
    $region53: #{tpu_custom_call.1} parent=1 // pred_fallthru
      _
    %3147 = vsyncpa [#allocation3], 1

</llo_original>
